<compile_context>
chip_gen: v7x
topology: tpu7x:2x2x1
jax: 0.10.0
libtpu: 0.0.40
codegen_flags: <defaults>
</compile_context>

<pallas_src>
from functools import partial
from math import sqrt

import jax
import jax.numpy as jnp
from jax.experimental import pallas as pl
from jax.experimental.pallas import tpu as pltpu


def _fused_weight(weight, multiplier):
    """PyTorch: pad(w*mult, [1,1,1,1]); average of the 4 shifted copies."""
    w = weight * multiplier
    w_p = jnp.pad(w, ((0, 0), (0, 0), (1, 1), (1, 1)))
    return (w_p[:, :, 1:, 1:] + w_p[:, :, :-1, 1:]
            + w_p[:, :, 1:, :-1] + w_p[:, :, :-1, :-1]) / 4.0   # (Cin, Cout, Ke, Ke)


def _make_kernel(Ke, W_row, P):
    taps = Ke * Ke

    def kernel(x_ref, w_ref, b_ref, o_ref):
        # x_ref: (1, Cin, L_in)     bf16  flat dilated+padded image (row pitch W_row)
        # w_ref: (Ke*Ke, Cout, Cin) bf16  per-tap weight matrices
        # b_ref: (Cout, 1)          f32
        # o_ref: (1, Cout, P)       f32   wide (junk-column) output, lane-dense
        acc = None
        for t in range(taps):
            kh, kw = divmod(t, Ke)
            off = kh * W_row + kw
            xp = x_ref[0, :, off:off + P]                     # (Cin, P) bf16, static slice
            c = jax.lax.dot_general(
                w_ref[t], xp,
                dimension_numbers=(((1,), (0,)), ((), ())),
                preferred_element_type=jnp.float32)           # (Cout, P) f32
            acc = c if acc is None else acc + c
        o_ref[0] = acc + b_ref[...]                           # bias broadcast over lanes

    return kernel


@partial(jax.jit, static_argnums=(3,))
def fused_upsample(x, weight, bias, padding):
    """FusedUpsample.forward: conv_transpose2d(x, smoothed(weight), bias, stride=2, padding)."""
    N, Cin, H, W = x.shape
    Cin_w, Cout, K, _ = weight.shape
    assert Cin == Cin_w
    multiplier = sqrt(2.0 / (Cin * K * K))
    Ke = K + 1

    # conv_transpose2d(stride=2, pad=p) == valid conv of the 2x zero-dilated,
    # (Ke-1-p)-padded input with the flipped kernel (out-channels leading).
    pp = Ke - 1 - padding
    assert pp >= 0  # restricts padding <= Ke-1 (holds for MSG-GAN / StyleGAN configs)

    w_eff = _fused_weight(weight, multiplier)                      # (Cin, Cout, Ke, Ke)
    w_conv = jnp.flip(w_eff, axis=(2, 3)).transpose(1, 0, 2, 3)    # (Cout, Cin, Ke, Ke)
    w_taps = (w_conv.transpose(2, 3, 0, 1)
              .reshape(Ke * Ke, Cout, Cin).astype(jnp.bfloat16))   # [kh*Ke+kw, co, ci]
    bias2d = bias.reshape(Cout, 1).astype(jnp.float32)

    H_pad = (H - 1) * 2 + 1 + 2 * pp
    W_pad = (W - 1) * 2 + 1 + 2 * pp
    H_out = H_pad - Ke + 1
    W_out = W_pad - Ke + 1

    # Row pitch of the flattened image: >= W_pad, chosen so the per-image wide
    # output length H_out*W_row is a multiple of 128 (fully lane-dense stores).
    W_row = W_pad
    while (H_out * W_row) % 128 != 0:
        W_row += 1
    P = H_out * W_row                                   # wide output positions / image
    L_need = P + (Ke - 1) * W_row + (Ke - 1)            # max tap-slice end
    L_in = -(-L_need // 128) * 128

    # Dilate by 2 (interior pad), edge-pad by pp, pad row pitch to W_row,
    # flatten spatially, zero-pad the tail.  Stays ~4x the bytes of x (bf16),
    # vs. the ~64x, 75%-zero im2col matrix this replaces.
    x_dp = jax.lax.pad(x, jnp.array(0.0, x.dtype),
                       ((0, 0, 0), (0, 0, 0), (pp, pp, 1), (pp, pp, 1)))
    x_dp = jnp.pad(x_dp, ((0, 0), (0, 0), (0, 0), (0, W_row - W_pad)))
    x_flat = x_dp.reshape(N, Cin, H_pad * W_row)
    x_flat = jnp.pad(x_flat, ((0, 0), (0, 0), (0, L_in - H_pad * W_row)))
    x_flat = x_flat.astype(jnp.bfloat16)

    kernel = _make_kernel(Ke, W_row, P)
    flops = 2 * N * Ke * Ke * Cin * Cout * P
    bytes_accessed = (N * Cin * L_in * 2 + Ke * Ke * Cout * Cin * 2
                      + Cout * 4 + N * Cout * P * 4)

    out_wide = pl.pallas_call(
        kernel,
        out_shape=jax.ShapeDtypeStruct((N, Cout, P), jnp.float32),
        grid_spec=pltpu.PrefetchScalarGridSpec(
            num_scalar_prefetch=0,
            grid=(N,),
            in_specs=[
                pl.BlockSpec((1, Cin, L_in), lambda n: (n, 0, 0)),
                pl.BlockSpec((Ke * Ke, Cout, Cin), lambda n: (0, 0, 0)),
                pl.BlockSpec((Cout, 1), lambda n: (0, 0)),
            ],
            out_specs=pl.BlockSpec((1, Cout, P), lambda n: (n, 0, 0)),
        ),
        compiler_params=pltpu.CompilerParams(
            dimension_semantics=("parallel",)),
        cost_estimate=pl.CostEstimate(flops=flops, transcendentals=0,
                                      bytes_accessed=bytes_accessed),
    )(x_flat, w_taps, bias2d)

    # Free reshape + junk-column slice; no transpose needed (output is already NCHW-ordered).
    out = out_wide.reshape(N, Cout, H_out, W_row)[:, :, :, :W_out]
    return out


if __name__ == "__main__":
    key = jax.random.PRNGKey(0)
    kx, kw = jax.random.split(key)

    # Module config: FusedUpsample(in_channel=4, out_channel=4, kernel_size=3, padding=1)
    N, Cin, H, W = 2, 4, 16, 16
    Cout, K, padding = 4, 3, 1

    x = jax.random.normal(kx, (N, Cin, H, W), jnp.float32)
    weight = jax.random.normal(kw, (Cin, Cout, K, K), jnp.float32)  # torch.randn analogue
    bias = jnp.zeros((Cout,), jnp.float32)                          # torch.zeros analogue

    out = jax.block_until_ready(fused_upsample(x, weight, bias, padding))

    # Reference (pure f32): exact conv_transpose2d semantics via dilated conv.
    multiplier = sqrt(2.0 / (Cin * K * K))
    w_eff = _fused_weight(weight, multiplier)
    Ke = K + 1
    pp = Ke - 1 - padding
    w_flip = jnp.flip(w_eff, axis=(2, 3)).transpose(1, 0, 2, 3)
    ref = jax.lax.conv_general_dilated(
        x, w_flip, window_strides=(1, 1),
        padding=[(pp, pp), (pp, pp)],
        lhs_dilation=(2, 2),
        dimension_numbers=("NCHW", "OIHW", "NCHW")) + bias[None, :, None, None]

    assert out.shape == (N, Cout, 2 * H, 2 * W), out.shape
    err = float(jnp.max(jnp.abs(out - ref)))
    # bf16 operands with f32 accumulation -> tolerance looser than pure-f32.
    assert jnp.allclose(out, ref, atol=3e-2, rtol=3e-2), err
    print("KERNEL_OK")
</pallas_src>

<mosaic_0001>
module attributes {stable_mosaic.version = 11 : i64} {
  func.func @kernel(%arg0: i32, %arg1: memref<1x4x1280xbf16, #tpu.memory_space<vmem>>, %arg2: memref<16x4x4xbf16, #tpu.memory_space<vmem>>, %arg3: memref<4x1xf32, #tpu.memory_space<vmem>>, %arg4: memref<1x4x1152xf32, #tpu.memory_space<vmem>>) attributes {dimension_semantics = [#tpu.dimension_semantics<parallel>], iteration_bounds = array<i64: 2>, scalar_prefetch = 0 : i64, scratch_operands = 0 : i64, tpu.core_type = #tpu.core_type<tc>, window_params = [{transform_indices = @transform_0, window_bounds = array<i64: 1, 4, 1280>}, {pipeline_mode = #tpu.pipeline_mode<synchronous>, transform_indices = @transform_1, window_bounds = array<i64: 16, 4, 4>}, {pipeline_mode = #tpu.pipeline_mode<synchronous>, transform_indices = @transform_2, window_bounds = array<i64: 4, 1>}, {transform_indices = @transform_3, window_bounds = array<i64: 1, 4, 1152>}]} {
    %c0 = arith.constant 0 : index
    %c0_0 = arith.constant 0 : index
    %c0_1 = arith.constant 0 : index
    %0 = vector.load %arg1[%c0, %c0_0, %c0_1] : memref<1x4x1280xbf16, #tpu.memory_space<vmem>>, vector<1x4x1152xbf16>
    %1 = vector.shape_cast %0 : vector<1x4x1152xbf16> to vector<4x1152xbf16>
    %c0_2 = arith.constant 0 : index
    %c0_3 = arith.constant 0 : index
    %c0_4 = arith.constant 0 : index
    %2 = vector.load %arg2[%c0_2, %c0_3, %c0_4] : memref<16x4x4xbf16, #tpu.memory_space<vmem>>, vector<1x4x4xbf16>
    %3 = vector.shape_cast %2 : vector<1x4x4xbf16> to vector<4x4xbf16>
    %cst = arith.constant dense<0.000000e+00> : vector<4x1152xf32>
    %4 = tpu.matmul %3, %1, %cst {dimension_numbers = #tpu.dot_dimension_numbers<[1], [0], [0], [1], [0, 0, 1, 1], [], []>} : vector<4x4xbf16>, vector<4x1152xbf16>, vector<4x1152xf32> -> vector<4x1152xf32>
    %c0_5 = arith.constant 0 : index
    %c0_6 = arith.constant 0 : index
    %c1 = arith.constant 1 : index
    %5 = vector.load %arg1[%c0_5, %c0_6, %c1] : memref<1x4x1280xbf16, #tpu.memory_space<vmem>>, vector<1x4x1152xbf16>
    %6 = vector.shape_cast %5 : vector<1x4x1152xbf16> to vector<4x1152xbf16>
    %c1_7 = arith.constant 1 : index
    %c0_8 = arith.constant 0 : index
    %c0_9 = arith.constant 0 : index
    %7 = vector.load %arg2[%c1_7, %c0_8, %c0_9] : memref<16x4x4xbf16, #tpu.memory_space<vmem>>, vector<1x4x4xbf16>
    %8 = vector.shape_cast %7 : vector<1x4x4xbf16> to vector<4x4xbf16>
    %cst_10 = arith.constant dense<0.000000e+00> : vector<4x1152xf32>
    %9 = tpu.matmul %8, %6, %cst_10 {dimension_numbers = #tpu.dot_dimension_numbers<[1], [0], [0], [1], [0, 0, 1, 1], [], []>} : vector<4x4xbf16>, vector<4x1152xbf16>, vector<4x1152xf32> -> vector<4x1152xf32>
    %10 = arith.addf %4, %9 : vector<4x1152xf32>
    %c0_11 = arith.constant 0 : index
    %c0_12 = arith.constant 0 : index
    %c2 = arith.constant 2 : index
    %11 = vector.load %arg1[%c0_11, %c0_12, %c2] : memref<1x4x1280xbf16, #tpu.memory_space<vmem>>, vector<1x4x1152xbf16>
    %12 = vector.shape_cast %11 : vector<1x4x1152xbf16> to vector<4x1152xbf16>
    %c2_13 = arith.constant 2 : index
    %c0_14 = arith.constant 0 : index
    %c0_15 = arith.constant 0 : index
    %13 = vector.load %arg2[%c2_13, %c0_14, %c0_15] : memref<16x4x4xbf16, #tpu.memory_space<vmem>>, vector<1x4x4xbf16>
    %14 = vector.shape_cast %13 : vector<1x4x4xbf16> to vector<4x4xbf16>
    %cst_16 = arith.constant dense<0.000000e+00> : vector<4x1152xf32>
    %15 = tpu.matmul %14, %12, %cst_16 {dimension_numbers = #tpu.dot_dimension_numbers<[1], [0], [0], [1], [0, 0, 1, 1], [], []>} : vector<4x4xbf16>, vector<4x1152xbf16>, vector<4x1152xf32> -> vector<4x1152xf32>
    %16 = arith.addf %10, %15 : vector<4x1152xf32>
    %c0_17 = arith.constant 0 : index
    %c0_18 = arith.constant 0 : index
    %c3 = arith.constant 3 : index
    %17 = vector.load %arg1[%c0_17, %c0_18, %c3] : memref<1x4x1280xbf16, #tpu.memory_space<vmem>>, vector<1x4x1152xbf16>
    %18 = vector.shape_cast %17 : vector<1x4x1152xbf16> to vector<4x1152xbf16>
    %c3_19 = arith.constant 3 : index
    %c0_20 = arith.constant 0 : index
    %c0_21 = arith.constant 0 : index
    %19 = vector.load %arg2[%c3_19, %c0_20, %c0_21] : memref<16x4x4xbf16, #tpu.memory_space<vmem>>, vector<1x4x4xbf16>
    %20 = vector.shape_cast %19 : vector<1x4x4xbf16> to vector<4x4xbf16>
    %cst_22 = arith.constant dense<0.000000e+00> : vector<4x1152xf32>
    %21 = tpu.matmul %20, %18, %cst_22 {dimension_numbers = #tpu.dot_dimension_numbers<[1], [0], [0], [1], [0, 0, 1, 1], [], []>} : vector<4x4xbf16>, vector<4x1152xbf16>, vector<4x1152xf32> -> vector<4x1152xf32>
    %22 = arith.addf %16, %21 : vector<4x1152xf32>
    %c0_23 = arith.constant 0 : index
    %c0_24 = arith.constant 0 : index
    %c36 = arith.constant 36 : index
    %23 = vector.load %arg1[%c0_23, %c0_24, %c36] : memref<1x4x1280xbf16, #tpu.memory_space<vmem>>, vector<1x4x1152xbf16>
    %24 = vector.shape_cast %23 : vector<1x4x1152xbf16> to vector<4x1152xbf16>
    %c4 = arith.constant 4 : index
    %c0_25 = arith.constant 0 : index
    %c0_26 = arith.constant 0 : index
    %25 = vector.load %arg2[%c4, %c0_25, %c0_26] : memref<16x4x4xbf16, #tpu.memory_space<vmem>>, vector<1x4x4xbf16>
    %26 = vector.shape_cast %25 : vector<1x4x4xbf16> to vector<4x4xbf16>
    %cst_27 = arith.constant dense<0.000000e+00> : vector<4x1152xf32>
    %27 = tpu.matmul %26, %24, %cst_27 {dimension_numbers = #tpu.dot_dimension_numbers<[1], [0], [0], [1], [0, 0, 1, 1], [], []>} : vector<4x4xbf16>, vector<4x1152xbf16>, vector<4x1152xf32> -> vector<4x1152xf32>
    %28 = arith.addf %22, %27 : vector<4x1152xf32>
    %c0_28 = arith.constant 0 : index
    %c0_29 = arith.constant 0 : index
    %c37 = arith.constant 37 : index
    %29 = vector.load %arg1[%c0_28, %c0_29, %c37] : memref<1x4x1280xbf16, #tpu.memory_space<vmem>>, vector<1x4x1152xbf16>
    %30 = vector.shape_cast %29 : vector<1x4x1152xbf16> to vector<4x1152xbf16>
    %c5 = arith.constant 5 : index
    %c0_30 = arith.constant 0 : index
    %c0_31 = arith.constant 0 : index
    %31 = vector.load %arg2[%c5, %c0_30, %c0_31] : memref<16x4x4xbf16, #tpu.memory_space<vmem>>, vector<1x4x4xbf16>
    %32 = vector.shape_cast %31 : vector<1x4x4xbf16> to vector<4x4xbf16>
    %cst_32 = arith.constant dense<0.000000e+00> : vector<4x1152xf32>
    %33 = tpu.matmul %32, %30, %cst_32 {dimension_numbers = #tpu.dot_dimension_numbers<[1], [0], [0], [1], [0, 0, 1, 1], [], []>} : vector<4x4xbf16>, vector<4x1152xbf16>, vector<4x1152xf32> -> vector<4x1152xf32>
    %34 = arith.addf %28, %33 : vector<4x1152xf32>
    %c0_33 = arith.constant 0 : index
    %c0_34 = arith.constant 0 : index
    %c38 = arith.constant 38 : index
    %35 = vector.load %arg1[%c0_33, %c0_34, %c38] : memref<1x4x1280xbf16, #tpu.memory_space<vmem>>, vector<1x4x1152xbf16>
    %36 = vector.shape_cast %35 : vector<1x4x1152xbf16> to vector<4x1152xbf16>
    %c6 = arith.constant 6 : index
    %c0_35 = arith.constant 0 : index
    %c0_36 = arith.constant 0 : index
    %37 = vector.load %arg2[%c6, %c0_35, %c0_36] : memref<16x4x4xbf16, #tpu.memory_space<vmem>>, vector<1x4x4xbf16>
    %38 = vector.shape_cast %37 : vector<1x4x4xbf16> to vector<4x4xbf16>
    %cst_37 = arith.constant dense<0.000000e+00> : vector<4x1152xf32>
    %39 = tpu.matmul %38, %36, %cst_37 {dimension_numbers = #tpu.dot_dimension_numbers<[1], [0], [0], [1], [0, 0, 1, 1], [], []>} : vector<4x4xbf16>, vector<4x1152xbf16>, vector<4x1152xf32> -> vector<4x1152xf32>
    %40 = arith.addf %34, %39 : vector<4x1152xf32>
    %c0_38 = arith.constant 0 : index
    %c0_39 = arith.constant 0 : index
    %c39 = arith.constant 39 : index
    %41 = vector.load %arg1[%c0_38, %c0_39, %c39] : memref<1x4x1280xbf16, #tpu.memory_space<vmem>>, vector<1x4x1152xbf16>
    %42 = vector.shape_cast %41 : vector<1x4x1152xbf16> to vector<4x1152xbf16>
    %c7 = arith.constant 7 : index
    %c0_40 = arith.constant 0 : index
    %c0_41 = arith.constant 0 : index
    %43 = vector.load %arg2[%c7, %c0_40, %c0_41] : memref<16x4x4xbf16, #tpu.memory_space<vmem>>, vector<1x4x4xbf16>
    %44 = vector.shape_cast %43 : vector<1x4x4xbf16> to vector<4x4xbf16>
    %cst_42 = arith.constant dense<0.000000e+00> : vector<4x1152xf32>
    %45 = tpu.matmul %44, %42, %cst_42 {dimension_numbers = #tpu.dot_dimension_numbers<[1], [0], [0], [1], [0, 0, 1, 1], [], []>} : vector<4x4xbf16>, vector<4x1152xbf16>, vector<4x1152xf32> -> vector<4x1152xf32>
    %46 = arith.addf %40, %45 : vector<4x1152xf32>
    %c0_43 = arith.constant 0 : index
    %c0_44 = arith.constant 0 : index
    %c72 = arith.constant 72 : index
    %47 = vector.load %arg1[%c0_43, %c0_44, %c72] : memref<1x4x1280xbf16, #tpu.memory_space<vmem>>, vector<1x4x1152xbf16>
    %48 = vector.shape_cast %47 : vector<1x4x1152xbf16> to vector<4x1152xbf16>
    %c8 = arith.constant 8 : index
    %c0_45 = arith.constant 0 : index
    %c0_46 = arith.constant 0 : index
    %49 = vector.load %arg2[%c8, %c0_45, %c0_46] : memref<16x4x4xbf16, #tpu.memory_space<vmem>>, vector<1x4x4xbf16>
    %50 = vector.shape_cast %49 : vector<1x4x4xbf16> to vector<4x4xbf16>
    %cst_47 = arith.constant dense<0.000000e+00> : vector<4x1152xf32>
    %51 = tpu.matmul %50, %48, %cst_47 {dimension_numbers = #tpu.dot_dimension_numbers<[1], [0], [0], [1], [0, 0, 1, 1], [], []>} : vector<4x4xbf16>, vector<4x1152xbf16>, vector<4x1152xf32> -> vector<4x1152xf32>
    %52 = arith.addf %46, %51 : vector<4x1152xf32>
    %c0_48 = arith.constant 0 : index
    %c0_49 = arith.constant 0 : index
    %c73 = arith.constant 73 : index
    %53 = vector.load %arg1[%c0_48, %c0_49, %c73] : memref<1x4x1280xbf16, #tpu.memory_space<vmem>>, vector<1x4x1152xbf16>
    %54 = vector.shape_cast %53 : vector<1x4x1152xbf16> to vector<4x1152xbf16>
    %c9 = arith.constant 9 : index
    %c0_50 = arith.constant 0 : index
    %c0_51 = arith.constant 0 : index
    %55 = vector.load %arg2[%c9, %c0_50, %c0_51] : memref<16x4x4xbf16, #tpu.memory_space<vmem>>, vector<1x4x4xbf16>
    %56 = vector.shape_cast %55 : vector<1x4x4xbf16> to vector<4x4xbf16>
    %cst_52 = arith.constant dense<0.000000e+00> : vector<4x1152xf32>
    %57 = tpu.matmul %56, %54, %cst_52 {dimension_numbers = #tpu.dot_dimension_numbers<[1], [0], [0], [1], [0, 0, 1, 1], [], []>} : vector<4x4xbf16>, vector<4x1152xbf16>, vector<4x1152xf32> -> vector<4x1152xf32>
    %58 = arith.addf %52, %57 : vector<4x1152xf32>
    %c0_53 = arith.constant 0 : index
    %c0_54 = arith.constant 0 : index
    %c74 = arith.constant 74 : index
    %59 = vector.load %arg1[%c0_53, %c0_54, %c74] : memref<1x4x1280xbf16, #tpu.memory_space<vmem>>, vector<1x4x1152xbf16>
    %60 = vector.shape_cast %59 : vector<1x4x1152xbf16> to vector<4x1152xbf16>
    %c10 = arith.constant 10 : index
    %c0_55 = arith.constant 0 : index
    %c0_56 = arith.constant 0 : index
    %61 = vector.load %arg2[%c10, %c0_55, %c0_56] : memref<16x4x4xbf16, #tpu.memory_space<vmem>>, vector<1x4x4xbf16>
    %62 = vector.shape_cast %61 : vector<1x4x4xbf16> to vector<4x4xbf16>
    %cst_57 = arith.constant dense<0.000000e+00> : vector<4x1152xf32>
    %63 = tpu.matmul %62, %60, %cst_57 {dimension_numbers = #tpu.dot_dimension_numbers<[1], [0], [0], [1], [0, 0, 1, 1], [], []>} : vector<4x4xbf16>, vector<4x1152xbf16>, vector<4x1152xf32> -> vector<4x1152xf32>
    %64 = arith.addf %58, %63 : vector<4x1152xf32>
    %c0_58 = arith.constant 0 : index
    %c0_59 = arith.constant 0 : index
    %c75 = arith.constant 75 : index
    %65 = vector.load %arg1[%c0_58, %c0_59, %c75] : memref<1x4x1280xbf16, #tpu.memory_space<vmem>>, vector<1x4x1152xbf16>
    %66 = vector.shape_cast %65 : vector<1x4x1152xbf16> to vector<4x1152xbf16>
    %c11 = arith.constant 11 : index
    %c0_60 = arith.constant 0 : index
    %c0_61 = arith.constant 0 : index
    %67 = vector.load %arg2[%c11, %c0_60, %c0_61] : memref<16x4x4xbf16, #tpu.memory_space<vmem>>, vector<1x4x4xbf16>
    %68 = vector.shape_cast %67 : vector<1x4x4xbf16> to vector<4x4xbf16>
    %cst_62 = arith.constant dense<0.000000e+00> : vector<4x1152xf32>
    %69 = tpu.matmul %68, %66, %cst_62 {dimension_numbers = #tpu.dot_dimension_numbers<[1], [0], [0], [1], [0, 0, 1, 1], [], []>} : vector<4x4xbf16>, vector<4x1152xbf16>, vector<4x1152xf32> -> vector<4x1152xf32>
    %70 = arith.addf %64, %69 : vector<4x1152xf32>
    %c0_63 = arith.constant 0 : index
    %c0_64 = arith.constant 0 : index
    %c108 = arith.constant 108 : index
    %71 = vector.load %arg1[%c0_63, %c0_64, %c108] : memref<1x4x1280xbf16, #tpu.memory_space<vmem>>, vector<1x4x1152xbf16>
    %72 = vector.shape_cast %71 : vector<1x4x1152xbf16> to vector<4x1152xbf16>
    %c12 = arith.constant 12 : index
    %c0_65 = arith.constant 0 : index
    %c0_66 = arith.constant 0 : index
    %73 = vector.load %arg2[%c12, %c0_65, %c0_66] : memref<16x4x4xbf16, #tpu.memory_space<vmem>>, vector<1x4x4xbf16>
    %74 = vector.shape_cast %73 : vector<1x4x4xbf16> to vector<4x4xbf16>
    %cst_67 = arith.constant dense<0.000000e+00> : vector<4x1152xf32>
    %75 = tpu.matmul %74, %72, %cst_67 {dimension_numbers = #tpu.dot_dimension_numbers<[1], [0], [0], [1], [0, 0, 1, 1], [], []>} : vector<4x4xbf16>, vector<4x1152xbf16>, vector<4x1152xf32> -> vector<4x1152xf32>
    %76 = arith.addf %70, %75 : vector<4x1152xf32>
    %c0_68 = arith.constant 0 : index
    %c0_69 = arith.constant 0 : index
    %c109 = arith.constant 109 : index
    %77 = vector.load %arg1[%c0_68, %c0_69, %c109] : memref<1x4x1280xbf16, #tpu.memory_space<vmem>>, vector<1x4x1152xbf16>
    %78 = vector.shape_cast %77 : vector<1x4x1152xbf16> to vector<4x1152xbf16>
    %c13 = arith.constant 13 : index
    %c0_70 = arith.constant 0 : index
    %c0_71 = arith.constant 0 : index
    %79 = vector.load %arg2[%c13, %c0_70, %c0_71] : memref<16x4x4xbf16, #tpu.memory_space<vmem>>, vector<1x4x4xbf16>
    %80 = vector.shape_cast %79 : vector<1x4x4xbf16> to vector<4x4xbf16>
    %cst_72 = arith.constant dense<0.000000e+00> : vector<4x1152xf32>
    %81 = tpu.matmul %80, %78, %cst_72 {dimension_numbers = #tpu.dot_dimension_numbers<[1], [0], [0], [1], [0, 0, 1, 1], [], []>} : vector<4x4xbf16>, vector<4x1152xbf16>, vector<4x1152xf32> -> vector<4x1152xf32>
    %82 = arith.addf %76, %81 : vector<4x1152xf32>
    %c0_73 = arith.constant 0 : index
    %c0_74 = arith.constant 0 : index
    %c110 = arith.constant 110 : index
    %83 = vector.load %arg1[%c0_73, %c0_74, %c110] : memref<1x4x1280xbf16, #tpu.memory_space<vmem>>, vector<1x4x1152xbf16>
    %84 = vector.shape_cast %83 : vector<1x4x1152xbf16> to vector<4x1152xbf16>
    %c14 = arith.constant 14 : index
    %c0_75 = arith.constant 0 : index
    %c0_76 = arith.constant 0 : index
    %85 = vector.load %arg2[%c14, %c0_75, %c0_76] : memref<16x4x4xbf16, #tpu.memory_space<vmem>>, vector<1x4x4xbf16>
    %86 = vector.shape_cast %85 : vector<1x4x4xbf16> to vector<4x4xbf16>
    %cst_77 = arith.constant dense<0.000000e+00> : vector<4x1152xf32>
    %87 = tpu.matmul %86, %84, %cst_77 {dimension_numbers = #tpu.dot_dimension_numbers<[1], [0], [0], [1], [0, 0, 1, 1], [], []>} : vector<4x4xbf16>, vector<4x1152xbf16>, vector<4x1152xf32> -> vector<4x1152xf32>
    %88 = arith.addf %82, %87 : vector<4x1152xf32>
    %c0_78 = arith.constant 0 : index
    %c0_79 = arith.constant 0 : index
    %c111 = arith.constant 111 : index
    %89 = vector.load %arg1[%c0_78, %c0_79, %c111] : memref<1x4x1280xbf16, #tpu.memory_space<vmem>>, vector<1x4x1152xbf16>
    %90 = vector.shape_cast %89 : vector<1x4x1152xbf16> to vector<4x1152xbf16>
    %c15 = arith.constant 15 : index
    %c0_80 = arith.constant 0 : index
    %c0_81 = arith.constant 0 : index
    %91 = vector.load %arg2[%c15, %c0_80, %c0_81] : memref<16x4x4xbf16, #tpu.memory_space<vmem>>, vector<1x4x4xbf16>
    %92 = vector.shape_cast %91 : vector<1x4x4xbf16> to vector<4x4xbf16>
    %cst_82 = arith.constant dense<0.000000e+00> : vector<4x1152xf32>
    %93 = tpu.matmul %92, %90, %cst_82 {dimension_numbers = #tpu.dot_dimension_numbers<[1], [0], [0], [1], [0, 0, 1, 1], [], []>} : vector<4x4xbf16>, vector<4x1152xbf16>, vector<4x1152xf32> -> vector<4x1152xf32>
    %94 = arith.addf %88, %93 : vector<4x1152xf32>
    %c0_83 = arith.constant 0 : index
    %c0_84 = arith.constant 0 : index
    %95 = vector.load %arg3[%c0_83, %c0_84] : memref<4x1xf32, #tpu.memory_space<vmem>>, vector<4x1xf32>
    %96 = vector.broadcast %95 : vector<4x1xf32> to vector<4x1152xf32>
    %97 = arith.addf %94, %96 : vector<4x1152xf32>
    %c0_85 = arith.constant 0 : index
    %c0_86 = arith.constant 0 : index
    %c0_87 = arith.constant 0 : index
    %98 = vector.load %arg4[%c0_85, %c0_86, %c0_87] : memref<1x4x1152xf32, #tpu.memory_space<vmem>>, vector<1x4x1152xf32>
    %99 = vector.shape_cast %98 : vector<1x4x1152xf32> to vector<4x1152xf32>
    %100 = vector.shape_cast %97 : vector<4x1152xf32> to vector<1x4x1152xf32>
    tpu.vector_store %arg4[%c0_85, %c0_86, %c0_87], %100 {strides = array<i32>} : memref<1x4x1152xf32, #tpu.memory_space<vmem>>, vector<1x4x1152xf32>,
    return
  }
  func.func @transform_0(%arg0: i32) -> (i32, i32, i32) {
    %c0_i32 = arith.constant 0 : i32
    %c0_i32_0 = arith.constant 0 : i32
    %c0_i32_1 = arith.constant 0 : i32
    return %arg0, %c0_i32, %c0_i32_0 : i32, i32, i32
  }
  func.func @transform_1(%arg0: i32) -> (i32, i32, i32) {
    %c0_i32 = arith.constant 0 : i32
    %c0_i32_0 = arith.constant 0 : i32
    %c0_i32_1 = arith.constant 0 : i32
    %c0_i32_2 = arith.constant 0 : i32
    return %c0_i32, %c0_i32_0, %c0_i32_1 : i32, i32, i32
  }
  func.func @transform_2(%arg0: i32) -> (i32, i32) {
    %c0_i32 = arith.constant 0 : i32
    %c0_i32_0 = arith.constant 0 : i32
    %c0_i32_1 = arith.constant 0 : i32
    return %c0_i32, %c0_i32_0 : i32, i32
  }
  func.func @transform_3(%arg0: i32) -> (i32, i32, i32) {
    %c0_i32 = arith.constant 0 : i32
    %c0_i32_0 = arith.constant 0 : i32
    %c0_i32_1 = arith.constant 0 : i32
    return %arg0, %c0_i32, %c0_i32_0 : i32, i32, i32
  }
}

</mosaic_0001>

<llo_original>
// kernel: fused_upsample.1
$region0: #{fused_upsample.1}
  #allocation0 [shape = 'u32[]', space=smem, size = 0x4, offset = 0x4, fixed_abs, tag = 'smem constant byte address 0x4 - core index']
  #allocation1 [shape = 'u32[144,128]{1,0:T(1,128)}', space=vmem, size = 0x12000, scoped, tag = 'internal scratch']
  %s0 = inlined_call_operand.vmem [shape: bf16[2,4,1280], index: 0, kind: input, shape index: {}]
  %s1 = inlined_call_operand.vmem [shape: bf16[16,4,4], index: 1, kind: input, shape index: {}]
  %s2 = inlined_call_operand.vmem [shape: f32[4,1], index: 2, kind: input, shape index: {}]
  %s3 = inlined_call_operand.vmem [shape: f32[2,4,1152], index: 3, kind: output, shape index: {}]
  %s4 = sld [smem:[#allocation0]]
  $region45: #{fused_upsample.1} parent=0
    _
  %s6 = ssub.s32 1, %s4
  %s7 = scalar_select 0, %s6, %s4
  loop: start=0, step=1, limit=4
  $region2: #{fused_upsample.1} parent=0 // loop_pre_header
    _
  $region3: #{fused_upsample.1} parent=0 // loop_header
    %s9 = sphi 0, %s13
    %p10 = scmp.ge.s32.totalorder %s9, 4
    %s19 = sphi 0, %s21
    %s22 = sphi 0, %s19
    %s23 = sphi 0, %s22
    %s39 = sphi 0, %s23
    %s43 = sphi 0, %s43
    %s45 = sphi 0, %s43
    %s46 = sphi 0, %s45
    %s60 = sphi 0, %s46
    %s64 = sphi 0, %s64
    %s66 = sphi 0, %s64
    %s67 = sphi 0, %s66
    %s81 = sphi 0, %s67
    %s87 = sphi 0, %s89
    %s90 = sphi 0, %s87
    %s91 = sphi 0, %s90
    %s107 = sphi 0, %s91
  $region4: #{fused_upsample.1} parent=0 // loop_header_branch
    %12 = sbr.rel (%p10) target = $region8
  $region5: #{fused_upsample.1} parent=0 // loop_body
    %s14 = ssub.s32 %s9, 1
    %s15 = ssub.s32 %s9, 2
    %s16 = sadd.s32 %s9, 1
    %s17 = ssub.s32 %s9, %s16
    %p18 = scmp.eq.s32.totalorder %s17, 0
    %s20 = sadd.s32 %s19, 1
    %s21 = scalar_select %p18, %s19, %s20
    %p24 = pneg %p18
    %p25 = scmp.eq.s32.totalorder %s9, 1
    %p26 = por %p24, %p25
    %p27 = scmp.ne.s32.totalorder %s19, %s22
    %p28 = scmp.eq.s32.totalorder %s9, 0
    %p29 = por %p27, %p28
    %p30 = scmp.ne.s32.totalorder %s19, %s22
    %p31 = scmp.eq.s32.totalorder %s14, 1
    %p32 = por %p30, %p31
    %p33 = scmp.ne.s32.totalorder %s22, %s23
    %p34 = scmp.eq.s32.totalorder %s14, 0
    %p35 = por %p33, %p34
    %p36 = scmp.ne.s32.totalorder %s22, %s23
    %p37 = scmp.eq.s32.totalorder %s15, 1
    %p38 = por %p36, %p37
    %p40 = scmp.ne.s32.totalorder %s23, %s39
    %p41 = scmp.eq.s32.totalorder %s15, 0
    %p42 = por %p40, %p41
    %s44 = sadd.s32 %s43, 1
    %p47 = scmp.eq.s32.totalorder %s9, 1
    %p48 = scmp.ne.s32.totalorder %s43, %s45
    %p49 = scmp.eq.s32.totalorder %s9, 0
    %p50 = por %p48, %p49
    %p51 = scmp.ne.s32.totalorder %s43, %s45
    %p52 = scmp.eq.s32.totalorder %s14, 1
    %p53 = por %p51, %p52
    %p54 = scmp.ne.s32.totalorder %s45, %s46
    %p55 = scmp.eq.s32.totalorder %s14, 0
    %p56 = por %p54, %p55
    %p57 = scmp.ne.s32.totalorder %s45, %s46
    %p58 = scmp.eq.s32.totalorder %s15, 1
    %p59 = por %p57, %p58
    %p61 = scmp.ne.s32.totalorder %s46, %s60
    %p62 = scmp.eq.s32.totalorder %s15, 0
    %p63 = por %p61, %p62
    %s65 = sadd.s32 %s64, 1
    %p68 = scmp.eq.s32.totalorder %s9, 1
    %p69 = scmp.ne.s32.totalorder %s64, %s66
    %p70 = scmp.eq.s32.totalorder %s9, 0
    %p71 = por %p69, %p70
    %p72 = scmp.ne.s32.totalorder %s64, %s66
    %p73 = scmp.eq.s32.totalorder %s14, 1
    %p74 = por %p72, %p73
    %p75 = scmp.ne.s32.totalorder %s66, %s67
    %p76 = scmp.eq.s32.totalorder %s14, 0
    %p77 = por %p75, %p76
    %p78 = scmp.ne.s32.totalorder %s66, %s67
    %p79 = scmp.eq.s32.totalorder %s15, 1
    %p80 = por %p78, %p79
    %p82 = scmp.ne.s32.totalorder %s67, %s81
    %p83 = scmp.eq.s32.totalorder %s15, 0
    %p84 = por %p82, %p83
    %s85 = ssub.s32 %s9, %s16
    %p86 = scmp.eq.s32.totalorder %s85, 0
    %s88 = sadd.s32 %s87, 1
    %s89 = scalar_select %p86, %s87, %s88
    %p92 = pneg %p86
    %p93 = scmp.eq.s32.totalorder %s9, 1
    %p94 = por %p92, %p93
    %p95 = scmp.ne.s32.totalorder %s87, %s90
    %p96 = scmp.eq.s32.totalorder %s9, 0
    %p97 = por %p95, %p96
    %p98 = scmp.ne.s32.totalorder %s87, %s90
    %p99 = scmp.eq.s32.totalorder %s14, 1
    %p100 = por %p98, %p99
    %p101 = scmp.ne.s32.totalorder %s90, %s91
    %p102 = scmp.eq.s32.totalorder %s14, 0
    %p103 = por %p101, %p102
    %p104 = scmp.ne.s32.totalorder %s90, %s91
    %p105 = scmp.eq.s32.totalorder %s15, 1
    %p106 = por %p104, %p105
    %p108 = scmp.ne.s32.totalorder %s91, %s107
    %p109 = scmp.eq.s32.totalorder %s15, 0
    %p110 = por %p108, %p109
    %p111 = scmp.le.s32.totalorder 1, %s9
    %p112 = scmp.lt.s32.totalorder %s9, 3
    %p113 = pnand %p111, %p112
    %p114 = pneg %p113
    // Predicated region
    $region9: #{fused_upsample.1} parent=5 // pred_check
      _
    $region10: #{fused_upsample.1} parent=5 // pred_check_branch
      %116 = sbr.rel (%p113) target = $region12
    $region11: #{fused_upsample.1} parent=5 // pred_region
      %s117 = ssub.s32 %s9, 1
      // Predicated region
      $region13: #{fused_upsample.1} parent=11 // pred_check
        %p118 = pneg %p56
      $region14: #{fused_upsample.1} parent=11 // pred_check_branch
        %120 = sbr.rel (%p118) target = $region16
      $region15: #{fused_upsample.1} parent=11 // pred_region
        _
      $region16: #{fused_upsample.1} parent=11 // pred_fallthru
        _
      // Predicated region
      $region17: #{fused_upsample.1} parent=11 // pred_check
        %p121 = pneg %p77
      $region18: #{fused_upsample.1} parent=11 // pred_check_branch
        %123 = sbr.rel (%p121) target = $region20
      $region19: #{fused_upsample.1} parent=11 // pred_region
        _
      $region20: #{fused_upsample.1} parent=11 // pred_fallthru
        _
    $region12: #{fused_upsample.1} parent=5 // pred_fallthru
      _
    %p124 = scmp.lt.s32.totalorder %s9, 2
    // Predicated region
    $region21: #{fused_upsample.1} parent=5 // pred_check
      %p125 = pneg %p124
    $region22: #{fused_upsample.1} parent=5 // pred_check_branch
      %127 = sbr.rel (%p125) target = $region24
    $region23: #{fused_upsample.1} parent=5 // pred_region
      // Predicated region
      $region25: #{fused_upsample.1} parent=23 // pred_check
        %p128 = pneg %p29
      $region26: #{fused_upsample.1} parent=23 // pred_check_branch
        %130 = sbr.rel (%p128) target = $region28
      $region27: #{fused_upsample.1} parent=23 // pred_region
        %p131 = scmp.lt.s32.totalorder %s9, 1
        %s132 = scalar_select %p131, %s9, 1
        %s133 = smul.addr %s132, 10
        %s134 = smul.addr %s133, 2
        %s135 = scalar_lea.vmem %s0, %s134
      $region28: #{fused_upsample.1} parent=23 // pred_fallthru
        _
    $region24: #{fused_upsample.1} parent=5 // pred_fallthru
      _
    %p136 = scmp.le.s32.totalorder 1, %s9
    %p137 = scmp.lt.s32.totalorder %s9, 3
    %p138 = pnand %p136, %p137
    %p139 = pneg %p138
    // Predicated region
    $region29: #{fused_upsample.1} parent=5 // pred_check
      _
    $region30: #{fused_upsample.1} parent=5 // pred_check_branch
      %141 = sbr.rel (%p138) target = $region32
    $region31: #{fused_upsample.1} parent=5 // pred_region
      %s142 = ssub.s32 %s9, 1
      %p143 = scmp.lt.s32.totalorder %s14, 1
      %s144 = scalar_select %p143, %s14, 1
      %s145 = smul.addr %s144, 10
      %s146 = smul.addr %s145, 2
      %s147 = scalar_lea.vmem %s0, %s146
      %p148 = pneg %p35
      %p149 = pneg %p32
      %p150 = pneg %p56
      %p151 = pneg %p53
      %p152 = pneg %p77
      %p153 = pneg %p74
      %p154 = pneg %p103
      %p155 = pneg %p100
      %p156 = scmp.lt.s32.totalorder %s14, 1
      %s157 = scalar_select %p156, %s14, 1
      %s158 = smul.addr %s157, 9
      %s159 = smul.addr %s158, 4
      %s160 = scalar_lea.vmem %s3, %s159
      %p161 = scmp.lt.s32.totalorder %s14, 1
      %s162 = scalar_select %p161, %s14, 1
      %s163 = smul.addr %s162, 10
      %s164 = smul.addr %s163, 2
      %s165 = scalar_lea.vmem %s0, %s164
      %p166 = scmp.lt.s32.totalorder %s14, 1
      %s167 = scalar_select %p166, %s14, 1
      %s168 = smul.addr %s167, 9
      %s169 = smul.addr %s168, 4
      %s170 = scalar_lea.vmem %s3, %s169
      %v172 = vld [vmem:[%s165] sm:$0xff]
      %v173 = vld [vmem:[%s165 + $0x8] sm:$0xff]
      %v174 = vld [vmem:[%s165 + $0x10] sm:$0x3]
      %v175 = vld [vmem:[%s1] sm:$0x3]
      %v176 = vld [vmem:[%s165] sm:$0xff]
      %v177 = vld [vmem:[%s165 + $0x8] sm:$0xff]
      %v178 = vld [vmem:[%s165 + $0x10] sm:$0xf]
      %s179 = scalar_lea.vmem %s1, 2
      %v180 = vld [vmem:[%s179] sm:$0x3]
      %v184 = vcombine.high %v176, %v176
      %v186 = vunpack.c.l.s4 1983009808
      %v187 = vunpack.c.0.s8 %v186
      %v188 = vlaneseq
      %v189 = vshrl.u32 %v188, 7
      %v190 = vsub.s32 %v187, %v189
      %v191 = vrot.slane %v176, %v190
      %v193 = vunpack.c.l.s4 1983009808
      %v194 = vunpack.c.0.s8 %v193
      %v195 = vlaneseq
      %v196 = vshrl.u32 %v195, 7
      %v197 = vsub.s32 %v194, %v196
      %v198 = vrot.slane %v184, %v197
      %v199 = vcombine.high %v191, %v191
      %v200 = vcombine.high %v198, %v198
      %v201 = vcombine.high %v177, %v177
      %v203 = vunpack.c.l.s4 1983009808
      %v204 = vunpack.c.0.s8 %v203
      %v205 = vlaneseq
      %v206 = vshrl.u32 %v205, 7
      %v207 = vsub.s32 %v204, %v206
      %v208 = vrot.slane %v177, %v207
      %v210 = vunpack.c.l.s4 1983009808
      %v211 = vunpack.c.0.s8 %v210
      %v212 = vlaneseq
      %v213 = vshrl.u32 %v212, 7
      %v214 = vsub.s32 %v211, %v213
      %v215 = vrot.slane %v201, %v214
      %v216 = vcombine.high %v208, %v208
      %v217 = vcombine.high %v215, %v215
      %v219 = vunpack.c.l.s4 1983009808
      %v220 = vunpack.c.0.s8 %v219
      %v221 = vlaneseq
      %v222 = vshrl.u32 %v221, 7
      %v223 = vsub.s32 %v220, %v222
      %v224 = vrot.slane %v178, %v223
      %v225 = vcombine.high %v224, %v224
      %226 = vrot.lane.b32.xlu0 %v191, 127
      %v227 = vpop.permute.xlu0 %226
      %228 = vrot.lane.b32.xlu0 %v199, 127
      %v229 = vpop.permute.xlu0 %228
      %230 = vrot.lane.b32.xlu0 %v198, 127
      %v231 = vpop.permute.xlu0 %230
      %232 = vrot.lane.b32.xlu0 %v200, 127
      %v233 = vpop.permute.xlu0 %232
      %234 = vrot.lane.b32.xlu0 %v208, 127
      %v235 = vpop.permute.xlu0 %234
      %236 = vrot.lane.b32.xlu0 %v216, 127
      %v237 = vpop.permute.xlu0 %236
      %238 = vrot.lane.b32.xlu0 %v215, 127
      %v239 = vpop.permute.xlu0 %238
      %240 = vrot.lane.b32.xlu0 %v217, 127
      %v241 = vpop.permute.xlu0 %240
      %242 = vrot.lane.b32.xlu0 %v224, 127
      %v243 = vpop.permute.xlu0 %242
      %244 = vrot.lane.b32.xlu0 %v225, 127
      %v245 = vpop.permute.xlu0 %244
      %vm246 = vcmask 1039360
      %v247 = vsel %vm246, %v227, %v229
      %v248 = vsel %vm246, %v229, %v231
      %v249 = vsel %vm246, %v231, %v233
      %v250 = vsel %vm246, %v233, %v235
      %v251 = vsel %vm246, %v235, %v237
      %v252 = vsel %vm246, %v237, %v239
      %v253 = vsel %vm246, %v239, %v241
      %v254 = vsel %vm246, %v241, %v243
      %v255 = vsel %vm246, %v243, %v245
      %vm256 = vcmask 31744
      %v258 = vsel %vm256, %v180, 0
      %vm260 = vcmask 1041408
      %v262 = vsel %vm260, %v247, 0
      %v265 = vsel %vm260, %v248, 0
      %v268 = vsel %vm260, %v249, 0
      %v271 = vsel %vm260, %v250, 0
      %v274 = vsel %vm260, %v251, 0
      %v277 = vsel %vm260, %v252, 0
      %v280 = vsel %vm260, %v253, 0
      %v283 = vsel %vm260, %v254, 0
      %v286 = vsel %vm260, %v255, 0
      %288 = vmatprep.subr.bf16.mxu0 %v265
      %289 = vmatpush1.bf16.msra.mxu0 %v262
      %290 = vmatprep.subr.bf16.mxu0 0
      %291 = vmatpush1.bf16.msra.mxu0 0
      %292 = vmatprep.subr.bf16.mxu0 0
      %293 = vmatpush1.bf16.msra.mxu0 0
      %294 = vmatprep.subr.bf16.mxu0 0
      %295 = vmatpush1.bf16.msra.mxu0 0
      %296 = vmatprep.subr.bf16.mxu0 0
      %297 = vmatpush1.bf16.msra.mxu0 0
      %298 = vmatprep.subr.bf16.mxu0 0
      %299 = vmatpush1.bf16.msra.mxu0 0
      %300 = vmatprep.subr.bf16.mxu0 0
      %301 = vmatpush1.bf16.msra.mxu0 0
      %302 = vmatprep.subr.bf16.mxu0 0
      %303 = vmatpush1.bf16.msra.mxu0 0
      %304 = vmatprep.subr.bf16.mxu0 0
      %305 = vmatpush1.bf16.msra.mxu0 0
      %306 = vmatprep.subr.bf16.mxu0 0
      %307 = vmatpush1.bf16.msra.mxu0 0
      %308 = vmatprep.subr.bf16.mxu0 0
      %309 = vmatpush1.bf16.msra.mxu0 0
      %310 = vmatprep.subr.bf16.mxu0 0
      %311 = vmatpush1.bf16.msra.mxu0 0
      %312 = vmatprep.subr.bf16.mxu0 0
      %313 = vmatpush1.bf16.msra.mxu0 0
      %314 = vmatprep.subr.bf16.mxu0 0
      %315 = vmatpush1.bf16.msra.mxu0 0
      %316 = vmatprep.subr.bf16.mxu0 0
      %317 = vmatpush1.bf16.msra.mxu0 0
      %318 = vmatprep.subr.bf16.mxu0 0
      %319 = vmatpush1.bf16.msra.mxu0 0
      %320 = vmatprep.mubr.bf16.mxu0 0
      %321 = vmatmul.mubr.bf16.gmra.mrb[0].mxu0 %v258
      %v322 = vpop.f32.mrb[0].mxu0
      %v323 = vadd.f32 0.0, %v322
      %v324 = vpop.f32.mrb[0].mxu0
      %v325 = vadd.f32 0.0, %v324
      %v326 = vpop.f32.mrb[0].mxu0
      %v327 = vpop.f32.mrb[0].mxu0
      %328 = vdwg.mxu0
      %329 = vmatprep.subr.bf16.mxu0 %v271
      %330 = vmatpush1.bf16.msra.mxu0 %v268
      %331 = vmatprep.subr.bf16.mxu0 0
      %332 = vmatpush1.bf16.msra.mxu0 0
      %333 = vmatprep.subr.bf16.mxu0 0
      %334 = vmatpush1.bf16.msra.mxu0 0
      %335 = vmatprep.subr.bf16.mxu0 0
      %336 = vmatpush1.bf16.msra.mxu0 0
      %337 = vmatprep.subr.bf16.mxu0 0
      %338 = vmatpush1.bf16.msra.mxu0 0
      %339 = vmatprep.subr.bf16.mxu0 0
      %340 = vmatpush1.bf16.msra.mxu0 0
      %341 = vmatprep.subr.bf16.mxu0 0
      %342 = vmatpush1.bf16.msra.mxu0 0
      %343 = vmatprep.subr.bf16.mxu0 0
      %344 = vmatpush1.bf16.msra.mxu0 0
      %345 = vmatprep.subr.bf16.mxu0 0
      %346 = vmatpush1.bf16.msra.mxu0 0
      %347 = vmatprep.subr.bf16.mxu0 0
      %348 = vmatpush1.bf16.msra.mxu0 0
      %349 = vmatprep.subr.bf16.mxu0 0
      %350 = vmatpush1.bf16.msra.mxu0 0
      %351 = vmatprep.subr.bf16.mxu0 0
      %352 = vmatpush1.bf16.msra.mxu0 0
      %353 = vmatprep.subr.bf16.mxu0 0
      %354 = vmatpush1.bf16.msra.mxu0 0
      %355 = vmatprep.subr.bf16.mxu0 0
      %356 = vmatpush1.bf16.msra.mxu0 0
      %357 = vmatprep.subr.bf16.mxu0 0
      %358 = vmatpush1.bf16.msra.mxu0 0
      %359 = vmatprep.subr.bf16.mxu0 0
      %360 = vmatpush1.bf16.msra.mxu0 0
      %361 = vmatprep.mubr.bf16.mxu0 0
      %362 = vmatmul.mubr.bf16.gmra.mrb[0].mxu0 %v258
      %v363 = vpop.f32.mrb[0].mxu0
      %v364 = vadd.f32 0.0, %v363
      %v365 = vpop.f32.mrb[0].mxu0
      %v366 = vadd.f32 0.0, %v365
      %v367 = vpop.f32.mrb[0].mxu0
      %v368 = vpop.f32.mrb[0].mxu0
      %369 = vdwg.mxu0
      %370 = vmatprep.subr.bf16.mxu0 %v277
      %371 = vmatpush1.bf16.msra.mxu0 %v274
      %372 = vmatprep.subr.bf16.mxu0 0
      %373 = vmatpush1.bf16.msra.mxu0 0
      %374 = vmatprep.subr.bf16.mxu0 0
      %375 = vmatpush1.bf16.msra.mxu0 0
      %376 = vmatprep.subr.bf16.mxu0 0
      %377 = vmatpush1.bf16.msra.mxu0 0
      %378 = vmatprep.subr.bf16.mxu0 0
      %379 = vmatpush1.bf16.msra.mxu0 0
      %380 = vmatprep.subr.bf16.mxu0 0
      %381 = vmatpush1.bf16.msra.mxu0 0
      %382 = vmatprep.subr.bf16.mxu0 0
      %383 = vmatpush1.bf16.msra.mxu0 0
      %384 = vmatprep.subr.bf16.mxu0 0
      %385 = vmatpush1.bf16.msra.mxu0 0
      %386 = vmatprep.subr.bf16.mxu0 0
      %387 = vmatpush1.bf16.msra.mxu0 0
      %388 = vmatprep.subr.bf16.mxu0 0
      %389 = vmatpush1.bf16.msra.mxu0 0
      %390 = vmatprep.subr.bf16.mxu0 0
      %391 = vmatpush1.bf16.msra.mxu0 0
      %392 = vmatprep.subr.bf16.mxu0 0
      %393 = vmatpush1.bf16.msra.mxu0 0
      %394 = vmatprep.subr.bf16.mxu0 0
      %395 = vmatpush1.bf16.msra.mxu0 0
      %396 = vmatprep.subr.bf16.mxu0 0
      %397 = vmatpush1.bf16.msra.mxu0 0
      %398 = vmatprep.subr.bf16.mxu0 0
      %399 = vmatpush1.bf16.msra.mxu0 0
      %400 = vmatprep.subr.bf16.mxu0 0
      %401 = vmatpush1.bf16.msra.mxu0 0
      %402 = vmatprep.mubr.bf16.mxu0 0
      %403 = vmatmul.mubr.bf16.gmra.mrb[0].mxu0 %v258
      %v404 = vpop.f32.mrb[0].mxu0
      %v405 = vadd.f32 0.0, %v404
      %v406 = vpop.f32.mrb[0].mxu0
      %v407 = vadd.f32 0.0, %v406
      %v408 = vpop.f32.mrb[0].mxu0
      %v409 = vpop.f32.mrb[0].mxu0
      %410 = vdwg.mxu0
      %411 = vmatprep.subr.bf16.mxu0 %v283
      %412 = vmatpush1.bf16.msra.mxu0 %v280
      %413 = vmatprep.subr.bf16.mxu0 0
      %414 = vmatpush1.bf16.msra.mxu0 0
      %415 = vmatprep.subr.bf16.mxu0 0
      %416 = vmatpush1.bf16.msra.mxu0 0
      %417 = vmatprep.subr.bf16.mxu0 0
      %418 = vmatpush1.bf16.msra.mxu0 0
      %419 = vmatprep.subr.bf16.mxu0 0
      %420 = vmatpush1.bf16.msra.mxu0 0
      %421 = vmatprep.subr.bf16.mxu0 0
      %422 = vmatpush1.bf16.msra.mxu0 0
      %423 = vmatprep.subr.bf16.mxu0 0
      %424 = vmatpush1.bf16.msra.mxu0 0
      %425 = vmatprep.subr.bf16.mxu0 0
      %426 = vmatpush1.bf16.msra.mxu0 0
      %427 = vmatprep.subr.bf16.mxu0 0
      %428 = vmatpush1.bf16.msra.mxu0 0
      %429 = vmatprep.subr.bf16.mxu0 0
      %430 = vmatpush1.bf16.msra.mxu0 0
      %431 = vmatprep.subr.bf16.mxu0 0
      %432 = vmatpush1.bf16.msra.mxu0 0
      %433 = vmatprep.subr.bf16.mxu0 0
      %434 = vmatpush1.bf16.msra.mxu0 0
      %435 = vmatprep.subr.bf16.mxu0 0
      %436 = vmatpush1.bf16.msra.mxu0 0
      %437 = vmatprep.subr.bf16.mxu0 0
      %438 = vmatpush1.bf16.msra.mxu0 0
      %439 = vmatprep.subr.bf16.mxu0 0
      %440 = vmatpush1.bf16.msra.mxu0 0
      %441 = vmatprep.subr.bf16.mxu0 0
      %442 = vmatpush1.bf16.msra.mxu0 0
      %443 = vmatprep.mubr.bf16.mxu0 0
      %444 = vmatmul.mubr.bf16.gmra.mrb[0].mxu0 %v258
      %v445 = vpop.f32.mrb[0].mxu0
      %v446 = vadd.f32 0.0, %v445
      %v447 = vpop.f32.mrb[0].mxu0
      %v448 = vadd.f32 0.0, %v447
      %v449 = vpop.f32.mrb[0].mxu0
      %v450 = vpop.f32.mrb[0].mxu0
      %451 = vdwg.mxu0
      %452 = vmatprep.subr.bf16.mxu0 0
      %453 = vmatpush1.bf16.msra.mxu0 %v286
      %454 = vmatprep.subr.bf16.mxu0 0
      %455 = vmatpush1.bf16.msra.mxu0 0
      %456 = vmatprep.subr.bf16.mxu0 0
      %457 = vmatpush1.bf16.msra.mxu0 0
      %458 = vmatprep.subr.bf16.mxu0 0
      %459 = vmatpush1.bf16.msra.mxu0 0
      %460 = vmatprep.subr.bf16.mxu0 0
      %461 = vmatpush1.bf16.msra.mxu0 0
      %462 = vmatprep.subr.bf16.mxu0 0
      %463 = vmatpush1.bf16.msra.mxu0 0
      %464 = vmatprep.subr.bf16.mxu0 0
      %465 = vmatpush1.bf16.msra.mxu0 0
      %466 = vmatprep.subr.bf16.mxu0 0
      %467 = vmatpush1.bf16.msra.mxu0 0
      %468 = vmatprep.subr.bf16.mxu0 0
      %469 = vmatpush1.bf16.msra.mxu0 0
      %470 = vmatprep.subr.bf16.mxu0 0
      %471 = vmatpush1.bf16.msra.mxu0 0
      %472 = vmatprep.subr.bf16.mxu0 0
      %473 = vmatpush1.bf16.msra.mxu0 0
      %474 = vmatprep.subr.bf16.mxu0 0
      %475 = vmatpush1.bf16.msra.mxu0 0
      %476 = vmatprep.subr.bf16.mxu0 0
      %477 = vmatpush1.bf16.msra.mxu0 0
      %478 = vmatprep.subr.bf16.mxu0 0
      %479 = vmatpush1.bf16.msra.mxu0 0
      %480 = vmatprep.subr.bf16.mxu0 0
      %481 = vmatpush1.bf16.msra.mxu0 0
      %482 = vmatprep.subr.bf16.mxu0 0
      %483 = vmatpush1.bf16.msra.mxu0 0
      %484 = vmatprep.mubr.bf16.mxu0 0
      %485 = vmatmul.mubr.bf16.gmra.mrb[0].mxu0 %v258
      %v486 = vpop.f32.mrb[0].mxu0
      %v487 = vadd.f32 0.0, %v486
      %v488 = vpop.f32.mrb[0].mxu0
      %v489 = vpop.f32.mrb[0].mxu0
      %v490 = vpop.f32.mrb[0].mxu0
      %491 = vdwg.mxu0
      %v495 = vcombine.high %v172, %v172
      %v497 = vunpack.c.l.s4 1983009808
      %v498 = vunpack.c.0.s8 %v497
      %v499 = vlaneseq
      %v500 = vshrl.u32 %v499, 7
      %v501 = vsub.s32 %v498, %v500
      %v502 = vrot.slane %v172, %v501
      %v504 = vunpack.c.l.s4 1983009808
      %v505 = vunpack.c.0.s8 %v504
      %v506 = vlaneseq
      %v507 = vshrl.u32 %v506, 7
      %v508 = vsub.s32 %v505, %v507
      %v509 = vrot.slane %v495, %v508
      %v510 = vcombine.high %v502, %v502
      %v511 = vcombine.high %v509, %v509
      %v512 = vcombine.high %v173, %v173
      %v514 = vunpack.c.l.s4 1983009808
      %v515 = vunpack.c.0.s8 %v514
      %v516 = vlaneseq
      %v517 = vshrl.u32 %v516, 7
      %v518 = vsub.s32 %v515, %v517
      %v519 = vrot.slane %v173, %v518
      %v521 = vunpack.c.l.s4 1983009808
      %v522 = vunpack.c.0.s8 %v521
      %v523 = vlaneseq
      %v524 = vshrl.u32 %v523, 7
      %v525 = vsub.s32 %v522, %v524
      %v526 = vrot.slane %v512, %v525
      %v527 = vcombine.high %v519, %v519
      %v528 = vcombine.high %v526, %v526
      %v530 = vunpack.c.l.s4 1983009808
      %v531 = vunpack.c.0.s8 %v530
      %v532 = vlaneseq
      %v533 = vshrl.u32 %v532, 7
      %v534 = vsub.s32 %v531, %v533
      %v535 = vrot.slane %v174, %v534
      %v537 = vsel %vm256, %v175, 0
      %v540 = vsel %vm260, %v502, 0
      %v543 = vsel %vm260, %v510, 0
      %v546 = vsel %vm260, %v509, 0
      %v549 = vsel %vm260, %v511, 0
      %v552 = vsel %vm260, %v519, 0
      %v555 = vsel %vm260, %v527, 0
      %v558 = vsel %vm260, %v526, 0
      %v561 = vsel %vm260, %v528, 0
      %v564 = vsel %vm260, %v535, 0
      %566 = vmatprep.subr.bf16.mxu0 %v543
      %567 = vmatpush1.bf16.msra.mxu0 %v540
      %568 = vmatprep.subr.bf16.mxu0 0
      %569 = vmatpush1.bf16.msra.mxu0 0
      %570 = vmatprep.subr.bf16.mxu0 0
      %571 = vmatpush1.bf16.msra.mxu0 0
      %572 = vmatprep.subr.bf16.mxu0 0
      %573 = vmatpush1.bf16.msra.mxu0 0
      %574 = vmatprep.subr.bf16.mxu0 0
      %575 = vmatpush1.bf16.msra.mxu0 0
      %576 = vmatprep.subr.bf16.mxu0 0
      %577 = vmatpush1.bf16.msra.mxu0 0
      %578 = vmatprep.subr.bf16.mxu0 0
      %579 = vmatpush1.bf16.msra.mxu0 0
      %580 = vmatprep.subr.bf16.mxu0 0
      %581 = vmatpush1.bf16.msra.mxu0 0
      %582 = vmatprep.subr.bf16.mxu0 0
      %583 = vmatpush1.bf16.msra.mxu0 0
      %584 = vmatprep.subr.bf16.mxu0 0
      %585 = vmatpush1.bf16.msra.mxu0 0
      %586 = vmatprep.subr.bf16.mxu0 0
      %587 = vmatpush1.bf16.msra.mxu0 0
      %588 = vmatprep.subr.bf16.mxu0 0
      %589 = vmatpush1.bf16.msra.mxu0 0
      %590 = vmatprep.subr.bf16.mxu0 0
      %591 = vmatpush1.bf16.msra.mxu0 0
      %592 = vmatprep.subr.bf16.mxu0 0
      %593 = vmatpush1.bf16.msra.mxu0 0
      %594 = vmatprep.subr.bf16.mxu0 0
      %595 = vmatpush1.bf16.msra.mxu0 0
      %596 = vmatprep.subr.bf16.mxu0 0
      %597 = vmatpush1.bf16.msra.mxu0 0
      %598 = vmatprep.mubr.bf16.mxu0 0
      %599 = vmatmul.mubr.bf16.gmra.mrb[0].mxu0 %v537
      %v600 = vpop.f32.mrb[0].mxu0
      %v601 = vadd.f32 %v323, %v600
      %v602 = vpop.f32.mrb[0].mxu0
      %v603 = vadd.f32 %v325, %v602
      %v604 = vpop.f32.mrb[0].mxu0
      %v605 = vpop.f32.mrb[0].mxu0
      %606 = vdwg.mxu0
      %607 = vmatprep.subr.bf16.mxu0 %v549
      %608 = vmatpush1.bf16.msra.mxu0 %v546
      %609 = vmatprep.subr.bf16.mxu0 0
      %610 = vmatpush1.bf16.msra.mxu0 0
      %611 = vmatprep.subr.bf16.mxu0 0
      %612 = vmatpush1.bf16.msra.mxu0 0
      %613 = vmatprep.subr.bf16.mxu0 0
      %614 = vmatpush1.bf16.msra.mxu0 0
      %615 = vmatprep.subr.bf16.mxu0 0
      %616 = vmatpush1.bf16.msra.mxu0 0
      %617 = vmatprep.subr.bf16.mxu0 0
      %618 = vmatpush1.bf16.msra.mxu0 0
      %619 = vmatprep.subr.bf16.mxu0 0
      %620 = vmatpush1.bf16.msra.mxu0 0
      %621 = vmatprep.subr.bf16.mxu0 0
      %622 = vmatpush1.bf16.msra.mxu0 0
      %623 = vmatprep.subr.bf16.mxu0 0
      %624 = vmatpush1.bf16.msra.mxu0 0
      %625 = vmatprep.subr.bf16.mxu0 0
      %626 = vmatpush1.bf16.msra.mxu0 0
      %627 = vmatprep.subr.bf16.mxu0 0
      %628 = vmatpush1.bf16.msra.mxu0 0
      %629 = vmatprep.subr.bf16.mxu0 0
      %630 = vmatpush1.bf16.msra.mxu0 0
      %631 = vmatprep.subr.bf16.mxu0 0
      %632 = vmatpush1.bf16.msra.mxu0 0
      %633 = vmatprep.subr.bf16.mxu0 0
      %634 = vmatpush1.bf16.msra.mxu0 0
      %635 = vmatprep.subr.bf16.mxu0 0
      %636 = vmatpush1.bf16.msra.mxu0 0
      %637 = vmatprep.subr.bf16.mxu0 0
      %638 = vmatpush1.bf16.msra.mxu0 0
      %639 = vmatprep.mubr.bf16.mxu0 0
      %640 = vmatmul.mubr.bf16.gmra.mrb[0].mxu0 %v537
      %v641 = vpop.f32.mrb[0].mxu0
      %v642 = vadd.f32 %v364, %v641
      %v643 = vpop.f32.mrb[0].mxu0
      %v644 = vadd.f32 %v366, %v643
      %v645 = vpop.f32.mrb[0].mxu0
      %v646 = vpop.f32.mrb[0].mxu0
      %647 = vdwg.mxu0
      %648 = vmatprep.subr.bf16.mxu0 %v555
      %649 = vmatpush1.bf16.msra.mxu0 %v552
      %650 = vmatprep.subr.bf16.mxu0 0
      %651 = vmatpush1.bf16.msra.mxu0 0
      %652 = vmatprep.subr.bf16.mxu0 0
      %653 = vmatpush1.bf16.msra.mxu0 0
      %654 = vmatprep.subr.bf16.mxu0 0
      %655 = vmatpush1.bf16.msra.mxu0 0
      %656 = vmatprep.subr.bf16.mxu0 0
      %657 = vmatpush1.bf16.msra.mxu0 0
      %658 = vmatprep.subr.bf16.mxu0 0
      %659 = vmatpush1.bf16.msra.mxu0 0
      %660 = vmatprep.subr.bf16.mxu0 0
      %661 = vmatpush1.bf16.msra.mxu0 0
      %662 = vmatprep.subr.bf16.mxu0 0
      %663 = vmatpush1.bf16.msra.mxu0 0
      %664 = vmatprep.subr.bf16.mxu0 0
      %665 = vmatpush1.bf16.msra.mxu0 0
      %666 = vmatprep.subr.bf16.mxu0 0
      %667 = vmatpush1.bf16.msra.mxu0 0
      %668 = vmatprep.subr.bf16.mxu0 0
      %669 = vmatpush1.bf16.msra.mxu0 0
      %670 = vmatprep.subr.bf16.mxu0 0
      %671 = vmatpush1.bf16.msra.mxu0 0
      %672 = vmatprep.subr.bf16.mxu0 0
      %673 = vmatpush1.bf16.msra.mxu0 0
      %674 = vmatprep.subr.bf16.mxu0 0
      %675 = vmatpush1.bf16.msra.mxu0 0
      %676 = vmatprep.subr.bf16.mxu0 0
      %677 = vmatpush1.bf16.msra.mxu0 0
      %678 = vmatprep.subr.bf16.mxu0 0
      %679 = vmatpush1.bf16.msra.mxu0 0
      %680 = vmatprep.mubr.bf16.mxu0 0
      %681 = vmatmul.mubr.bf16.gmra.mrb[0].mxu0 %v537
      %v682 = vpop.f32.mrb[0].mxu0
      %v683 = vadd.f32 %v405, %v682
      %v684 = vpop.f32.mrb[0].mxu0
      %v685 = vadd.f32 %v407, %v684
      %v686 = vpop.f32.mrb[0].mxu0
      %v687 = vpop.f32.mrb[0].mxu0
      %688 = vdwg.mxu0
      %689 = vmatprep.subr.bf16.mxu0 %v561
      %690 = vmatpush1.bf16.msra.mxu0 %v558
      %691 = vmatprep.subr.bf16.mxu0 0
      %692 = vmatpush1.bf16.msra.mxu0 0
      %693 = vmatprep.subr.bf16.mxu0 0
      %694 = vmatpush1.bf16.msra.mxu0 0
      %695 = vmatprep.subr.bf16.mxu0 0
      %696 = vmatpush1.bf16.msra.mxu0 0
      %697 = vmatprep.subr.bf16.mxu0 0
      %698 = vmatpush1.bf16.msra.mxu0 0
      %699 = vmatprep.subr.bf16.mxu0 0
      %700 = vmatpush1.bf16.msra.mxu0 0
      %701 = vmatprep.subr.bf16.mxu0 0
      %702 = vmatpush1.bf16.msra.mxu0 0
      %703 = vmatprep.subr.bf16.mxu0 0
      %704 = vmatpush1.bf16.msra.mxu0 0
      %705 = vmatprep.subr.bf16.mxu0 0
      %706 = vmatpush1.bf16.msra.mxu0 0
      %707 = vmatprep.subr.bf16.mxu0 0
      %708 = vmatpush1.bf16.msra.mxu0 0
      %709 = vmatprep.subr.bf16.mxu0 0
      %710 = vmatpush1.bf16.msra.mxu0 0
      %711 = vmatprep.subr.bf16.mxu0 0
      %712 = vmatpush1.bf16.msra.mxu0 0
      %713 = vmatprep.subr.bf16.mxu0 0
      %714 = vmatpush1.bf16.msra.mxu0 0
      %715 = vmatprep.subr.bf16.mxu0 0
      %716 = vmatpush1.bf16.msra.mxu0 0
      %717 = vmatprep.subr.bf16.mxu0 0
      %718 = vmatpush1.bf16.msra.mxu0 0
      %719 = vmatprep.subr.bf16.mxu0 0
      %720 = vmatpush1.bf16.msra.mxu0 0
      %721 = vmatprep.mubr.bf16.mxu0 0
      %722 = vmatmul.mubr.bf16.gmra.mrb[0].mxu0 %v537
      %v723 = vpop.f32.mrb[0].mxu0
      %v724 = vadd.f32 %v446, %v723
      %v725 = vpop.f32.mrb[0].mxu0
      %v726 = vadd.f32 %v448, %v725
      %v727 = vpop.f32.mrb[0].mxu0
      %v728 = vpop.f32.mrb[0].mxu0
      %729 = vdwg.mxu0
      %730 = vmatprep.subr.bf16.mxu0 0
      %731 = vmatpush1.bf16.msra.mxu0 %v564
      %732 = vmatprep.subr.bf16.mxu0 0
      %733 = vmatpush1.bf16.msra.mxu0 0
      %734 = vmatprep.subr.bf16.mxu0 0
      %735 = vmatpush1.bf16.msra.mxu0 0
      %736 = vmatprep.subr.bf16.mxu0 0
      %737 = vmatpush1.bf16.msra.mxu0 0
      %738 = vmatprep.subr.bf16.mxu0 0
      %739 = vmatpush1.bf16.msra.mxu0 0
      %740 = vmatprep.subr.bf16.mxu0 0
      %741 = vmatpush1.bf16.msra.mxu0 0
      %742 = vmatprep.subr.bf16.mxu0 0
      %743 = vmatpush1.bf16.msra.mxu0 0
      %744 = vmatprep.subr.bf16.mxu0 0
      %745 = vmatpush1.bf16.msra.mxu0 0
      %746 = vmatprep.subr.bf16.mxu0 0
      %747 = vmatpush1.bf16.msra.mxu0 0
      %748 = vmatprep.subr.bf16.mxu0 0
      %749 = vmatpush1.bf16.msra.mxu0 0
      %750 = vmatprep.subr.bf16.mxu0 0
      %751 = vmatpush1.bf16.msra.mxu0 0
      %752 = vmatprep.subr.bf16.mxu0 0
      %753 = vmatpush1.bf16.msra.mxu0 0
      %754 = vmatprep.subr.bf16.mxu0 0
      %755 = vmatpush1.bf16.msra.mxu0 0
      %756 = vmatprep.subr.bf16.mxu0 0
      %757 = vmatpush1.bf16.msra.mxu0 0
      %758 = vmatprep.subr.bf16.mxu0 0
      %759 = vmatpush1.bf16.msra.mxu0 0
      %760 = vmatprep.subr.bf16.mxu0 0
      %761 = vmatpush1.bf16.msra.mxu0 0
      %762 = vmatprep.mubr.bf16.mxu0 0
      %763 = vmatmul.mubr.bf16.gmra.mrb[0].mxu0 %v537
      %v764 = vpop.f32.mrb[0].mxu0
      %v765 = vadd.f32 %v487, %v764
      %v766 = vpop.f32.mrb[0].mxu0
      %v767 = vpop.f32.mrb[0].mxu0
      %v768 = vpop.f32.mrb[0].mxu0
      %769 = vdwg.mxu0
      %v770 = vld [vmem:[%s165] sm:$0xff]
      %v771 = vld [vmem:[%s165 + $0x8] sm:$0xff]
      %v772 = vld [vmem:[%s165 + $0x10] sm:$0xf]
      %s773 = scalar_lea.vmem %s1, 4
      %v774 = vld [vmem:[%s773] sm:$0x3]
      %v778 = vcombine.high %v770, %v770
      %v780 = vunpack.c.l.s4 1983009808
      %v781 = vunpack.c.0.s8 %v780
      %v782 = vlaneseq
      %v783 = vshrl.u32 %v782, 7
      %v784 = vsub.s32 %v781, %v783
      %v785 = vrot.slane %v770, %v784
      %v787 = vunpack.c.l.s4 1983009808
      %v788 = vunpack.c.0.s8 %v787
      %v789 = vlaneseq
      %v790 = vshrl.u32 %v789, 7
      %v791 = vsub.s32 %v788, %v790
      %v792 = vrot.slane %v778, %v791
      %v793 = vcombine.high %v785, %v785
      %v794 = vcombine.high %v792, %v792
      %v795 = vcombine.high %v771, %v771
      %v797 = vunpack.c.l.s4 1983009808
      %v798 = vunpack.c.0.s8 %v797
      %v799 = vlaneseq
      %v800 = vshrl.u32 %v799, 7
      %v801 = vsub.s32 %v798, %v800
      %v802 = vrot.slane %v771, %v801
      %v804 = vunpack.c.l.s4 1983009808
      %v805 = vunpack.c.0.s8 %v804
      %v806 = vlaneseq
      %v807 = vshrl.u32 %v806, 7
      %v808 = vsub.s32 %v805, %v807
      %v809 = vrot.slane %v795, %v808
      %v810 = vcombine.high %v802, %v802
      %v811 = vcombine.high %v809, %v809
      %v813 = vunpack.c.l.s4 1983009808
      %v814 = vunpack.c.0.s8 %v813
      %v815 = vlaneseq
      %v816 = vshrl.u32 %v815, 7
      %v817 = vsub.s32 %v814, %v816
      %v818 = vrot.slane %v772, %v817
      %v819 = vcombine.high %v818, %v818
      %820 = vrot.lane.b32.xlu0 %v785, 126
      %v821 = vpop.permute.xlu0 %820
      %822 = vrot.lane.b32.xlu0 %v793, 126
      %v823 = vpop.permute.xlu0 %822
      %824 = vrot.lane.b32.xlu0 %v792, 126
      %v825 = vpop.permute.xlu0 %824
      %826 = vrot.lane.b32.xlu0 %v794, 126
      %v827 = vpop.permute.xlu0 %826
      %828 = vrot.lane.b32.xlu0 %v802, 126
      %v829 = vpop.permute.xlu0 %828
      %830 = vrot.lane.b32.xlu0 %v810, 126
      %v831 = vpop.permute.xlu0 %830
      %832 = vrot.lane.b32.xlu0 %v809, 126
      %v833 = vpop.permute.xlu0 %832
      %834 = vrot.lane.b32.xlu0 %v811, 126
      %v835 = vpop.permute.xlu0 %834
      %836 = vrot.lane.b32.xlu0 %v818, 126
      %v837 = vpop.permute.xlu0 %836
      %838 = vrot.lane.b32.xlu0 %v819, 126
      %v839 = vpop.permute.xlu0 %838
      %vm840 = vcmask 1031168
      %v841 = vsel %vm840, %v821, %v823
      %v842 = vsel %vm840, %v823, %v825
      %v843 = vsel %vm840, %v825, %v827
      %v844 = vsel %vm840, %v827, %v829
      %v845 = vsel %vm840, %v829, %v831
      %v846 = vsel %vm840, %v831, %v833
      %v847 = vsel %vm840, %v833, %v835
      %v848 = vsel %vm840, %v835, %v837
      %v849 = vsel %vm840, %v837, %v839
      %v851 = vsel %vm256, %v774, 0
      %v854 = vsel %vm260, %v841, 0
      %v857 = vsel %vm260, %v842, 0
      %v860 = vsel %vm260, %v843, 0
      %v863 = vsel %vm260, %v844, 0
      %v866 = vsel %vm260, %v845, 0
      %v869 = vsel %vm260, %v846, 0
      %v872 = vsel %vm260, %v847, 0
      %v875 = vsel %vm260, %v848, 0
      %v878 = vsel %vm260, %v849, 0
      %880 = vmatprep.subr.bf16.mxu0 %v857
      %881 = vmatpush1.bf16.msra.mxu0 %v854
      %882 = vmatprep.subr.bf16.mxu0 0
      %883 = vmatpush1.bf16.msra.mxu0 0
      %884 = vmatprep.subr.bf16.mxu0 0
      %885 = vmatpush1.bf16.msra.mxu0 0
      %886 = vmatprep.subr.bf16.mxu0 0
      %887 = vmatpush1.bf16.msra.mxu0 0
      %888 = vmatprep.subr.bf16.mxu0 0
      %889 = vmatpush1.bf16.msra.mxu0 0
      %890 = vmatprep.subr.bf16.mxu0 0
      %891 = vmatpush1.bf16.msra.mxu0 0
      %892 = vmatprep.subr.bf16.mxu0 0
      %893 = vmatpush1.bf16.msra.mxu0 0
      %894 = vmatprep.subr.bf16.mxu0 0
      %895 = vmatpush1.bf16.msra.mxu0 0
      %896 = vmatprep.subr.bf16.mxu0 0
      %897 = vmatpush1.bf16.msra.mxu0 0
      %898 = vmatprep.subr.bf16.mxu0 0
      %899 = vmatpush1.bf16.msra.mxu0 0
      %900 = vmatprep.subr.bf16.mxu0 0
      %901 = vmatpush1.bf16.msra.mxu0 0
      %902 = vmatprep.subr.bf16.mxu0 0
      %903 = vmatpush1.bf16.msra.mxu0 0
      %904 = vmatprep.subr.bf16.mxu0 0
      %905 = vmatpush1.bf16.msra.mxu0 0
      %906 = vmatprep.subr.bf16.mxu0 0
      %907 = vmatpush1.bf16.msra.mxu0 0
      %908 = vmatprep.subr.bf16.mxu0 0
      %909 = vmatpush1.bf16.msra.mxu0 0
      %910 = vmatprep.subr.bf16.mxu0 0
      %911 = vmatpush1.bf16.msra.mxu0 0
      %912 = vmatprep.mubr.bf16.mxu0 0
      %913 = vmatmul.mubr.bf16.gmra.mrb[0].mxu0 %v851
      %v914 = vpop.f32.mrb[0].mxu0
      %v915 = vadd.f32 0.0, %v914
      %v916 = vpop.f32.mrb[0].mxu0
      %v917 = vadd.f32 0.0, %v916
      %v918 = vpop.f32.mrb[0].mxu0
      %v919 = vpop.f32.mrb[0].mxu0
      %920 = vdwg.mxu0
      %921 = vmatprep.subr.bf16.mxu0 %v863
      %922 = vmatpush1.bf16.msra.mxu0 %v860
      %923 = vmatprep.subr.bf16.mxu0 0
      %924 = vmatpush1.bf16.msra.mxu0 0
      %925 = vmatprep.subr.bf16.mxu0 0
      %926 = vmatpush1.bf16.msra.mxu0 0
      %927 = vmatprep.subr.bf16.mxu0 0
      %928 = vmatpush1.bf16.msra.mxu0 0
      %929 = vmatprep.subr.bf16.mxu0 0
      %930 = vmatpush1.bf16.msra.mxu0 0
      %931 = vmatprep.subr.bf16.mxu0 0
      %932 = vmatpush1.bf16.msra.mxu0 0
      %933 = vmatprep.subr.bf16.mxu0 0
      %934 = vmatpush1.bf16.msra.mxu0 0
      %935 = vmatprep.subr.bf16.mxu0 0
      %936 = vmatpush1.bf16.msra.mxu0 0
      %937 = vmatprep.subr.bf16.mxu0 0
      %938 = vmatpush1.bf16.msra.mxu0 0
      %939 = vmatprep.subr.bf16.mxu0 0
      %940 = vmatpush1.bf16.msra.mxu0 0
      %941 = vmatprep.subr.bf16.mxu0 0
      %942 = vmatpush1.bf16.msra.mxu0 0
      %943 = vmatprep.subr.bf16.mxu0 0
      %944 = vmatpush1.bf16.msra.mxu0 0
      %945 = vmatprep.subr.bf16.mxu0 0
      %946 = vmatpush1.bf16.msra.mxu0 0
      %947 = vmatprep.subr.bf16.mxu0 0
      %948 = vmatpush1.bf16.msra.mxu0 0
      %949 = vmatprep.subr.bf16.mxu0 0
      %950 = vmatpush1.bf16.msra.mxu0 0
      %951 = vmatprep.subr.bf16.mxu0 0
      %952 = vmatpush1.bf16.msra.mxu0 0
      %953 = vmatprep.mubr.bf16.mxu0 0
      %954 = vmatmul.mubr.bf16.gmra.mrb[0].mxu0 %v851
      %v955 = vpop.f32.mrb[0].mxu0
      %v956 = vadd.f32 0.0, %v955
      %v957 = vpop.f32.mrb[0].mxu0
      %v958 = vadd.f32 0.0, %v957
      %v959 = vpop.f32.mrb[0].mxu0
      %v960 = vpop.f32.mrb[0].mxu0
      %961 = vdwg.mxu0
      %962 = vmatprep.subr.bf16.mxu0 %v869
      %963 = vmatpush1.bf16.msra.mxu0 %v866
      %964 = vmatprep.subr.bf16.mxu0 0
      %965 = vmatpush1.bf16.msra.mxu0 0
      %966 = vmatprep.subr.bf16.mxu0 0
      %967 = vmatpush1.bf16.msra.mxu0 0
      %968 = vmatprep.subr.bf16.mxu0 0
      %969 = vmatpush1.bf16.msra.mxu0 0
      %970 = vmatprep.subr.bf16.mxu0 0
      %971 = vmatpush1.bf16.msra.mxu0 0
      %972 = vmatprep.subr.bf16.mxu0 0
      %973 = vmatpush1.bf16.msra.mxu0 0
      %974 = vmatprep.subr.bf16.mxu0 0
      %975 = vmatpush1.bf16.msra.mxu0 0
      %976 = vmatprep.subr.bf16.mxu0 0
      %977 = vmatpush1.bf16.msra.mxu0 0
      %978 = vmatprep.subr.bf16.mxu0 0
      %979 = vmatpush1.bf16.msra.mxu0 0
      %980 = vmatprep.subr.bf16.mxu0 0
      %981 = vmatpush1.bf16.msra.mxu0 0
      %982 = vmatprep.subr.bf16.mxu0 0
      %983 = vmatpush1.bf16.msra.mxu0 0
      %984 = vmatprep.subr.bf16.mxu0 0
      %985 = vmatpush1.bf16.msra.mxu0 0
      %986 = vmatprep.subr.bf16.mxu0 0
      %987 = vmatpush1.bf16.msra.mxu0 0
      %988 = vmatprep.subr.bf16.mxu0 0
      %989 = vmatpush1.bf16.msra.mxu0 0
      %990 = vmatprep.subr.bf16.mxu0 0
      %991 = vmatpush1.bf16.msra.mxu0 0
      %992 = vmatprep.subr.bf16.mxu0 0
      %993 = vmatpush1.bf16.msra.mxu0 0
      %994 = vmatprep.mubr.bf16.mxu0 0
      %995 = vmatmul.mubr.bf16.gmra.mrb[0].mxu0 %v851
      %v996 = vpop.f32.mrb[0].mxu0
      %v997 = vadd.f32 0.0, %v996
      %v998 = vpop.f32.mrb[0].mxu0
      %v999 = vadd.f32 0.0, %v998
      %v1000 = vpop.f32.mrb[0].mxu0
      %v1001 = vpop.f32.mrb[0].mxu0
      %1002 = vdwg.mxu0
      %1003 = vmatprep.subr.bf16.mxu0 %v875
      %1004 = vmatpush1.bf16.msra.mxu0 %v872
      %1005 = vmatprep.subr.bf16.mxu0 0
      %1006 = vmatpush1.bf16.msra.mxu0 0
      %1007 = vmatprep.subr.bf16.mxu0 0
      %1008 = vmatpush1.bf16.msra.mxu0 0
      %1009 = vmatprep.subr.bf16.mxu0 0
      %1010 = vmatpush1.bf16.msra.mxu0 0
      %1011 = vmatprep.subr.bf16.mxu0 0
      %1012 = vmatpush1.bf16.msra.mxu0 0
      %1013 = vmatprep.subr.bf16.mxu0 0
      %1014 = vmatpush1.bf16.msra.mxu0 0
      %1015 = vmatprep.subr.bf16.mxu0 0
      %1016 = vmatpush1.bf16.msra.mxu0 0
      %1017 = vmatprep.subr.bf16.mxu0 0
      %1018 = vmatpush1.bf16.msra.mxu0 0
      %1019 = vmatprep.subr.bf16.mxu0 0
      %1020 = vmatpush1.bf16.msra.mxu0 0
      %1021 = vmatprep.subr.bf16.mxu0 0
      %1022 = vmatpush1.bf16.msra.mxu0 0
      %1023 = vmatprep.subr.bf16.mxu0 0
      %1024 = vmatpush1.bf16.msra.mxu0 0
      %1025 = vmatprep.subr.bf16.mxu0 0
      %1026 = vmatpush1.bf16.msra.mxu0 0
      %1027 = vmatprep.subr.bf16.mxu0 0
      %1028 = vmatpush1.bf16.msra.mxu0 0
      %1029 = vmatprep.subr.bf16.mxu0 0
      %1030 = vmatpush1.bf16.msra.mxu0 0
      %1031 = vmatprep.subr.bf16.mxu0 0
      %1032 = vmatpush1.bf16.msra.mxu0 0
      %1033 = vmatprep.subr.bf16.mxu0 0
      %1034 = vmatpush1.bf16.msra.mxu0 0
      %1035 = vmatprep.mubr.bf16.mxu0 0
      %1036 = vmatmul.mubr.bf16.gmra.mrb[0].mxu0 %v851
      %v1037 = vpop.f32.mrb[0].mxu0
      %v1038 = vadd.f32 0.0, %v1037
      %v1039 = vpop.f32.mrb[0].mxu0
      %v1040 = vadd.f32 0.0, %v1039
      %v1041 = vpop.f32.mrb[0].mxu0
      %v1042 = vpop.f32.mrb[0].mxu0
      %1043 = vdwg.mxu0
      %1044 = vmatprep.subr.bf16.mxu0 0
      %1045 = vmatpush1.bf16.msra.mxu0 %v878
      %1046 = vmatprep.subr.bf16.mxu0 0
      %1047 = vmatpush1.bf16.msra.mxu0 0
      %1048 = vmatprep.subr.bf16.mxu0 0
      %1049 = vmatpush1.bf16.msra.mxu0 0
      %1050 = vmatprep.subr.bf16.mxu0 0
      %1051 = vmatpush1.bf16.msra.mxu0 0
      %1052 = vmatprep.subr.bf16.mxu0 0
      %1053 = vmatpush1.bf16.msra.mxu0 0
      %1054 = vmatprep.subr.bf16.mxu0 0
      %1055 = vmatpush1.bf16.msra.mxu0 0
      %1056 = vmatprep.subr.bf16.mxu0 0
      %1057 = vmatpush1.bf16.msra.mxu0 0
      %1058 = vmatprep.subr.bf16.mxu0 0
      %1059 = vmatpush1.bf16.msra.mxu0 0
      %1060 = vmatprep.subr.bf16.mxu0 0
      %1061 = vmatpush1.bf16.msra.mxu0 0
      %1062 = vmatprep.subr.bf16.mxu0 0
      %1063 = vmatpush1.bf16.msra.mxu0 0
      %1064 = vmatprep.subr.bf16.mxu0 0
      %1065 = vmatpush1.bf16.msra.mxu0 0
      %1066 = vmatprep.subr.bf16.mxu0 0
      %1067 = vmatpush1.bf16.msra.mxu0 0
      %1068 = vmatprep.subr.bf16.mxu0 0
      %1069 = vmatpush1.bf16.msra.mxu0 0
      %1070 = vmatprep.subr.bf16.mxu0 0
      %1071 = vmatpush1.bf16.msra.mxu0 0
      %1072 = vmatprep.subr.bf16.mxu0 0
      %1073 = vmatpush1.bf16.msra.mxu0 0
      %1074 = vmatprep.subr.bf16.mxu0 0
      %1075 = vmatpush1.bf16.msra.mxu0 0
      %1076 = vmatprep.mubr.bf16.mxu0 0
      %1077 = vmatmul.mubr.bf16.gmra.mrb[0].mxu0 %v851
      %v1078 = vpop.f32.mrb[0].mxu0
      %v1079 = vadd.f32 0.0, %v1078
      %v1080 = vpop.f32.mrb[0].mxu0
      %v1081 = vpop.f32.mrb[0].mxu0
      %v1082 = vpop.f32.mrb[0].mxu0
      %1083 = vdwg.mxu0
      %v1084 = vadd.f32 %v601, %v915
      %v1085 = vadd.f32 %v603, %v917
      %v1086 = vadd.f32 %v642, %v956
      %v1087 = vadd.f32 %v644, %v958
      %v1088 = vadd.f32 %v683, %v997
      %v1089 = vadd.f32 %v685, %v999
      %v1090 = vadd.f32 %v724, %v1038
      %v1091 = vadd.f32 %v726, %v1040
      %v1092 = vadd.f32 %v765, %v1079
      %v1093 = vld [vmem:[%s165] sm:$0xff]
      %v1094 = vld [vmem:[%s165 + $0x8] sm:$0xff]
      %v1095 = vld [vmem:[%s165 + $0x10] sm:$0xf]
      %s1096 = scalar_lea.vmem %s1, 6
      %v1097 = vld [vmem:[%s1096] sm:$0x3]
      %v1101 = vcombine.high %v1093, %v1093
      %v1103 = vunpack.c.l.s4 1983009808
      %v1104 = vunpack.c.0.s8 %v1103
      %v1105 = vlaneseq
      %v1106 = vshrl.u32 %v1105, 7
      %v1107 = vsub.s32 %v1104, %v1106
      %v1108 = vrot.slane %v1093, %v1107
      %v1110 = vunpack.c.l.s4 1983009808
      %v1111 = vunpack.c.0.s8 %v1110
      %v1112 = vlaneseq
      %v1113 = vshrl.u32 %v1112, 7
      %v1114 = vsub.s32 %v1111, %v1113
      %v1115 = vrot.slane %v1101, %v1114
      %v1116 = vcombine.high %v1108, %v1108
      %v1117 = vcombine.high %v1115, %v1115
      %v1118 = vcombine.high %v1094, %v1094
      %v1120 = vunpack.c.l.s4 1983009808
      %v1121 = vunpack.c.0.s8 %v1120
      %v1122 = vlaneseq
      %v1123 = vshrl.u32 %v1122, 7
      %v1124 = vsub.s32 %v1121, %v1123
      %v1125 = vrot.slane %v1094, %v1124
      %v1127 = vunpack.c.l.s4 1983009808
      %v1128 = vunpack.c.0.s8 %v1127
      %v1129 = vlaneseq
      %v1130 = vshrl.u32 %v1129, 7
      %v1131 = vsub.s32 %v1128, %v1130
      %v1132 = vrot.slane %v1118, %v1131
      %v1133 = vcombine.high %v1125, %v1125
      %v1134 = vcombine.high %v1132, %v1132
      %v1136 = vunpack.c.l.s4 1983009808
      %v1137 = vunpack.c.0.s8 %v1136
      %v1138 = vlaneseq
      %v1139 = vshrl.u32 %v1138, 7
      %v1140 = vsub.s32 %v1137, %v1139
      %v1141 = vrot.slane %v1095, %v1140
      %v1142 = vcombine.high %v1141, %v1141
      %1143 = vrot.lane.b32.xlu0 %v1108, 125
      %v1144 = vpop.permute.xlu0 %1143
      %1145 = vrot.lane.b32.xlu0 %v1116, 125
      %v1146 = vpop.permute.xlu0 %1145
      %1147 = vrot.lane.b32.xlu0 %v1115, 125
      %v1148 = vpop.permute.xlu0 %1147
      %1149 = vrot.lane.b32.xlu0 %v1117, 125
      %v1150 = vpop.permute.xlu0 %1149
      %1151 = vrot.lane.b32.xlu0 %v1125, 125
      %v1152 = vpop.permute.xlu0 %1151
      %1153 = vrot.lane.b32.xlu0 %v1133, 125
      %v1154 = vpop.permute.xlu0 %1153
      %1155 = vrot.lane.b32.xlu0 %v1132, 125
      %v1156 = vpop.permute.xlu0 %1155
      %1157 = vrot.lane.b32.xlu0 %v1134, 125
      %v1158 = vpop.permute.xlu0 %1157
      %1159 = vrot.lane.b32.xlu0 %v1141, 125
      %v1160 = vpop.permute.xlu0 %1159
      %1161 = vrot.lane.b32.xlu0 %v1142, 125
      %v1162 = vpop.permute.xlu0 %1161
      %vm1163 = vcmask 1022976
      %v1164 = vsel %vm1163, %v1144, %v1146
      %v1165 = vsel %vm1163, %v1146, %v1148
      %v1166 = vsel %vm1163, %v1148, %v1150
      %v1167 = vsel %vm1163, %v1150, %v1152
      %v1168 = vsel %vm1163, %v1152, %v1154
      %v1169 = vsel %vm1163, %v1154, %v1156
      %v1170 = vsel %vm1163, %v1156, %v1158
      %v1171 = vsel %vm1163, %v1158, %v1160
      %v1172 = vsel %vm1163, %v1160, %v1162
      %v1174 = vsel %vm256, %v1097, 0
      %v1177 = vsel %vm260, %v1164, 0
      %v1180 = vsel %vm260, %v1165, 0
      %v1183 = vsel %vm260, %v1166, 0
      %v1186 = vsel %vm260, %v1167, 0
      %v1189 = vsel %vm260, %v1168, 0
      %v1192 = vsel %vm260, %v1169, 0
      %v1195 = vsel %vm260, %v1170, 0
      %v1198 = vsel %vm260, %v1171, 0
      %v1201 = vsel %vm260, %v1172, 0
      %1203 = vmatprep.subr.bf16.mxu0 %v1180
      %1204 = vmatpush1.bf16.msra.mxu0 %v1177
      %1205 = vmatprep.subr.bf16.mxu0 0
      %1206 = vmatpush1.bf16.msra.mxu0 0
      %1207 = vmatprep.subr.bf16.mxu0 0
      %1208 = vmatpush1.bf16.msra.mxu0 0
      %1209 = vmatprep.subr.bf16.mxu0 0
      %1210 = vmatpush1.bf16.msra.mxu0 0
      %1211 = vmatprep.subr.bf16.mxu0 0
      %1212 = vmatpush1.bf16.msra.mxu0 0
      %1213 = vmatprep.subr.bf16.mxu0 0
      %1214 = vmatpush1.bf16.msra.mxu0 0
      %1215 = vmatprep.subr.bf16.mxu0 0
      %1216 = vmatpush1.bf16.msra.mxu0 0
      %1217 = vmatprep.subr.bf16.mxu0 0
      %1218 = vmatpush1.bf16.msra.mxu0 0
      %1219 = vmatprep.subr.bf16.mxu0 0
      %1220 = vmatpush1.bf16.msra.mxu0 0
      %1221 = vmatprep.subr.bf16.mxu0 0
      %1222 = vmatpush1.bf16.msra.mxu0 0
      %1223 = vmatprep.subr.bf16.mxu0 0
      %1224 = vmatpush1.bf16.msra.mxu0 0
      %1225 = vmatprep.subr.bf16.mxu0 0
      %1226 = vmatpush1.bf16.msra.mxu0 0
      %1227 = vmatprep.subr.bf16.mxu0 0
      %1228 = vmatpush1.bf16.msra.mxu0 0
      %1229 = vmatprep.subr.bf16.mxu0 0
      %1230 = vmatpush1.bf16.msra.mxu0 0
      %1231 = vmatprep.subr.bf16.mxu0 0
      %1232 = vmatpush1.bf16.msra.mxu0 0
      %1233 = vmatprep.subr.bf16.mxu0 0
      %1234 = vmatpush1.bf16.msra.mxu0 0
      %1235 = vmatprep.mubr.bf16.mxu0 0
      %1236 = vmatmul.mubr.bf16.gmra.mrb[0].mxu0 %v1174
      %v1237 = vpop.f32.mrb[0].mxu0
      %v1238 = vadd.f32 0.0, %v1237
      %v1239 = vpop.f32.mrb[0].mxu0
      %v1240 = vadd.f32 0.0, %v1239
      %v1241 = vpop.f32.mrb[0].mxu0
      %v1242 = vpop.f32.mrb[0].mxu0
      %1243 = vdwg.mxu0
      %1244 = vmatprep.subr.bf16.mxu0 %v1186
      %1245 = vmatpush1.bf16.msra.mxu0 %v1183
      %1246 = vmatprep.subr.bf16.mxu0 0
      %1247 = vmatpush1.bf16.msra.mxu0 0
      %1248 = vmatprep.subr.bf16.mxu0 0
      %1249 = vmatpush1.bf16.msra.mxu0 0
      %1250 = vmatprep.subr.bf16.mxu0 0
      %1251 = vmatpush1.bf16.msra.mxu0 0
      %1252 = vmatprep.subr.bf16.mxu0 0
      %1253 = vmatpush1.bf16.msra.mxu0 0
      %1254 = vmatprep.subr.bf16.mxu0 0
      %1255 = vmatpush1.bf16.msra.mxu0 0
      %1256 = vmatprep.subr.bf16.mxu0 0
      %1257 = vmatpush1.bf16.msra.mxu0 0
      %1258 = vmatprep.subr.bf16.mxu0 0
      %1259 = vmatpush1.bf16.msra.mxu0 0
      %1260 = vmatprep.subr.bf16.mxu0 0
      %1261 = vmatpush1.bf16.msra.mxu0 0
      %1262 = vmatprep.subr.bf16.mxu0 0
      %1263 = vmatpush1.bf16.msra.mxu0 0
      %1264 = vmatprep.subr.bf16.mxu0 0
      %1265 = vmatpush1.bf16.msra.mxu0 0
      %1266 = vmatprep.subr.bf16.mxu0 0
      %1267 = vmatpush1.bf16.msra.mxu0 0
      %1268 = vmatprep.subr.bf16.mxu0 0
      %1269 = vmatpush1.bf16.msra.mxu0 0
      %1270 = vmatprep.subr.bf16.mxu0 0
      %1271 = vmatpush1.bf16.msra.mxu0 0
      %1272 = vmatprep.subr.bf16.mxu0 0
      %1273 = vmatpush1.bf16.msra.mxu0 0
      %1274 = vmatprep.subr.bf16.mxu0 0
      %1275 = vmatpush1.bf16.msra.mxu0 0
      %1276 = vmatprep.mubr.bf16.mxu0 0
      %1277 = vmatmul.mubr.bf16.gmra.mrb[0].mxu0 %v1174
      %v1278 = vpop.f32.mrb[0].mxu0
      %v1279 = vadd.f32 0.0, %v1278
      %v1280 = vpop.f32.mrb[0].mxu0
      %v1281 = vadd.f32 0.0, %v1280
      %v1282 = vpop.f32.mrb[0].mxu0
      %v1283 = vpop.f32.mrb[0].mxu0
      %1284 = vdwg.mxu0
      %1285 = vmatprep.subr.bf16.mxu0 %v1192
      %1286 = vmatpush1.bf16.msra.mxu0 %v1189
      %1287 = vmatprep.subr.bf16.mxu0 0
      %1288 = vmatpush1.bf16.msra.mxu0 0
      %1289 = vmatprep.subr.bf16.mxu0 0
      %1290 = vmatpush1.bf16.msra.mxu0 0
      %1291 = vmatprep.subr.bf16.mxu0 0
      %1292 = vmatpush1.bf16.msra.mxu0 0
      %1293 = vmatprep.subr.bf16.mxu0 0
      %1294 = vmatpush1.bf16.msra.mxu0 0
      %1295 = vmatprep.subr.bf16.mxu0 0
      %1296 = vmatpush1.bf16.msra.mxu0 0
      %1297 = vmatprep.subr.bf16.mxu0 0
      %1298 = vmatpush1.bf16.msra.mxu0 0
      %1299 = vmatprep.subr.bf16.mxu0 0
      %1300 = vmatpush1.bf16.msra.mxu0 0
      %1301 = vmatprep.subr.bf16.mxu0 0
      %1302 = vmatpush1.bf16.msra.mxu0 0
      %1303 = vmatprep.subr.bf16.mxu0 0
      %1304 = vmatpush1.bf16.msra.mxu0 0
      %1305 = vmatprep.subr.bf16.mxu0 0
      %1306 = vmatpush1.bf16.msra.mxu0 0
      %1307 = vmatprep.subr.bf16.mxu0 0
      %1308 = vmatpush1.bf16.msra.mxu0 0
      %1309 = vmatprep.subr.bf16.mxu0 0
      %1310 = vmatpush1.bf16.msra.mxu0 0
      %1311 = vmatprep.subr.bf16.mxu0 0
      %1312 = vmatpush1.bf16.msra.mxu0 0
      %1313 = vmatprep.subr.bf16.mxu0 0
      %1314 = vmatpush1.bf16.msra.mxu0 0
      %1315 = vmatprep.subr.bf16.mxu0 0
      %1316 = vmatpush1.bf16.msra.mxu0 0
      %1317 = vmatprep.mubr.bf16.mxu0 0
      %1318 = vmatmul.mubr.bf16.gmra.mrb[0].mxu0 %v1174
      %v1319 = vpop.f32.mrb[0].mxu0
      %v1320 = vadd.f32 0.0, %v1319
      %v1321 = vpop.f32.mrb[0].mxu0
      %v1322 = vadd.f32 0.0, %v1321
      %v1323 = vpop.f32.mrb[0].mxu0
      %v1324 = vpop.f32.mrb[0].mxu0
      %1325 = vdwg.mxu0
      %1326 = vmatprep.subr.bf16.mxu0 %v1198
      %1327 = vmatpush1.bf16.msra.mxu0 %v1195
      %1328 = vmatprep.subr.bf16.mxu0 0
      %1329 = vmatpush1.bf16.msra.mxu0 0
      %1330 = vmatprep.subr.bf16.mxu0 0
      %1331 = vmatpush1.bf16.msra.mxu0 0
      %1332 = vmatprep.subr.bf16.mxu0 0
      %1333 = vmatpush1.bf16.msra.mxu0 0
      %1334 = vmatprep.subr.bf16.mxu0 0
      %1335 = vmatpush1.bf16.msra.mxu0 0
      %1336 = vmatprep.subr.bf16.mxu0 0
      %1337 = vmatpush1.bf16.msra.mxu0 0
      %1338 = vmatprep.subr.bf16.mxu0 0
      %1339 = vmatpush1.bf16.msra.mxu0 0
      %1340 = vmatprep.subr.bf16.mxu0 0
      %1341 = vmatpush1.bf16.msra.mxu0 0
      %1342 = vmatprep.subr.bf16.mxu0 0
      %1343 = vmatpush1.bf16.msra.mxu0 0
      %1344 = vmatprep.subr.bf16.mxu0 0
      %1345 = vmatpush1.bf16.msra.mxu0 0
      %1346 = vmatprep.subr.bf16.mxu0 0
      %1347 = vmatpush1.bf16.msra.mxu0 0
      %1348 = vmatprep.subr.bf16.mxu0 0
      %1349 = vmatpush1.bf16.msra.mxu0 0
      %1350 = vmatprep.subr.bf16.mxu0 0
      %1351 = vmatpush1.bf16.msra.mxu0 0
      %1352 = vmatprep.subr.bf16.mxu0 0
      %1353 = vmatpush1.bf16.msra.mxu0 0
      %1354 = vmatprep.subr.bf16.mxu0 0
      %1355 = vmatpush1.bf16.msra.mxu0 0
      %1356 = vmatprep.subr.bf16.mxu0 0
      %1357 = vmatpush1.bf16.msra.mxu0 0
      %1358 = vmatprep.mubr.bf16.mxu0 0
      %1359 = vmatmul.mubr.bf16.gmra.mrb[0].mxu0 %v1174
      %v1360 = vpop.f32.mrb[0].mxu0
      %v1361 = vadd.f32 0.0, %v1360
      %v1362 = vpop.f32.mrb[0].mxu0
      %v1363 = vadd.f32 0.0, %v1362
      %v1364 = vpop.f32.mrb[0].mxu0
      %v1365 = vpop.f32.mrb[0].mxu0
      %1366 = vdwg.mxu0
      %1367 = vmatprep.subr.bf16.mxu0 0
      %1368 = vmatpush1.bf16.msra.mxu0 %v1201
      %1369 = vmatprep.subr.bf16.mxu0 0
      %1370 = vmatpush1.bf16.msra.mxu0 0
      %1371 = vmatprep.subr.bf16.mxu0 0
      %1372 = vmatpush1.bf16.msra.mxu0 0
      %1373 = vmatprep.subr.bf16.mxu0 0
      %1374 = vmatpush1.bf16.msra.mxu0 0
      %1375 = vmatprep.subr.bf16.mxu0 0
      %1376 = vmatpush1.bf16.msra.mxu0 0
      %1377 = vmatprep.subr.bf16.mxu0 0
      %1378 = vmatpush1.bf16.msra.mxu0 0
      %1379 = vmatprep.subr.bf16.mxu0 0
      %1380 = vmatpush1.bf16.msra.mxu0 0
      %1381 = vmatprep.subr.bf16.mxu0 0
      %1382 = vmatpush1.bf16.msra.mxu0 0
      %1383 = vmatprep.subr.bf16.mxu0 0
      %1384 = vmatpush1.bf16.msra.mxu0 0
      %1385 = vmatprep.subr.bf16.mxu0 0
      %1386 = vmatpush1.bf16.msra.mxu0 0
      %1387 = vmatprep.subr.bf16.mxu0 0
      %1388 = vmatpush1.bf16.msra.mxu0 0
      %1389 = vmatprep.subr.bf16.mxu0 0
      %1390 = vmatpush1.bf16.msra.mxu0 0
      %1391 = vmatprep.subr.bf16.mxu0 0
      %1392 = vmatpush1.bf16.msra.mxu0 0
      %1393 = vmatprep.subr.bf16.mxu0 0
      %1394 = vmatpush1.bf16.msra.mxu0 0
      %1395 = vmatprep.subr.bf16.mxu0 0
      %1396 = vmatpush1.bf16.msra.mxu0 0
      %1397 = vmatprep.subr.bf16.mxu0 0
      %1398 = vmatpush1.bf16.msra.mxu0 0
      %1399 = vmatprep.mubr.bf16.mxu0 0
      %1400 = vmatmul.mubr.bf16.gmra.mrb[0].mxu0 %v1174
      %v1401 = vpop.f32.mrb[0].mxu0
      %v1402 = vadd.f32 0.0, %v1401
      %v1403 = vpop.f32.mrb[0].mxu0
      %v1404 = vpop.f32.mrb[0].mxu0
      %v1405 = vpop.f32.mrb[0].mxu0
      %1406 = vdwg.mxu0
      %v1407 = vadd.f32 %v1084, %v1238
      %v1408 = vadd.f32 %v1085, %v1240
      %v1409 = vadd.f32 %v1086, %v1279
      %v1410 = vadd.f32 %v1087, %v1281
      %v1411 = vadd.f32 %v1088, %v1320
      %v1412 = vadd.f32 %v1089, %v1322
      %v1413 = vadd.f32 %v1090, %v1361
      %v1414 = vadd.f32 %v1091, %v1363
      %v1415 = vadd.f32 %v1092, %v1402
      %v1416 = vld [vmem:[%s165] sm:$0xff]
      %v1417 = vld [vmem:[%s165 + $0x8] sm:$0xff]
      %v1418 = vld [vmem:[%s165 + $0x10] sm:$0xf]
      %s1419 = scalar_lea.vmem %s1, 8
      %v1420 = vld [vmem:[%s1419] sm:$0x3]
      %v1424 = vcombine.high %v1416, %v1416
      %v1426 = vunpack.c.l.s4 1983009808
      %v1427 = vunpack.c.0.s8 %v1426
      %v1428 = vlaneseq
      %v1429 = vshrl.u32 %v1428, 7
      %v1430 = vsub.s32 %v1427, %v1429
      %v1431 = vrot.slane %v1416, %v1430
      %v1433 = vunpack.c.l.s4 1983009808
      %v1434 = vunpack.c.0.s8 %v1433
      %v1435 = vlaneseq
      %v1436 = vshrl.u32 %v1435, 7
      %v1437 = vsub.s32 %v1434, %v1436
      %v1438 = vrot.slane %v1424, %v1437
      %v1439 = vcombine.high %v1431, %v1431
      %v1440 = vcombine.high %v1438, %v1438
      %v1441 = vcombine.high %v1417, %v1417
      %v1443 = vunpack.c.l.s4 1983009808
      %v1444 = vunpack.c.0.s8 %v1443
      %v1445 = vlaneseq
      %v1446 = vshrl.u32 %v1445, 7
      %v1447 = vsub.s32 %v1444, %v1446
      %v1448 = vrot.slane %v1417, %v1447
      %v1450 = vunpack.c.l.s4 1983009808
      %v1451 = vunpack.c.0.s8 %v1450
      %v1452 = vlaneseq
      %v1453 = vshrl.u32 %v1452, 7
      %v1454 = vsub.s32 %v1451, %v1453
      %v1455 = vrot.slane %v1441, %v1454
      %v1456 = vcombine.high %v1448, %v1448
      %v1457 = vcombine.high %v1455, %v1455
      %v1459 = vunpack.c.l.s4 1983009808
      %v1460 = vunpack.c.0.s8 %v1459
      %v1461 = vlaneseq
      %v1462 = vshrl.u32 %v1461, 7
      %v1463 = vsub.s32 %v1460, %v1462
      %v1464 = vrot.slane %v1418, %v1463
      %v1465 = vcombine.high %v1464, %v1464
      %1466 = vrot.lane.b32.xlu0 %v1431, 92
      %v1467 = vpop.permute.xlu0 %1466
      %1468 = vrot.lane.b32.xlu0 %v1439, 92
      %v1469 = vpop.permute.xlu0 %1468
      %1470 = vrot.lane.b32.xlu0 %v1438, 92
      %v1471 = vpop.permute.xlu0 %1470
      %1472 = vrot.lane.b32.xlu0 %v1440, 92
      %v1473 = vpop.permute.xlu0 %1472
      %1474 = vrot.lane.b32.xlu0 %v1448, 92
      %v1475 = vpop.permute.xlu0 %1474
      %1476 = vrot.lane.b32.xlu0 %v1456, 92
      %v1477 = vpop.permute.xlu0 %1476
      %1478 = vrot.lane.b32.xlu0 %v1455, 92
      %v1479 = vpop.permute.xlu0 %1478
      %1480 = vrot.lane.b32.xlu0 %v1457, 92
      %v1481 = vpop.permute.xlu0 %1480
      %1482 = vrot.lane.b32.xlu0 %v1464, 92
      %v1483 = vpop.permute.xlu0 %1482
      %1484 = vrot.lane.b32.xlu0 %v1465, 92
      %v1485 = vpop.permute.xlu0 %1484
      %vm1486 = vcmask 752640
      %v1487 = vsel %vm1486, %v1467, %v1469
      %v1488 = vsel %vm1486, %v1469, %v1471
      %v1489 = vsel %vm1486, %v1471, %v1473
      %v1490 = vsel %vm1486, %v1473, %v1475
      %v1491 = vsel %vm1486, %v1475, %v1477
      %v1492 = vsel %vm1486, %v1477, %v1479
      %v1493 = vsel %vm1486, %v1479, %v1481
      %v1494 = vsel %vm1486, %v1481, %v1483
      %v1495 = vsel %vm1486, %v1483, %v1485
      %v1497 = vsel %vm256, %v1420, 0
      %v1500 = vsel %vm260, %v1487, 0
      %v1503 = vsel %vm260, %v1488, 0
      %v1506 = vsel %vm260, %v1489, 0
      %v1509 = vsel %vm260, %v1490, 0
      %v1512 = vsel %vm260, %v1491, 0
      %v1515 = vsel %vm260, %v1492, 0
      %v1518 = vsel %vm260, %v1493, 0
      %v1521 = vsel %vm260, %v1494, 0
      %v1524 = vsel %vm260, %v1495, 0
      %1526 = vmatprep.subr.bf16.mxu0 %v1503
      %1527 = vmatpush1.bf16.msra.mxu0 %v1500
      %1528 = vmatprep.subr.bf16.mxu0 0
      %1529 = vmatpush1.bf16.msra.mxu0 0
      %1530 = vmatprep.subr.bf16.mxu0 0
      %1531 = vmatpush1.bf16.msra.mxu0 0
      %1532 = vmatprep.subr.bf16.mxu0 0
      %1533 = vmatpush1.bf16.msra.mxu0 0
      %1534 = vmatprep.subr.bf16.mxu0 0
      %1535 = vmatpush1.bf16.msra.mxu0 0
      %1536 = vmatprep.subr.bf16.mxu0 0
      %1537 = vmatpush1.bf16.msra.mxu0 0
      %1538 = vmatprep.subr.bf16.mxu0 0
      %1539 = vmatpush1.bf16.msra.mxu0 0
      %1540 = vmatprep.subr.bf16.mxu0 0
      %1541 = vmatpush1.bf16.msra.mxu0 0
      %1542 = vmatprep.subr.bf16.mxu0 0
      %1543 = vmatpush1.bf16.msra.mxu0 0
      %1544 = vmatprep.subr.bf16.mxu0 0
      %1545 = vmatpush1.bf16.msra.mxu0 0
      %1546 = vmatprep.subr.bf16.mxu0 0
      %1547 = vmatpush1.bf16.msra.mxu0 0
      %1548 = vmatprep.subr.bf16.mxu0 0
      %1549 = vmatpush1.bf16.msra.mxu0 0
      %1550 = vmatprep.subr.bf16.mxu0 0
      %1551 = vmatpush1.bf16.msra.mxu0 0
      %1552 = vmatprep.subr.bf16.mxu0 0
      %1553 = vmatpush1.bf16.msra.mxu0 0
      %1554 = vmatprep.subr.bf16.mxu0 0
      %1555 = vmatpush1.bf16.msra.mxu0 0
      %1556 = vmatprep.subr.bf16.mxu0 0
      %1557 = vmatpush1.bf16.msra.mxu0 0
      %1558 = vmatprep.mubr.bf16.mxu0 0
      %1559 = vmatmul.mubr.bf16.gmra.mrb[0].mxu0 %v1497
      %v1560 = vpop.f32.mrb[0].mxu0
      %v1561 = vadd.f32 0.0, %v1560
      %v1562 = vpop.f32.mrb[0].mxu0
      %v1563 = vadd.f32 0.0, %v1562
      %v1564 = vpop.f32.mrb[0].mxu0
      %v1565 = vpop.f32.mrb[0].mxu0
      %1566 = vdwg.mxu0
      %1567 = vmatprep.subr.bf16.mxu0 %v1509
      %1568 = vmatpush1.bf16.msra.mxu0 %v1506
      %1569 = vmatprep.subr.bf16.mxu0 0
      %1570 = vmatpush1.bf16.msra.mxu0 0
      %1571 = vmatprep.subr.bf16.mxu0 0
      %1572 = vmatpush1.bf16.msra.mxu0 0
      %1573 = vmatprep.subr.bf16.mxu0 0
      %1574 = vmatpush1.bf16.msra.mxu0 0
      %1575 = vmatprep.subr.bf16.mxu0 0
      %1576 = vmatpush1.bf16.msra.mxu0 0
      %1577 = vmatprep.subr.bf16.mxu0 0
      %1578 = vmatpush1.bf16.msra.mxu0 0
      %1579 = vmatprep.subr.bf16.mxu0 0
      %1580 = vmatpush1.bf16.msra.mxu0 0
      %1581 = vmatprep.subr.bf16.mxu0 0
      %1582 = vmatpush1.bf16.msra.mxu0 0
      %1583 = vmatprep.subr.bf16.mxu0 0
      %1584 = vmatpush1.bf16.msra.mxu0 0
      %1585 = vmatprep.subr.bf16.mxu0 0
      %1586 = vmatpush1.bf16.msra.mxu0 0
      %1587 = vmatprep.subr.bf16.mxu0 0
      %1588 = vmatpush1.bf16.msra.mxu0 0
      %1589 = vmatprep.subr.bf16.mxu0 0
      %1590 = vmatpush1.bf16.msra.mxu0 0
      %1591 = vmatprep.subr.bf16.mxu0 0
      %1592 = vmatpush1.bf16.msra.mxu0 0
      %1593 = vmatprep.subr.bf16.mxu0 0
      %1594 = vmatpush1.bf16.msra.mxu0 0
      %1595 = vmatprep.subr.bf16.mxu0 0
      %1596 = vmatpush1.bf16.msra.mxu0 0
      %1597 = vmatprep.subr.bf16.mxu0 0
      %1598 = vmatpush1.bf16.msra.mxu0 0
      %1599 = vmatprep.mubr.bf16.mxu0 0
      %1600 = vmatmul.mubr.bf16.gmra.mrb[0].mxu0 %v1497
      %v1601 = vpop.f32.mrb[0].mxu0
      %v1602 = vadd.f32 0.0, %v1601
      %v1603 = vpop.f32.mrb[0].mxu0
      %v1604 = vadd.f32 0.0, %v1603
      %v1605 = vpop.f32.mrb[0].mxu0
      %v1606 = vpop.f32.mrb[0].mxu0
      %1607 = vdwg.mxu0
      %1608 = vmatprep.subr.bf16.mxu0 %v1515
      %1609 = vmatpush1.bf16.msra.mxu0 %v1512
      %1610 = vmatprep.subr.bf16.mxu0 0
      %1611 = vmatpush1.bf16.msra.mxu0 0
      %1612 = vmatprep.subr.bf16.mxu0 0
      %1613 = vmatpush1.bf16.msra.mxu0 0
      %1614 = vmatprep.subr.bf16.mxu0 0
      %1615 = vmatpush1.bf16.msra.mxu0 0
      %1616 = vmatprep.subr.bf16.mxu0 0
      %1617 = vmatpush1.bf16.msra.mxu0 0
      %1618 = vmatprep.subr.bf16.mxu0 0
      %1619 = vmatpush1.bf16.msra.mxu0 0
      %1620 = vmatprep.subr.bf16.mxu0 0
      %1621 = vmatpush1.bf16.msra.mxu0 0
      %1622 = vmatprep.subr.bf16.mxu0 0
      %1623 = vmatpush1.bf16.msra.mxu0 0
      %1624 = vmatprep.subr.bf16.mxu0 0
      %1625 = vmatpush1.bf16.msra.mxu0 0
      %1626 = vmatprep.subr.bf16.mxu0 0
      %1627 = vmatpush1.bf16.msra.mxu0 0
      %1628 = vmatprep.subr.bf16.mxu0 0
      %1629 = vmatpush1.bf16.msra.mxu0 0
      %1630 = vmatprep.subr.bf16.mxu0 0
      %1631 = vmatpush1.bf16.msra.mxu0 0
      %1632 = vmatprep.subr.bf16.mxu0 0
      %1633 = vmatpush1.bf16.msra.mxu0 0
      %1634 = vmatprep.subr.bf16.mxu0 0
      %1635 = vmatpush1.bf16.msra.mxu0 0
      %1636 = vmatprep.subr.bf16.mxu0 0
      %1637 = vmatpush1.bf16.msra.mxu0 0
      %1638 = vmatprep.subr.bf16.mxu0 0
      %1639 = vmatpush1.bf16.msra.mxu0 0
      %1640 = vmatprep.mubr.bf16.mxu0 0
      %1641 = vmatmul.mubr.bf16.gmra.mrb[0].mxu0 %v1497
      %v1642 = vpop.f32.mrb[0].mxu0
      %v1643 = vadd.f32 0.0, %v1642
      %v1644 = vpop.f32.mrb[0].mxu0
      %v1645 = vadd.f32 0.0, %v1644
      %v1646 = vpop.f32.mrb[0].mxu0
      %v1647 = vpop.f32.mrb[0].mxu0
      %1648 = vdwg.mxu0
      %1649 = vmatprep.subr.bf16.mxu0 %v1521
      %1650 = vmatpush1.bf16.msra.mxu0 %v1518
      %1651 = vmatprep.subr.bf16.mxu0 0
      %1652 = vmatpush1.bf16.msra.mxu0 0
      %1653 = vmatprep.subr.bf16.mxu0 0
      %1654 = vmatpush1.bf16.msra.mxu0 0
      %1655 = vmatprep.subr.bf16.mxu0 0
      %1656 = vmatpush1.bf16.msra.mxu0 0
      %1657 = vmatprep.subr.bf16.mxu0 0
      %1658 = vmatpush1.bf16.msra.mxu0 0
      %1659 = vmatprep.subr.bf16.mxu0 0
      %1660 = vmatpush1.bf16.msra.mxu0 0
      %1661 = vmatprep.subr.bf16.mxu0 0
      %1662 = vmatpush1.bf16.msra.mxu0 0
      %1663 = vmatprep.subr.bf16.mxu0 0
      %1664 = vmatpush1.bf16.msra.mxu0 0
      %1665 = vmatprep.subr.bf16.mxu0 0
      %1666 = vmatpush1.bf16.msra.mxu0 0
      %1667 = vmatprep.subr.bf16.mxu0 0
      %1668 = vmatpush1.bf16.msra.mxu0 0
      %1669 = vmatprep.subr.bf16.mxu0 0
      %1670 = vmatpush1.bf16.msra.mxu0 0
      %1671 = vmatprep.subr.bf16.mxu0 0
      %1672 = vmatpush1.bf16.msra.mxu0 0
      %1673 = vmatprep.subr.bf16.mxu0 0
      %1674 = vmatpush1.bf16.msra.mxu0 0
      %1675 = vmatprep.subr.bf16.mxu0 0
      %1676 = vmatpush1.bf16.msra.mxu0 0
      %1677 = vmatprep.subr.bf16.mxu0 0
      %1678 = vmatpush1.bf16.msra.mxu0 0
      %1679 = vmatprep.subr.bf16.mxu0 0
      %1680 = vmatpush1.bf16.msra.mxu0 0
      %1681 = vmatprep.mubr.bf16.mxu0 0
      %1682 = vmatmul.mubr.bf16.gmra.mrb[0].mxu0 %v1497
      %v1683 = vpop.f32.mrb[0].mxu0
      %v1684 = vadd.f32 0.0, %v1683
      %v1685 = vpop.f32.mrb[0].mxu0
      %v1686 = vadd.f32 0.0, %v1685
      %v1687 = vpop.f32.mrb[0].mxu0
      %v1688 = vpop.f32.mrb[0].mxu0
      %1689 = vdwg.mxu0
      %1690 = vmatprep.subr.bf16.mxu0 0
      %1691 = vmatpush1.bf16.msra.mxu0 %v1524
      %1692 = vmatprep.subr.bf16.mxu0 0
      %1693 = vmatpush1.bf16.msra.mxu0 0
      %1694 = vmatprep.subr.bf16.mxu0 0
      %1695 = vmatpush1.bf16.msra.mxu0 0
      %1696 = vmatprep.subr.bf16.mxu0 0
      %1697 = vmatpush1.bf16.msra.mxu0 0
      %1698 = vmatprep.subr.bf16.mxu0 0
      %1699 = vmatpush1.bf16.msra.mxu0 0
      %1700 = vmatprep.subr.bf16.mxu0 0
      %1701 = vmatpush1.bf16.msra.mxu0 0
      %1702 = vmatprep.subr.bf16.mxu0 0
      %1703 = vmatpush1.bf16.msra.mxu0 0
      %1704 = vmatprep.subr.bf16.mxu0 0
      %1705 = vmatpush1.bf16.msra.mxu0 0
      %1706 = vmatprep.subr.bf16.mxu0 0
      %1707 = vmatpush1.bf16.msra.mxu0 0
      %1708 = vmatprep.subr.bf16.mxu0 0
      %1709 = vmatpush1.bf16.msra.mxu0 0
      %1710 = vmatprep.subr.bf16.mxu0 0
      %1711 = vmatpush1.bf16.msra.mxu0 0
      %1712 = vmatprep.subr.bf16.mxu0 0
      %1713 = vmatpush1.bf16.msra.mxu0 0
      %1714 = vmatprep.subr.bf16.mxu0 0
      %1715 = vmatpush1.bf16.msra.mxu0 0
      %1716 = vmatprep.subr.bf16.mxu0 0
      %1717 = vmatpush1.bf16.msra.mxu0 0
      %1718 = vmatprep.subr.bf16.mxu0 0
      %1719 = vmatpush1.bf16.msra.mxu0 0
      %1720 = vmatprep.subr.bf16.mxu0 0
      %1721 = vmatpush1.bf16.msra.mxu0 0
      %1722 = vmatprep.mubr.bf16.mxu0 0
      %1723 = vmatmul.mubr.bf16.gmra.mrb[0].mxu0 %v1497
      %v1724 = vpop.f32.mrb[0].mxu0
      %v1725 = vadd.f32 0.0, %v1724
      %v1726 = vpop.f32.mrb[0].mxu0
      %v1727 = vpop.f32.mrb[0].mxu0
      %v1728 = vpop.f32.mrb[0].mxu0
      %1729 = vdwg.mxu0
      %v1730 = vadd.f32 %v1407, %v1561
      %v1731 = vadd.f32 %v1408, %v1563
      %v1732 = vadd.f32 %v1409, %v1602
      %v1733 = vadd.f32 %v1410, %v1604
      %v1734 = vadd.f32 %v1411, %v1643
      %v1735 = vadd.f32 %v1412, %v1645
      %v1736 = vadd.f32 %v1413, %v1684
      %v1737 = vadd.f32 %v1414, %v1686
      %v1738 = vadd.f32 %v1415, %v1725
      %v1739 = vld [vmem:[%s165] sm:$0xff]
      %v1740 = vld [vmem:[%s165 + $0x8] sm:$0xff]
      %v1741 = vld [vmem:[%s165 + $0x10] sm:$0xf]
      %s1742 = scalar_lea.vmem %s1, 10
      %v1743 = vld [vmem:[%s1742] sm:$0x3]
      %v1747 = vcombine.high %v1739, %v1739
      %v1749 = vunpack.c.l.s4 1983009808
      %v1750 = vunpack.c.0.s8 %v1749
      %v1751 = vlaneseq
      %v1752 = vshrl.u32 %v1751, 7
      %v1753 = vsub.s32 %v1750, %v1752
      %v1754 = vrot.slane %v1739, %v1753
      %v1756 = vunpack.c.l.s4 1983009808
      %v1757 = vunpack.c.0.s8 %v1756
      %v1758 = vlaneseq
      %v1759 = vshrl.u32 %v1758, 7
      %v1760 = vsub.s32 %v1757, %v1759
      %v1761 = vrot.slane %v1747, %v1760
      %v1762 = vcombine.high %v1754, %v1754
      %v1763 = vcombine.high %v1761, %v1761
      %v1764 = vcombine.high %v1740, %v1740
      %v1766 = vunpack.c.l.s4 1983009808
      %v1767 = vunpack.c.0.s8 %v1766
      %v1768 = vlaneseq
      %v1769 = vshrl.u32 %v1768, 7
      %v1770 = vsub.s32 %v1767, %v1769
      %v1771 = vrot.slane %v1740, %v1770
      %v1773 = vunpack.c.l.s4 1983009808
      %v1774 = vunpack.c.0.s8 %v1773
      %v1775 = vlaneseq
      %v1776 = vshrl.u32 %v1775, 7
      %v1777 = vsub.s32 %v1774, %v1776
      %v1778 = vrot.slane %v1764, %v1777
      %v1779 = vcombine.high %v1771, %v1771
      %v1780 = vcombine.high %v1778, %v1778
      %v1782 = vunpack.c.l.s4 1983009808
      %v1783 = vunpack.c.0.s8 %v1782
      %v1784 = vlaneseq
      %v1785 = vshrl.u32 %v1784, 7
      %v1786 = vsub.s32 %v1783, %v1785
      %v1787 = vrot.slane %v1741, %v1786
      %v1788 = vcombine.high %v1787, %v1787
      %1789 = vrot.lane.b32.xlu0 %v1754, 91
      %v1790 = vpop.permute.xlu0 %1789
      %1791 = vrot.lane.b32.xlu0 %v1762, 91
      %v1792 = vpop.permute.xlu0 %1791
      %1793 = vrot.lane.b32.xlu0 %v1761, 91
      %v1794 = vpop.permute.xlu0 %1793
      %1795 = vrot.lane.b32.xlu0 %v1763, 91
      %v1796 = vpop.permute.xlu0 %1795
      %1797 = vrot.lane.b32.xlu0 %v1771, 91
      %v1798 = vpop.permute.xlu0 %1797
      %1799 = vrot.lane.b32.xlu0 %v1779, 91
      %v1800 = vpop.permute.xlu0 %1799
      %1801 = vrot.lane.b32.xlu0 %v1778, 91
      %v1802 = vpop.permute.xlu0 %1801
      %1803 = vrot.lane.b32.xlu0 %v1780, 91
      %v1804 = vpop.permute.xlu0 %1803
      %1805 = vrot.lane.b32.xlu0 %v1787, 91
      %v1806 = vpop.permute.xlu0 %1805
      %1807 = vrot.lane.b32.xlu0 %v1788, 91
      %v1808 = vpop.permute.xlu0 %1807
      %vm1809 = vcmask 744448
      %v1810 = vsel %vm1809, %v1790, %v1792
      %v1811 = vsel %vm1809, %v1792, %v1794
      %v1812 = vsel %vm1809, %v1794, %v1796
      %v1813 = vsel %vm1809, %v1796, %v1798
      %v1814 = vsel %vm1809, %v1798, %v1800
      %v1815 = vsel %vm1809, %v1800, %v1802
      %v1816 = vsel %vm1809, %v1802, %v1804
      %v1817 = vsel %vm1809, %v1804, %v1806
      %v1818 = vsel %vm1809, %v1806, %v1808
      %v1820 = vsel %vm256, %v1743, 0
      %v1823 = vsel %vm260, %v1810, 0
      %v1826 = vsel %vm260, %v1811, 0
      %v1829 = vsel %vm260, %v1812, 0
      %v1832 = vsel %vm260, %v1813, 0
      %v1835 = vsel %vm260, %v1814, 0
      %v1838 = vsel %vm260, %v1815, 0
      %v1841 = vsel %vm260, %v1816, 0
      %v1844 = vsel %vm260, %v1817, 0
      %v1847 = vsel %vm260, %v1818, 0
      %1849 = vmatprep.subr.bf16.mxu0 %v1826
      %1850 = vmatpush1.bf16.msra.mxu0 %v1823
      %1851 = vmatprep.subr.bf16.mxu0 0
      %1852 = vmatpush1.bf16.msra.mxu0 0
      %1853 = vmatprep.subr.bf16.mxu0 0
      %1854 = vmatpush1.bf16.msra.mxu0 0
      %1855 = vmatprep.subr.bf16.mxu0 0
      %1856 = vmatpush1.bf16.msra.mxu0 0
      %1857 = vmatprep.subr.bf16.mxu0 0
      %1858 = vmatpush1.bf16.msra.mxu0 0
      %1859 = vmatprep.subr.bf16.mxu0 0
      %1860 = vmatpush1.bf16.msra.mxu0 0
      %1861 = vmatprep.subr.bf16.mxu0 0
      %1862 = vmatpush1.bf16.msra.mxu0 0
      %1863 = vmatprep.subr.bf16.mxu0 0
      %1864 = vmatpush1.bf16.msra.mxu0 0
      %1865 = vmatprep.subr.bf16.mxu0 0
      %1866 = vmatpush1.bf16.msra.mxu0 0
      %1867 = vmatprep.subr.bf16.mxu0 0
      %1868 = vmatpush1.bf16.msra.mxu0 0
      %1869 = vmatprep.subr.bf16.mxu0 0
      %1870 = vmatpush1.bf16.msra.mxu0 0
      %1871 = vmatprep.subr.bf16.mxu0 0
      %1872 = vmatpush1.bf16.msra.mxu0 0
      %1873 = vmatprep.subr.bf16.mxu0 0
      %1874 = vmatpush1.bf16.msra.mxu0 0
      %1875 = vmatprep.subr.bf16.mxu0 0
      %1876 = vmatpush1.bf16.msra.mxu0 0
      %1877 = vmatprep.subr.bf16.mxu0 0
      %1878 = vmatpush1.bf16.msra.mxu0 0
      %1879 = vmatprep.subr.bf16.mxu0 0
      %1880 = vmatpush1.bf16.msra.mxu0 0
      %1881 = vmatprep.mubr.bf16.mxu0 0
      %1882 = vmatmul.mubr.bf16.gmra.mrb[0].mxu0 %v1820
      %v1883 = vpop.f32.mrb[0].mxu0
      %v1884 = vadd.f32 0.0, %v1883
      %v1885 = vpop.f32.mrb[0].mxu0
      %v1886 = vadd.f32 0.0, %v1885
      %v1887 = vpop.f32.mrb[0].mxu0
      %v1888 = vpop.f32.mrb[0].mxu0
      %1889 = vdwg.mxu0
      %1890 = vmatprep.subr.bf16.mxu0 %v1832
      %1891 = vmatpush1.bf16.msra.mxu0 %v1829
      %1892 = vmatprep.subr.bf16.mxu0 0
      %1893 = vmatpush1.bf16.msra.mxu0 0
      %1894 = vmatprep.subr.bf16.mxu0 0
      %1895 = vmatpush1.bf16.msra.mxu0 0
      %1896 = vmatprep.subr.bf16.mxu0 0
      %1897 = vmatpush1.bf16.msra.mxu0 0
      %1898 = vmatprep.subr.bf16.mxu0 0
      %1899 = vmatpush1.bf16.msra.mxu0 0
      %1900 = vmatprep.subr.bf16.mxu0 0
      %1901 = vmatpush1.bf16.msra.mxu0 0
      %1902 = vmatprep.subr.bf16.mxu0 0
      %1903 = vmatpush1.bf16.msra.mxu0 0
      %1904 = vmatprep.subr.bf16.mxu0 0
      %1905 = vmatpush1.bf16.msra.mxu0 0
      %1906 = vmatprep.subr.bf16.mxu0 0
      %1907 = vmatpush1.bf16.msra.mxu0 0
      %1908 = vmatprep.subr.bf16.mxu0 0
      %1909 = vmatpush1.bf16.msra.mxu0 0
      %1910 = vmatprep.subr.bf16.mxu0 0
      %1911 = vmatpush1.bf16.msra.mxu0 0
      %1912 = vmatprep.subr.bf16.mxu0 0
      %1913 = vmatpush1.bf16.msra.mxu0 0
      %1914 = vmatprep.subr.bf16.mxu0 0
      %1915 = vmatpush1.bf16.msra.mxu0 0
      %1916 = vmatprep.subr.bf16.mxu0 0
      %1917 = vmatpush1.bf16.msra.mxu0 0
      %1918 = vmatprep.subr.bf16.mxu0 0
      %1919 = vmatpush1.bf16.msra.mxu0 0
      %1920 = vmatprep.subr.bf16.mxu0 0
      %1921 = vmatpush1.bf16.msra.mxu0 0
      %1922 = vmatprep.mubr.bf16.mxu0 0
      %1923 = vmatmul.mubr.bf16.gmra.mrb[0].mxu0 %v1820
      %v1924 = vpop.f32.mrb[0].mxu0
      %v1925 = vadd.f32 0.0, %v1924
      %v1926 = vpop.f32.mrb[0].mxu0
      %v1927 = vadd.f32 0.0, %v1926
      %v1928 = vpop.f32.mrb[0].mxu0
      %v1929 = vpop.f32.mrb[0].mxu0
      %1930 = vdwg.mxu0
      %1931 = vmatprep.subr.bf16.mxu0 %v1838
      %1932 = vmatpush1.bf16.msra.mxu0 %v1835
      %1933 = vmatprep.subr.bf16.mxu0 0
      %1934 = vmatpush1.bf16.msra.mxu0 0
      %1935 = vmatprep.subr.bf16.mxu0 0
      %1936 = vmatpush1.bf16.msra.mxu0 0
      %1937 = vmatprep.subr.bf16.mxu0 0
      %1938 = vmatpush1.bf16.msra.mxu0 0
      %1939 = vmatprep.subr.bf16.mxu0 0
      %1940 = vmatpush1.bf16.msra.mxu0 0
      %1941 = vmatprep.subr.bf16.mxu0 0
      %1942 = vmatpush1.bf16.msra.mxu0 0
      %1943 = vmatprep.subr.bf16.mxu0 0
      %1944 = vmatpush1.bf16.msra.mxu0 0
      %1945 = vmatprep.subr.bf16.mxu0 0
      %1946 = vmatpush1.bf16.msra.mxu0 0
      %1947 = vmatprep.subr.bf16.mxu0 0
      %1948 = vmatpush1.bf16.msra.mxu0 0
      %1949 = vmatprep.subr.bf16.mxu0 0
      %1950 = vmatpush1.bf16.msra.mxu0 0
      %1951 = vmatprep.subr.bf16.mxu0 0
      %1952 = vmatpush1.bf16.msra.mxu0 0
      %1953 = vmatprep.subr.bf16.mxu0 0
      %1954 = vmatpush1.bf16.msra.mxu0 0
      %1955 = vmatprep.subr.bf16.mxu0 0
      %1956 = vmatpush1.bf16.msra.mxu0 0
      %1957 = vmatprep.subr.bf16.mxu0 0
      %1958 = vmatpush1.bf16.msra.mxu0 0
      %1959 = vmatprep.subr.bf16.mxu0 0
      %1960 = vmatpush1.bf16.msra.mxu0 0
      %1961 = vmatprep.subr.bf16.mxu0 0
      %1962 = vmatpush1.bf16.msra.mxu0 0
      %1963 = vmatprep.mubr.bf16.mxu0 0
      %1964 = vmatmul.mubr.bf16.gmra.mrb[0].mxu0 %v1820
      %v1965 = vpop.f32.mrb[0].mxu0
      %v1966 = vadd.f32 0.0, %v1965
      %v1967 = vpop.f32.mrb[0].mxu0
      %v1968 = vadd.f32 0.0, %v1967
      %v1969 = vpop.f32.mrb[0].mxu0
      %v1970 = vpop.f32.mrb[0].mxu0
      %1971 = vdwg.mxu0
      %1972 = vmatprep.subr.bf16.mxu0 %v1844
      %1973 = vmatpush1.bf16.msra.mxu0 %v1841
      %1974 = vmatprep.subr.bf16.mxu0 0
      %1975 = vmatpush1.bf16.msra.mxu0 0
      %1976 = vmatprep.subr.bf16.mxu0 0
      %1977 = vmatpush1.bf16.msra.mxu0 0
      %1978 = vmatprep.subr.bf16.mxu0 0
      %1979 = vmatpush1.bf16.msra.mxu0 0
      %1980 = vmatprep.subr.bf16.mxu0 0
      %1981 = vmatpush1.bf16.msra.mxu0 0
      %1982 = vmatprep.subr.bf16.mxu0 0
      %1983 = vmatpush1.bf16.msra.mxu0 0
      %1984 = vmatprep.subr.bf16.mxu0 0
      %1985 = vmatpush1.bf16.msra.mxu0 0
      %1986 = vmatprep.subr.bf16.mxu0 0
      %1987 = vmatpush1.bf16.msra.mxu0 0
      %1988 = vmatprep.subr.bf16.mxu0 0
      %1989 = vmatpush1.bf16.msra.mxu0 0
      %1990 = vmatprep.subr.bf16.mxu0 0
      %1991 = vmatpush1.bf16.msra.mxu0 0
      %1992 = vmatprep.subr.bf16.mxu0 0
      %1993 = vmatpush1.bf16.msra.mxu0 0
      %1994 = vmatprep.subr.bf16.mxu0 0
      %1995 = vmatpush1.bf16.msra.mxu0 0
      %1996 = vmatprep.subr.bf16.mxu0 0
      %1997 = vmatpush1.bf16.msra.mxu0 0
      %1998 = vmatprep.subr.bf16.mxu0 0
      %1999 = vmatpush1.bf16.msra.mxu0 0
      %2000 = vmatprep.subr.bf16.mxu0 0
      %2001 = vmatpush1.bf16.msra.mxu0 0
      %2002 = vmatprep.subr.bf16.mxu0 0
      %2003 = vmatpush1.bf16.msra.mxu0 0
      %2004 = vmatprep.mubr.bf16.mxu0 0
      %2005 = vmatmul.mubr.bf16.gmra.mrb[0].mxu0 %v1820
      %v2006 = vpop.f32.mrb[0].mxu0
      %v2007 = vadd.f32 0.0, %v2006
      %v2008 = vpop.f32.mrb[0].mxu0
      %v2009 = vadd.f32 0.0, %v2008
      %v2010 = vpop.f32.mrb[0].mxu0
      %v2011 = vpop.f32.mrb[0].mxu0
      %2012 = vdwg.mxu0
      %2013 = vmatprep.subr.bf16.mxu0 0
      %2014 = vmatpush1.bf16.msra.mxu0 %v1847
      %2015 = vmatprep.subr.bf16.mxu0 0
      %2016 = vmatpush1.bf16.msra.mxu0 0
      %2017 = vmatprep.subr.bf16.mxu0 0
      %2018 = vmatpush1.bf16.msra.mxu0 0
      %2019 = vmatprep.subr.bf16.mxu0 0
      %2020 = vmatpush1.bf16.msra.mxu0 0
      %2021 = vmatprep.subr.bf16.mxu0 0
      %2022 = vmatpush1.bf16.msra.mxu0 0
      %2023 = vmatprep.subr.bf16.mxu0 0
      %2024 = vmatpush1.bf16.msra.mxu0 0
      %2025 = vmatprep.subr.bf16.mxu0 0
      %2026 = vmatpush1.bf16.msra.mxu0 0
      %2027 = vmatprep.subr.bf16.mxu0 0
      %2028 = vmatpush1.bf16.msra.mxu0 0
      %2029 = vmatprep.subr.bf16.mxu0 0
      %2030 = vmatpush1.bf16.msra.mxu0 0
      %2031 = vmatprep.subr.bf16.mxu0 0
      %2032 = vmatpush1.bf16.msra.mxu0 0
      %2033 = vmatprep.subr.bf16.mxu0 0
      %2034 = vmatpush1.bf16.msra.mxu0 0
      %2035 = vmatprep.subr.bf16.mxu0 0
      %2036 = vmatpush1.bf16.msra.mxu0 0
      %2037 = vmatprep.subr.bf16.mxu0 0
      %2038 = vmatpush1.bf16.msra.mxu0 0
      %2039 = vmatprep.subr.bf16.mxu0 0
      %2040 = vmatpush1.bf16.msra.mxu0 0
      %2041 = vmatprep.subr.bf16.mxu0 0
      %2042 = vmatpush1.bf16.msra.mxu0 0
      %2043 = vmatprep.subr.bf16.mxu0 0
      %2044 = vmatpush1.bf16.msra.mxu0 0
      %2045 = vmatprep.mubr.bf16.mxu0 0
      %2046 = vmatmul.mubr.bf16.gmra.mrb[0].mxu0 %v1820
      %v2047 = vpop.f32.mrb[0].mxu0
      %v2048 = vadd.f32 0.0, %v2047
      %v2049 = vpop.f32.mrb[0].mxu0
      %v2050 = vpop.f32.mrb[0].mxu0
      %v2051 = vpop.f32.mrb[0].mxu0
      %2052 = vdwg.mxu0
      %v2053 = vadd.f32 %v1730, %v1884
      %v2054 = vadd.f32 %v1731, %v1886
      %v2055 = vadd.f32 %v1732, %v1925
      %v2056 = vadd.f32 %v1733, %v1927
      %v2057 = vadd.f32 %v1734, %v1966
      %v2058 = vadd.f32 %v1735, %v1968
      %v2059 = vadd.f32 %v1736, %v2007
      %v2060 = vadd.f32 %v1737, %v2009
      %v2061 = vadd.f32 %v1738, %v2048
      %v2062 = vld [vmem:[%s165] sm:$0xff]
      %v2063 = vld [vmem:[%s165 + $0x8] sm:$0xff]
      %v2064 = vld [vmem:[%s165 + $0x10] sm:$0xf]
      %s2065 = scalar_lea.vmem %s1, 12
      %v2066 = vld [vmem:[%s2065] sm:$0x3]
      %v2070 = vcombine.high %v2062, %v2062
      %v2072 = vunpack.c.l.s4 1983009808
      %v2073 = vunpack.c.0.s8 %v2072
      %v2074 = vlaneseq
      %v2075 = vshrl.u32 %v2074, 7
      %v2076 = vsub.s32 %v2073, %v2075
      %v2077 = vrot.slane %v2062, %v2076
      %v2079 = vunpack.c.l.s4 1983009808
      %v2080 = vunpack.c.0.s8 %v2079
      %v2081 = vlaneseq
      %v2082 = vshrl.u32 %v2081, 7
      %v2083 = vsub.s32 %v2080, %v2082
      %v2084 = vrot.slane %v2070, %v2083
      %v2085 = vcombine.high %v2077, %v2077
      %v2086 = vcombine.high %v2084, %v2084
      %v2087 = vcombine.high %v2063, %v2063
      %v2089 = vunpack.c.l.s4 1983009808
      %v2090 = vunpack.c.0.s8 %v2089
      %v2091 = vlaneseq
      %v2092 = vshrl.u32 %v2091, 7
      %v2093 = vsub.s32 %v2090, %v2092
      %v2094 = vrot.slane %v2063, %v2093
      %v2096 = vunpack.c.l.s4 1983009808
      %v2097 = vunpack.c.0.s8 %v2096
      %v2098 = vlaneseq
      %v2099 = vshrl.u32 %v2098, 7
      %v2100 = vsub.s32 %v2097, %v2099
      %v2101 = vrot.slane %v2087, %v2100
      %v2102 = vcombine.high %v2094, %v2094
      %v2103 = vcombine.high %v2101, %v2101
      %v2105 = vunpack.c.l.s4 1983009808
      %v2106 = vunpack.c.0.s8 %v2105
      %v2107 = vlaneseq
      %v2108 = vshrl.u32 %v2107, 7
      %v2109 = vsub.s32 %v2106, %v2108
      %v2110 = vrot.slane %v2064, %v2109
      %v2111 = vcombine.high %v2110, %v2110
      %2112 = vrot.lane.b32.xlu0 %v2077, 90
      %v2113 = vpop.permute.xlu0 %2112
      %2114 = vrot.lane.b32.xlu0 %v2085, 90
      %v2115 = vpop.permute.xlu0 %2114
      %2116 = vrot.lane.b32.xlu0 %v2084, 90
      %v2117 = vpop.permute.xlu0 %2116
      %2118 = vrot.lane.b32.xlu0 %v2086, 90
      %v2119 = vpop.permute.xlu0 %2118
      %2120 = vrot.lane.b32.xlu0 %v2094, 90
      %v2121 = vpop.permute.xlu0 %2120
      %2122 = vrot.lane.b32.xlu0 %v2102, 90
      %v2123 = vpop.permute.xlu0 %2122
      %2124 = vrot.lane.b32.xlu0 %v2101, 90
      %v2125 = vpop.permute.xlu0 %2124
      %2126 = vrot.lane.b32.xlu0 %v2103, 90
      %v2127 = vpop.permute.xlu0 %2126
      %2128 = vrot.lane.b32.xlu0 %v2110, 90
      %v2129 = vpop.permute.xlu0 %2128
      %2130 = vrot.lane.b32.xlu0 %v2111, 90
      %v2131 = vpop.permute.xlu0 %2130
      %vm2132 = vcmask 736256
      %v2133 = vsel %vm2132, %v2113, %v2115
      %v2134 = vsel %vm2132, %v2115, %v2117
      %v2135 = vsel %vm2132, %v2117, %v2119
      %v2136 = vsel %vm2132, %v2119, %v2121
      %v2137 = vsel %vm2132, %v2121, %v2123
      %v2138 = vsel %vm2132, %v2123, %v2125
      %v2139 = vsel %vm2132, %v2125, %v2127
      %v2140 = vsel %vm2132, %v2127, %v2129
      %v2141 = vsel %vm2132, %v2129, %v2131
      %v2143 = vsel %vm256, %v2066, 0
      %v2146 = vsel %vm260, %v2133, 0
      %v2149 = vsel %vm260, %v2134, 0
      %v2152 = vsel %vm260, %v2135, 0
      %v2155 = vsel %vm260, %v2136, 0
      %v2158 = vsel %vm260, %v2137, 0
      %v2161 = vsel %vm260, %v2138, 0
      %v2164 = vsel %vm260, %v2139, 0
      %v2167 = vsel %vm260, %v2140, 0
      %v2170 = vsel %vm260, %v2141, 0
      %2172 = vmatprep.subr.bf16.mxu0 %v2149
      %2173 = vmatpush1.bf16.msra.mxu0 %v2146
      %2174 = vmatprep.subr.bf16.mxu0 0
      %2175 = vmatpush1.bf16.msra.mxu0 0
      %2176 = vmatprep.subr.bf16.mxu0 0
      %2177 = vmatpush1.bf16.msra.mxu0 0
      %2178 = vmatprep.subr.bf16.mxu0 0
      %2179 = vmatpush1.bf16.msra.mxu0 0
      %2180 = vmatprep.subr.bf16.mxu0 0
      %2181 = vmatpush1.bf16.msra.mxu0 0
      %2182 = vmatprep.subr.bf16.mxu0 0
      %2183 = vmatpush1.bf16.msra.mxu0 0
      %2184 = vmatprep.subr.bf16.mxu0 0
      %2185 = vmatpush1.bf16.msra.mxu0 0
      %2186 = vmatprep.subr.bf16.mxu0 0
      %2187 = vmatpush1.bf16.msra.mxu0 0
      %2188 = vmatprep.subr.bf16.mxu0 0
      %2189 = vmatpush1.bf16.msra.mxu0 0
      %2190 = vmatprep.subr.bf16.mxu0 0
      %2191 = vmatpush1.bf16.msra.mxu0 0
      %2192 = vmatprep.subr.bf16.mxu0 0
      %2193 = vmatpush1.bf16.msra.mxu0 0
      %2194 = vmatprep.subr.bf16.mxu0 0
      %2195 = vmatpush1.bf16.msra.mxu0 0
      %2196 = vmatprep.subr.bf16.mxu0 0
      %2197 = vmatpush1.bf16.msra.mxu0 0
      %2198 = vmatprep.subr.bf16.mxu0 0
      %2199 = vmatpush1.bf16.msra.mxu0 0
      %2200 = vmatprep.subr.bf16.mxu0 0
      %2201 = vmatpush1.bf16.msra.mxu0 0
      %2202 = vmatprep.subr.bf16.mxu0 0
      %2203 = vmatpush1.bf16.msra.mxu0 0
      %2204 = vmatprep.mubr.bf16.mxu0 0
      %2205 = vmatmul.mubr.bf16.gmra.mrb[0].mxu0 %v2143
      %v2206 = vpop.f32.mrb[0].mxu0
      %v2207 = vadd.f32 0.0, %v2206
      %v2208 = vpop.f32.mrb[0].mxu0
      %v2209 = vadd.f32 0.0, %v2208
      %v2210 = vpop.f32.mrb[0].mxu0
      %v2211 = vpop.f32.mrb[0].mxu0
      %2212 = vdwg.mxu0
      %2213 = vmatprep.subr.bf16.mxu0 %v2155
      %2214 = vmatpush1.bf16.msra.mxu0 %v2152
      %2215 = vmatprep.subr.bf16.mxu0 0
      %2216 = vmatpush1.bf16.msra.mxu0 0
      %2217 = vmatprep.subr.bf16.mxu0 0
      %2218 = vmatpush1.bf16.msra.mxu0 0
      %2219 = vmatprep.subr.bf16.mxu0 0
      %2220 = vmatpush1.bf16.msra.mxu0 0
      %2221 = vmatprep.subr.bf16.mxu0 0
      %2222 = vmatpush1.bf16.msra.mxu0 0
      %2223 = vmatprep.subr.bf16.mxu0 0
      %2224 = vmatpush1.bf16.msra.mxu0 0
      %2225 = vmatprep.subr.bf16.mxu0 0
      %2226 = vmatpush1.bf16.msra.mxu0 0
      %2227 = vmatprep.subr.bf16.mxu0 0
      %2228 = vmatpush1.bf16.msra.mxu0 0
      %2229 = vmatprep.subr.bf16.mxu0 0
      %2230 = vmatpush1.bf16.msra.mxu0 0
      %2231 = vmatprep.subr.bf16.mxu0 0
      %2232 = vmatpush1.bf16.msra.mxu0 0
      %2233 = vmatprep.subr.bf16.mxu0 0
      %2234 = vmatpush1.bf16.msra.mxu0 0
      %2235 = vmatprep.subr.bf16.mxu0 0
      %2236 = vmatpush1.bf16.msra.mxu0 0
      %2237 = vmatprep.subr.bf16.mxu0 0
      %2238 = vmatpush1.bf16.msra.mxu0 0
      %2239 = vmatprep.subr.bf16.mxu0 0
      %2240 = vmatpush1.bf16.msra.mxu0 0
      %2241 = vmatprep.subr.bf16.mxu0 0
      %2242 = vmatpush1.bf16.msra.mxu0 0
      %2243 = vmatprep.subr.bf16.mxu0 0
      %2244 = vmatpush1.bf16.msra.mxu0 0
      %2245 = vmatprep.mubr.bf16.mxu0 0
      %2246 = vmatmul.mubr.bf16.gmra.mrb[0].mxu0 %v2143
      %v2247 = vpop.f32.mrb[0].mxu0
      %v2248 = vadd.f32 0.0, %v2247
      %v2249 = vpop.f32.mrb[0].mxu0
      %v2250 = vadd.f32 0.0, %v2249
      %v2251 = vpop.f32.mrb[0].mxu0
      %v2252 = vpop.f32.mrb[0].mxu0
      %2253 = vdwg.mxu0
      %2254 = vmatprep.subr.bf16.mxu0 %v2161
      %2255 = vmatpush1.bf16.msra.mxu0 %v2158
      %2256 = vmatprep.subr.bf16.mxu0 0
      %2257 = vmatpush1.bf16.msra.mxu0 0
      %2258 = vmatprep.subr.bf16.mxu0 0
      %2259 = vmatpush1.bf16.msra.mxu0 0
      %2260 = vmatprep.subr.bf16.mxu0 0
      %2261 = vmatpush1.bf16.msra.mxu0 0
      %2262 = vmatprep.subr.bf16.mxu0 0
      %2263 = vmatpush1.bf16.msra.mxu0 0
      %2264 = vmatprep.subr.bf16.mxu0 0
      %2265 = vmatpush1.bf16.msra.mxu0 0
      %2266 = vmatprep.subr.bf16.mxu0 0
      %2267 = vmatpush1.bf16.msra.mxu0 0
      %2268 = vmatprep.subr.bf16.mxu0 0
      %2269 = vmatpush1.bf16.msra.mxu0 0
      %2270 = vmatprep.subr.bf16.mxu0 0
      %2271 = vmatpush1.bf16.msra.mxu0 0
      %2272 = vmatprep.subr.bf16.mxu0 0
      %2273 = vmatpush1.bf16.msra.mxu0 0
      %2274 = vmatprep.subr.bf16.mxu0 0
      %2275 = vmatpush1.bf16.msra.mxu0 0
      %2276 = vmatprep.subr.bf16.mxu0 0
      %2277 = vmatpush1.bf16.msra.mxu0 0
      %2278 = vmatprep.subr.bf16.mxu0 0
      %2279 = vmatpush1.bf16.msra.mxu0 0
      %2280 = vmatprep.subr.bf16.mxu0 0
      %2281 = vmatpush1.bf16.msra.mxu0 0
      %2282 = vmatprep.subr.bf16.mxu0 0
      %2283 = vmatpush1.bf16.msra.mxu0 0
      %2284 = vmatprep.subr.bf16.mxu0 0
      %2285 = vmatpush1.bf16.msra.mxu0 0
      %2286 = vmatprep.mubr.bf16.mxu0 0
      %2287 = vmatmul.mubr.bf16.gmra.mrb[0].mxu0 %v2143
      %v2288 = vpop.f32.mrb[0].mxu0
      %v2289 = vadd.f32 0.0, %v2288
      %v2290 = vpop.f32.mrb[0].mxu0
      %v2291 = vadd.f32 0.0, %v2290
      %v2292 = vpop.f32.mrb[0].mxu0
      %v2293 = vpop.f32.mrb[0].mxu0
      %2294 = vdwg.mxu0
      %2295 = vmatprep.subr.bf16.mxu0 %v2167
      %2296 = vmatpush1.bf16.msra.mxu0 %v2164
      %2297 = vmatprep.subr.bf16.mxu0 0
      %2298 = vmatpush1.bf16.msra.mxu0 0
      %2299 = vmatprep.subr.bf16.mxu0 0
      %2300 = vmatpush1.bf16.msra.mxu0 0
      %2301 = vmatprep.subr.bf16.mxu0 0
      %2302 = vmatpush1.bf16.msra.mxu0 0
      %2303 = vmatprep.subr.bf16.mxu0 0
      %2304 = vmatpush1.bf16.msra.mxu0 0
      %2305 = vmatprep.subr.bf16.mxu0 0
      %2306 = vmatpush1.bf16.msra.mxu0 0
      %2307 = vmatprep.subr.bf16.mxu0 0
      %2308 = vmatpush1.bf16.msra.mxu0 0
      %2309 = vmatprep.subr.bf16.mxu0 0
      %2310 = vmatpush1.bf16.msra.mxu0 0
      %2311 = vmatprep.subr.bf16.mxu0 0
      %2312 = vmatpush1.bf16.msra.mxu0 0
      %2313 = vmatprep.subr.bf16.mxu0 0
      %2314 = vmatpush1.bf16.msra.mxu0 0
      %2315 = vmatprep.subr.bf16.mxu0 0
      %2316 = vmatpush1.bf16.msra.mxu0 0
      %2317 = vmatprep.subr.bf16.mxu0 0
      %2318 = vmatpush1.bf16.msra.mxu0 0
      %2319 = vmatprep.subr.bf16.mxu0 0
      %2320 = vmatpush1.bf16.msra.mxu0 0
      %2321 = vmatprep.subr.bf16.mxu0 0
      %2322 = vmatpush1.bf16.msra.mxu0 0
      %2323 = vmatprep.subr.bf16.mxu0 0
      %2324 = vmatpush1.bf16.msra.mxu0 0
      %2325 = vmatprep.subr.bf16.mxu0 0
      %2326 = vmatpush1.bf16.msra.mxu0 0
      %2327 = vmatprep.mubr.bf16.mxu0 0
      %2328 = vmatmul.mubr.bf16.gmra.mrb[0].mxu0 %v2143
      %v2329 = vpop.f32.mrb[0].mxu0
      %v2330 = vadd.f32 0.0, %v2329
      %v2331 = vpop.f32.mrb[0].mxu0
      %v2332 = vadd.f32 0.0, %v2331
      %v2333 = vpop.f32.mrb[0].mxu0
      %v2334 = vpop.f32.mrb[0].mxu0
      %2335 = vdwg.mxu0
      %2336 = vmatprep.subr.bf16.mxu0 0
      %2337 = vmatpush1.bf16.msra.mxu0 %v2170
      %2338 = vmatprep.subr.bf16.mxu0 0
      %2339 = vmatpush1.bf16.msra.mxu0 0
      %2340 = vmatprep.subr.bf16.mxu0 0
      %2341 = vmatpush1.bf16.msra.mxu0 0
      %2342 = vmatprep.subr.bf16.mxu0 0
      %2343 = vmatpush1.bf16.msra.mxu0 0
      %2344 = vmatprep.subr.bf16.mxu0 0
      %2345 = vmatpush1.bf16.msra.mxu0 0
      %2346 = vmatprep.subr.bf16.mxu0 0
      %2347 = vmatpush1.bf16.msra.mxu0 0
      %2348 = vmatprep.subr.bf16.mxu0 0
      %2349 = vmatpush1.bf16.msra.mxu0 0
      %2350 = vmatprep.subr.bf16.mxu0 0
      %2351 = vmatpush1.bf16.msra.mxu0 0
      %2352 = vmatprep.subr.bf16.mxu0 0
      %2353 = vmatpush1.bf16.msra.mxu0 0
      %2354 = vmatprep.subr.bf16.mxu0 0
      %2355 = vmatpush1.bf16.msra.mxu0 0
      %2356 = vmatprep.subr.bf16.mxu0 0
      %2357 = vmatpush1.bf16.msra.mxu0 0
      %2358 = vmatprep.subr.bf16.mxu0 0
      %2359 = vmatpush1.bf16.msra.mxu0 0
      %2360 = vmatprep.subr.bf16.mxu0 0
      %2361 = vmatpush1.bf16.msra.mxu0 0
      %2362 = vmatprep.subr.bf16.mxu0 0
      %2363 = vmatpush1.bf16.msra.mxu0 0
      %2364 = vmatprep.subr.bf16.mxu0 0
      %2365 = vmatpush1.bf16.msra.mxu0 0
      %2366 = vmatprep.subr.bf16.mxu0 0
      %2367 = vmatpush1.bf16.msra.mxu0 0
      %2368 = vmatprep.mubr.bf16.mxu0 0
      %2369 = vmatmul.mubr.bf16.gmra.mrb[0].mxu0 %v2143
      %v2370 = vpop.f32.mrb[0].mxu0
      %v2371 = vadd.f32 0.0, %v2370
      %v2372 = vpop.f32.mrb[0].mxu0
      %v2373 = vpop.f32.mrb[0].mxu0
      %v2374 = vpop.f32.mrb[0].mxu0
      %2375 = vdwg.mxu0
      %v2376 = vadd.f32 %v2053, %v2207
      %v2377 = vadd.f32 %v2054, %v2209
      %v2378 = vadd.f32 %v2055, %v2248
      %v2379 = vadd.f32 %v2056, %v2250
      %v2380 = vadd.f32 %v2057, %v2289
      %v2381 = vadd.f32 %v2058, %v2291
      %v2382 = vadd.f32 %v2059, %v2330
      %v2383 = vadd.f32 %v2060, %v2332
      %v2384 = vadd.f32 %v2061, %v2371
      %v2385 = vld [vmem:[%s165] sm:$0xff]
      %v2386 = vld [vmem:[%s165 + $0x8] sm:$0xff]
      %v2387 = vld [vmem:[%s165 + $0x10] sm:$0xf]
      %s2388 = scalar_lea.vmem %s1, 14
      %v2389 = vld [vmem:[%s2388] sm:$0x3]
      %v2393 = vcombine.high %v2385, %v2385
      %v2395 = vunpack.c.l.s4 1983009808
      %v2396 = vunpack.c.0.s8 %v2395
      %v2397 = vlaneseq
      %v2398 = vshrl.u32 %v2397, 7
      %v2399 = vsub.s32 %v2396, %v2398
      %v2400 = vrot.slane %v2385, %v2399
      %v2402 = vunpack.c.l.s4 1983009808
      %v2403 = vunpack.c.0.s8 %v2402
      %v2404 = vlaneseq
      %v2405 = vshrl.u32 %v2404, 7
      %v2406 = vsub.s32 %v2403, %v2405
      %v2407 = vrot.slane %v2393, %v2406
      %v2408 = vcombine.high %v2400, %v2400
      %v2409 = vcombine.high %v2407, %v2407
      %v2410 = vcombine.high %v2386, %v2386
      %v2412 = vunpack.c.l.s4 1983009808
      %v2413 = vunpack.c.0.s8 %v2412
      %v2414 = vlaneseq
      %v2415 = vshrl.u32 %v2414, 7
      %v2416 = vsub.s32 %v2413, %v2415
      %v2417 = vrot.slane %v2386, %v2416
      %v2419 = vunpack.c.l.s4 1983009808
      %v2420 = vunpack.c.0.s8 %v2419
      %v2421 = vlaneseq
      %v2422 = vshrl.u32 %v2421, 7
      %v2423 = vsub.s32 %v2420, %v2422
      %v2424 = vrot.slane %v2410, %v2423
      %v2425 = vcombine.high %v2417, %v2417
      %v2426 = vcombine.high %v2424, %v2424
      %v2428 = vunpack.c.l.s4 1983009808
      %v2429 = vunpack.c.0.s8 %v2428
      %v2430 = vlaneseq
      %v2431 = vshrl.u32 %v2430, 7
      %v2432 = vsub.s32 %v2429, %v2431
      %v2433 = vrot.slane %v2387, %v2432
      %v2434 = vcombine.high %v2433, %v2433
      %2435 = vrot.lane.b32.xlu0 %v2400, 89
      %v2436 = vpop.permute.xlu0 %2435
      %2437 = vrot.lane.b32.xlu0 %v2408, 89
      %v2438 = vpop.permute.xlu0 %2437
      %2439 = vrot.lane.b32.xlu0 %v2407, 89
      %v2440 = vpop.permute.xlu0 %2439
      %2441 = vrot.lane.b32.xlu0 %v2409, 89
      %v2442 = vpop.permute.xlu0 %2441
      %2443 = vrot.lane.b32.xlu0 %v2417, 89
      %v2444 = vpop.permute.xlu0 %2443
      %2445 = vrot.lane.b32.xlu0 %v2425, 89
      %v2446 = vpop.permute.xlu0 %2445
      %2447 = vrot.lane.b32.xlu0 %v2424, 89
      %v2448 = vpop.permute.xlu0 %2447
      %2449 = vrot.lane.b32.xlu0 %v2426, 89
      %v2450 = vpop.permute.xlu0 %2449
      %2451 = vrot.lane.b32.xlu0 %v2433, 89
      %v2452 = vpop.permute.xlu0 %2451
      %2453 = vrot.lane.b32.xlu0 %v2434, 89
      %v2454 = vpop.permute.xlu0 %2453
      %vm2455 = vcmask 728064
      %v2456 = vsel %vm2455, %v2436, %v2438
      %v2457 = vsel %vm2455, %v2438, %v2440
      %v2458 = vsel %vm2455, %v2440, %v2442
      %v2459 = vsel %vm2455, %v2442, %v2444
      %v2460 = vsel %vm2455, %v2444, %v2446
      %v2461 = vsel %vm2455, %v2446, %v2448
      %v2462 = vsel %vm2455, %v2448, %v2450
      %v2463 = vsel %vm2455, %v2450, %v2452
      %v2464 = vsel %vm2455, %v2452, %v2454
      %v2466 = vsel %vm256, %v2389, 0
      %v2469 = vsel %vm260, %v2456, 0
      %v2472 = vsel %vm260, %v2457, 0
      %v2475 = vsel %vm260, %v2458, 0
      %v2478 = vsel %vm260, %v2459, 0
      %v2481 = vsel %vm260, %v2460, 0
      %v2484 = vsel %vm260, %v2461, 0
      %v2487 = vsel %vm260, %v2462, 0
      %v2490 = vsel %vm260, %v2463, 0
      %v2493 = vsel %vm260, %v2464, 0
      %2495 = vmatprep.subr.bf16.mxu0 %v2472
      %2496 = vmatpush1.bf16.msra.mxu0 %v2469
      %2497 = vmatprep.subr.bf16.mxu0 0
      %2498 = vmatpush1.bf16.msra.mxu0 0
      %2499 = vmatprep.subr.bf16.mxu0 0
      %2500 = vmatpush1.bf16.msra.mxu0 0
      %2501 = vmatprep.subr.bf16.mxu0 0
      %2502 = vmatpush1.bf16.msra.mxu0 0
      %2503 = vmatprep.subr.bf16.mxu0 0
      %2504 = vmatpush1.bf16.msra.mxu0 0
      %2505 = vmatprep.subr.bf16.mxu0 0
      %2506 = vmatpush1.bf16.msra.mxu0 0
      %2507 = vmatprep.subr.bf16.mxu0 0
      %2508 = vmatpush1.bf16.msra.mxu0 0
      %2509 = vmatprep.subr.bf16.mxu0 0
      %2510 = vmatpush1.bf16.msra.mxu0 0
      %2511 = vmatprep.subr.bf16.mxu0 0
      %2512 = vmatpush1.bf16.msra.mxu0 0
      %2513 = vmatprep.subr.bf16.mxu0 0
      %2514 = vmatpush1.bf16.msra.mxu0 0
      %2515 = vmatprep.subr.bf16.mxu0 0
      %2516 = vmatpush1.bf16.msra.mxu0 0
      %2517 = vmatprep.subr.bf16.mxu0 0
      %2518 = vmatpush1.bf16.msra.mxu0 0
      %2519 = vmatprep.subr.bf16.mxu0 0
      %2520 = vmatpush1.bf16.msra.mxu0 0
      %2521 = vmatprep.subr.bf16.mxu0 0
      %2522 = vmatpush1.bf16.msra.mxu0 0
      %2523 = vmatprep.subr.bf16.mxu0 0
      %2524 = vmatpush1.bf16.msra.mxu0 0
      %2525 = vmatprep.subr.bf16.mxu0 0
      %2526 = vmatpush1.bf16.msra.mxu0 0
      %2527 = vmatprep.mubr.bf16.mxu0 0
      %2528 = vmatmul.mubr.bf16.gmra.mrb[0].mxu0 %v2466
      %v2529 = vpop.f32.mrb[0].mxu0
      %v2530 = vadd.f32 0.0, %v2529
      %v2531 = vpop.f32.mrb[0].mxu0
      %v2532 = vadd.f32 0.0, %v2531
      %v2533 = vpop.f32.mrb[0].mxu0
      %v2534 = vpop.f32.mrb[0].mxu0
      %2535 = vdwg.mxu0
      %2536 = vmatprep.subr.bf16.mxu0 %v2478
      %2537 = vmatpush1.bf16.msra.mxu0 %v2475
      %2538 = vmatprep.subr.bf16.mxu0 0
      %2539 = vmatpush1.bf16.msra.mxu0 0
      %2540 = vmatprep.subr.bf16.mxu0 0
      %2541 = vmatpush1.bf16.msra.mxu0 0
      %2542 = vmatprep.subr.bf16.mxu0 0
      %2543 = vmatpush1.bf16.msra.mxu0 0
      %2544 = vmatprep.subr.bf16.mxu0 0
      %2545 = vmatpush1.bf16.msra.mxu0 0
      %2546 = vmatprep.subr.bf16.mxu0 0
      %2547 = vmatpush1.bf16.msra.mxu0 0
      %2548 = vmatprep.subr.bf16.mxu0 0
      %2549 = vmatpush1.bf16.msra.mxu0 0
      %2550 = vmatprep.subr.bf16.mxu0 0
      %2551 = vmatpush1.bf16.msra.mxu0 0
      %2552 = vmatprep.subr.bf16.mxu0 0
      %2553 = vmatpush1.bf16.msra.mxu0 0
      %2554 = vmatprep.subr.bf16.mxu0 0
      %2555 = vmatpush1.bf16.msra.mxu0 0
      %2556 = vmatprep.subr.bf16.mxu0 0
      %2557 = vmatpush1.bf16.msra.mxu0 0
      %2558 = vmatprep.subr.bf16.mxu0 0
      %2559 = vmatpush1.bf16.msra.mxu0 0
      %2560 = vmatprep.subr.bf16.mxu0 0
      %2561 = vmatpush1.bf16.msra.mxu0 0
      %2562 = vmatprep.subr.bf16.mxu0 0
      %2563 = vmatpush1.bf16.msra.mxu0 0
      %2564 = vmatprep.subr.bf16.mxu0 0
      %2565 = vmatpush1.bf16.msra.mxu0 0
      %2566 = vmatprep.subr.bf16.mxu0 0
      %2567 = vmatpush1.bf16.msra.mxu0 0
      %2568 = vmatprep.mubr.bf16.mxu0 0
      %2569 = vmatmul.mubr.bf16.gmra.mrb[0].mxu0 %v2466
      %v2570 = vpop.f32.mrb[0].mxu0
      %v2571 = vadd.f32 0.0, %v2570
      %v2572 = vpop.f32.mrb[0].mxu0
      %v2573 = vadd.f32 0.0, %v2572
      %v2574 = vpop.f32.mrb[0].mxu0
      %v2575 = vpop.f32.mrb[0].mxu0
      %2576 = vdwg.mxu0
      %2577 = vmatprep.subr.bf16.mxu0 %v2484
      %2578 = vmatpush1.bf16.msra.mxu0 %v2481
      %2579 = vmatprep.subr.bf16.mxu0 0
      %2580 = vmatpush1.bf16.msra.mxu0 0
      %2581 = vmatprep.subr.bf16.mxu0 0
      %2582 = vmatpush1.bf16.msra.mxu0 0
      %2583 = vmatprep.subr.bf16.mxu0 0
      %2584 = vmatpush1.bf16.msra.mxu0 0
      %2585 = vmatprep.subr.bf16.mxu0 0
      %2586 = vmatpush1.bf16.msra.mxu0 0
      %2587 = vmatprep.subr.bf16.mxu0 0
      %2588 = vmatpush1.bf16.msra.mxu0 0
      %2589 = vmatprep.subr.bf16.mxu0 0
      %2590 = vmatpush1.bf16.msra.mxu0 0
      %2591 = vmatprep.subr.bf16.mxu0 0
      %2592 = vmatpush1.bf16.msra.mxu0 0
      %2593 = vmatprep.subr.bf16.mxu0 0
      %2594 = vmatpush1.bf16.msra.mxu0 0
      %2595 = vmatprep.subr.bf16.mxu0 0
      %2596 = vmatpush1.bf16.msra.mxu0 0
      %2597 = vmatprep.subr.bf16.mxu0 0
      %2598 = vmatpush1.bf16.msra.mxu0 0
      %2599 = vmatprep.subr.bf16.mxu0 0
      %2600 = vmatpush1.bf16.msra.mxu0 0
      %2601 = vmatprep.subr.bf16.mxu0 0
      %2602 = vmatpush1.bf16.msra.mxu0 0
      %2603 = vmatprep.subr.bf16.mxu0 0
      %2604 = vmatpush1.bf16.msra.mxu0 0
      %2605 = vmatprep.subr.bf16.mxu0 0
      %2606 = vmatpush1.bf16.msra.mxu0 0
      %2607 = vmatprep.subr.bf16.mxu0 0
      %2608 = vmatpush1.bf16.msra.mxu0 0
      %2609 = vmatprep.mubr.bf16.mxu0 0
      %2610 = vmatmul.mubr.bf16.gmra.mrb[0].mxu0 %v2466
      %v2611 = vpop.f32.mrb[0].mxu0
      %v2612 = vadd.f32 0.0, %v2611
      %v2613 = vpop.f32.mrb[0].mxu0
      %v2614 = vadd.f32 0.0, %v2613
      %v2615 = vpop.f32.mrb[0].mxu0
      %v2616 = vpop.f32.mrb[0].mxu0
      %2617 = vdwg.mxu0
      %2618 = vmatprep.subr.bf16.mxu0 %v2490
      %2619 = vmatpush1.bf16.msra.mxu0 %v2487
      %2620 = vmatprep.subr.bf16.mxu0 0
      %2621 = vmatpush1.bf16.msra.mxu0 0
      %2622 = vmatprep.subr.bf16.mxu0 0
      %2623 = vmatpush1.bf16.msra.mxu0 0
      %2624 = vmatprep.subr.bf16.mxu0 0
      %2625 = vmatpush1.bf16.msra.mxu0 0
      %2626 = vmatprep.subr.bf16.mxu0 0
      %2627 = vmatpush1.bf16.msra.mxu0 0
      %2628 = vmatprep.subr.bf16.mxu0 0
      %2629 = vmatpush1.bf16.msra.mxu0 0
      %2630 = vmatprep.subr.bf16.mxu0 0
      %2631 = vmatpush1.bf16.msra.mxu0 0
      %2632 = vmatprep.subr.bf16.mxu0 0
      %2633 = vmatpush1.bf16.msra.mxu0 0
      %2634 = vmatprep.subr.bf16.mxu0 0
      %2635 = vmatpush1.bf16.msra.mxu0 0
      %2636 = vmatprep.subr.bf16.mxu0 0
      %2637 = vmatpush1.bf16.msra.mxu0 0
      %2638 = vmatprep.subr.bf16.mxu0 0
      %2639 = vmatpush1.bf16.msra.mxu0 0
      %2640 = vmatprep.subr.bf16.mxu0 0
      %2641 = vmatpush1.bf16.msra.mxu0 0
      %2642 = vmatprep.subr.bf16.mxu0 0
      %2643 = vmatpush1.bf16.msra.mxu0 0
      %2644 = vmatprep.subr.bf16.mxu0 0
      %2645 = vmatpush1.bf16.msra.mxu0 0
      %2646 = vmatprep.subr.bf16.mxu0 0
      %2647 = vmatpush1.bf16.msra.mxu0 0
      %2648 = vmatprep.subr.bf16.mxu0 0
      %2649 = vmatpush1.bf16.msra.mxu0 0
      %2650 = vmatprep.mubr.bf16.mxu0 0
      %2651 = vmatmul.mubr.bf16.gmra.mrb[0].mxu0 %v2466
      %v2652 = vpop.f32.mrb[0].mxu0
      %v2653 = vadd.f32 0.0, %v2652
      %v2654 = vpop.f32.mrb[0].mxu0
      %v2655 = vadd.f32 0.0, %v2654
      %v2656 = vpop.f32.mrb[0].mxu0
      %v2657 = vpop.f32.mrb[0].mxu0
      %2658 = vdwg.mxu0
      %2659 = vmatprep.subr.bf16.mxu0 0
      %2660 = vmatpush1.bf16.msra.mxu0 %v2493
      %2661 = vmatprep.subr.bf16.mxu0 0
      %2662 = vmatpush1.bf16.msra.mxu0 0
      %2663 = vmatprep.subr.bf16.mxu0 0
      %2664 = vmatpush1.bf16.msra.mxu0 0
      %2665 = vmatprep.subr.bf16.mxu0 0
      %2666 = vmatpush1.bf16.msra.mxu0 0
      %2667 = vmatprep.subr.bf16.mxu0 0
      %2668 = vmatpush1.bf16.msra.mxu0 0
      %2669 = vmatprep.subr.bf16.mxu0 0
      %2670 = vmatpush1.bf16.msra.mxu0 0
      %2671 = vmatprep.subr.bf16.mxu0 0
      %2672 = vmatpush1.bf16.msra.mxu0 0
      %2673 = vmatprep.subr.bf16.mxu0 0
      %2674 = vmatpush1.bf16.msra.mxu0 0
      %2675 = vmatprep.subr.bf16.mxu0 0
      %2676 = vmatpush1.bf16.msra.mxu0 0
      %2677 = vmatprep.subr.bf16.mxu0 0
      %2678 = vmatpush1.bf16.msra.mxu0 0
      %2679 = vmatprep.subr.bf16.mxu0 0
      %2680 = vmatpush1.bf16.msra.mxu0 0
      %2681 = vmatprep.subr.bf16.mxu0 0
      %2682 = vmatpush1.bf16.msra.mxu0 0
      %2683 = vmatprep.subr.bf16.mxu0 0
      %2684 = vmatpush1.bf16.msra.mxu0 0
      %2685 = vmatprep.subr.bf16.mxu0 0
      %2686 = vmatpush1.bf16.msra.mxu0 0
      %2687 = vmatprep.subr.bf16.mxu0 0
      %2688 = vmatpush1.bf16.msra.mxu0 0
      %2689 = vmatprep.subr.bf16.mxu0 0
      %2690 = vmatpush1.bf16.msra.mxu0 0
      %2691 = vmatprep.mubr.bf16.mxu0 0
      %2692 = vmatmul.mubr.bf16.gmra.mrb[0].mxu0 %v2466
      %v2693 = vpop.f32.mrb[0].mxu0
      %v2694 = vadd.f32 0.0, %v2693
      %v2695 = vpop.f32.mrb[0].mxu0
      %v2696 = vpop.f32.mrb[0].mxu0
      %v2697 = vpop.f32.mrb[0].mxu0
      %2698 = vdwg.mxu0
      %v2699 = vadd.f32 %v2376, %v2530
      %v2700 = vadd.f32 %v2377, %v2532
      %v2701 = vadd.f32 %v2378, %v2571
      %v2702 = vadd.f32 %v2379, %v2573
      %v2703 = vadd.f32 %v2380, %v2612
      %v2704 = vadd.f32 %v2381, %v2614
      %v2705 = vadd.f32 %v2382, %v2653
      %v2706 = vadd.f32 %v2383, %v2655
      %v2707 = vadd.f32 %v2384, %v2694
      %v2708 = vld [vmem:[%s165] sm:$0xff]
      %v2709 = vld [vmem:[%s165 + $0x8] sm:$0xff]
      %v2710 = vld [vmem:[%s165 + $0x10] sm:$0xf]
      %s2711 = scalar_lea.vmem %s1, 16
      %v2712 = vld [vmem:[%s2711] sm:$0x3]
      %v2716 = vcombine.high %v2708, %v2708
      %v2718 = vunpack.c.l.s4 1983009808
      %v2719 = vunpack.c.0.s8 %v2718
      %v2720 = vlaneseq
      %v2721 = vshrl.u32 %v2720, 7
      %v2722 = vsub.s32 %v2719, %v2721
      %v2723 = vrot.slane %v2708, %v2722
      %v2725 = vunpack.c.l.s4 1983009808
      %v2726 = vunpack.c.0.s8 %v2725
      %v2727 = vlaneseq
      %v2728 = vshrl.u32 %v2727, 7
      %v2729 = vsub.s32 %v2726, %v2728
      %v2730 = vrot.slane %v2716, %v2729
      %v2731 = vcombine.high %v2723, %v2723
      %v2732 = vcombine.high %v2730, %v2730
      %v2733 = vcombine.high %v2709, %v2709
      %v2735 = vunpack.c.l.s4 1983009808
      %v2736 = vunpack.c.0.s8 %v2735
      %v2737 = vlaneseq
      %v2738 = vshrl.u32 %v2737, 7
      %v2739 = vsub.s32 %v2736, %v2738
      %v2740 = vrot.slane %v2709, %v2739
      %v2742 = vunpack.c.l.s4 1983009808
      %v2743 = vunpack.c.0.s8 %v2742
      %v2744 = vlaneseq
      %v2745 = vshrl.u32 %v2744, 7
      %v2746 = vsub.s32 %v2743, %v2745
      %v2747 = vrot.slane %v2733, %v2746
      %v2748 = vcombine.high %v2740, %v2740
      %v2749 = vcombine.high %v2747, %v2747
      %v2751 = vunpack.c.l.s4 1983009808
      %v2752 = vunpack.c.0.s8 %v2751
      %v2753 = vlaneseq
      %v2754 = vshrl.u32 %v2753, 7
      %v2755 = vsub.s32 %v2752, %v2754
      %v2756 = vrot.slane %v2710, %v2755
      %v2757 = vcombine.high %v2756, %v2756
      %2758 = vrot.lane.b32.xlu0 %v2723, 56
      %v2759 = vpop.permute.xlu0 %2758
      %2760 = vrot.lane.b32.xlu0 %v2731, 56
      %v2761 = vpop.permute.xlu0 %2760
      %2762 = vrot.lane.b32.xlu0 %v2730, 56
      %v2763 = vpop.permute.xlu0 %2762
      %2764 = vrot.lane.b32.xlu0 %v2732, 56
      %v2765 = vpop.permute.xlu0 %2764
      %2766 = vrot.lane.b32.xlu0 %v2740, 56
      %v2767 = vpop.permute.xlu0 %2766
      %2768 = vrot.lane.b32.xlu0 %v2748, 56
      %v2769 = vpop.permute.xlu0 %2768
      %2770 = vrot.lane.b32.xlu0 %v2747, 56
      %v2771 = vpop.permute.xlu0 %2770
      %2772 = vrot.lane.b32.xlu0 %v2749, 56
      %v2773 = vpop.permute.xlu0 %2772
      %2774 = vrot.lane.b32.xlu0 %v2756, 56
      %v2775 = vpop.permute.xlu0 %2774
      %2776 = vrot.lane.b32.xlu0 %v2757, 56
      %v2777 = vpop.permute.xlu0 %2776
      %vm2778 = vcmask 457728
      %v2779 = vsel %vm2778, %v2759, %v2761
      %v2780 = vsel %vm2778, %v2761, %v2763
      %v2781 = vsel %vm2778, %v2763, %v2765
      %v2782 = vsel %vm2778, %v2765, %v2767
      %v2783 = vsel %vm2778, %v2767, %v2769
      %v2784 = vsel %vm2778, %v2769, %v2771
      %v2785 = vsel %vm2778, %v2771, %v2773
      %v2786 = vsel %vm2778, %v2773, %v2775
      %v2787 = vsel %vm2778, %v2775, %v2777
      %v2789 = vsel %vm256, %v2712, 0
      %v2792 = vsel %vm260, %v2779, 0
      %v2795 = vsel %vm260, %v2780, 0
      %v2798 = vsel %vm260, %v2781, 0
      %v2801 = vsel %vm260, %v2782, 0
      %v2804 = vsel %vm260, %v2783, 0
      %v2807 = vsel %vm260, %v2784, 0
      %v2810 = vsel %vm260, %v2785, 0
      %v2813 = vsel %vm260, %v2786, 0
      %v2816 = vsel %vm260, %v2787, 0
      %2818 = vmatprep.subr.bf16.mxu0 %v2795
      %2819 = vmatpush1.bf16.msra.mxu0 %v2792
      %2820 = vmatprep.subr.bf16.mxu0 0
      %2821 = vmatpush1.bf16.msra.mxu0 0
      %2822 = vmatprep.subr.bf16.mxu0 0
      %2823 = vmatpush1.bf16.msra.mxu0 0
      %2824 = vmatprep.subr.bf16.mxu0 0
      %2825 = vmatpush1.bf16.msra.mxu0 0
      %2826 = vmatprep.subr.bf16.mxu0 0
      %2827 = vmatpush1.bf16.msra.mxu0 0
      %2828 = vmatprep.subr.bf16.mxu0 0
      %2829 = vmatpush1.bf16.msra.mxu0 0
      %2830 = vmatprep.subr.bf16.mxu0 0
      %2831 = vmatpush1.bf16.msra.mxu0 0
      %2832 = vmatprep.subr.bf16.mxu0 0
      %2833 = vmatpush1.bf16.msra.mxu0 0
      %2834 = vmatprep.subr.bf16.mxu0 0
      %2835 = vmatpush1.bf16.msra.mxu0 0
      %2836 = vmatprep.subr.bf16.mxu0 0
      %2837 = vmatpush1.bf16.msra.mxu0 0
      %2838 = vmatprep.subr.bf16.mxu0 0
      %2839 = vmatpush1.bf16.msra.mxu0 0
      %2840 = vmatprep.subr.bf16.mxu0 0
      %2841 = vmatpush1.bf16.msra.mxu0 0
      %2842 = vmatprep.subr.bf16.mxu0 0
      %2843 = vmatpush1.bf16.msra.mxu0 0
      %2844 = vmatprep.subr.bf16.mxu0 0
      %2845 = vmatpush1.bf16.msra.mxu0 0
      %2846 = vmatprep.subr.bf16.mxu0 0
      %2847 = vmatpush1.bf16.msra.mxu0 0
      %2848 = vmatprep.subr.bf16.mxu0 0
      %2849 = vmatpush1.bf16.msra.mxu0 0
      %2850 = vmatprep.mubr.bf16.mxu0 0
      %2851 = vmatmul.mubr.bf16.gmra.mrb[0].mxu0 %v2789
      %v2852 = vpop.f32.mrb[0].mxu0
      %v2853 = vadd.f32 0.0, %v2852
      %v2854 = vpop.f32.mrb[0].mxu0
      %v2855 = vadd.f32 0.0, %v2854
      %v2856 = vpop.f32.mrb[0].mxu0
      %v2857 = vpop.f32.mrb[0].mxu0
      %2858 = vdwg.mxu0
      %2859 = vmatprep.subr.bf16.mxu0 %v2801
      %2860 = vmatpush1.bf16.msra.mxu0 %v2798
      %2861 = vmatprep.subr.bf16.mxu0 0
      %2862 = vmatpush1.bf16.msra.mxu0 0
      %2863 = vmatprep.subr.bf16.mxu0 0
      %2864 = vmatpush1.bf16.msra.mxu0 0
      %2865 = vmatprep.subr.bf16.mxu0 0
      %2866 = vmatpush1.bf16.msra.mxu0 0
      %2867 = vmatprep.subr.bf16.mxu0 0
      %2868 = vmatpush1.bf16.msra.mxu0 0
      %2869 = vmatprep.subr.bf16.mxu0 0
      %2870 = vmatpush1.bf16.msra.mxu0 0
      %2871 = vmatprep.subr.bf16.mxu0 0
      %2872 = vmatpush1.bf16.msra.mxu0 0
      %2873 = vmatprep.subr.bf16.mxu0 0
      %2874 = vmatpush1.bf16.msra.mxu0 0
      %2875 = vmatprep.subr.bf16.mxu0 0
      %2876 = vmatpush1.bf16.msra.mxu0 0
      %2877 = vmatprep.subr.bf16.mxu0 0
      %2878 = vmatpush1.bf16.msra.mxu0 0
      %2879 = vmatprep.subr.bf16.mxu0 0
      %2880 = vmatpush1.bf16.msra.mxu0 0
      %2881 = vmatprep.subr.bf16.mxu0 0
      %2882 = vmatpush1.bf16.msra.mxu0 0
      %2883 = vmatprep.subr.bf16.mxu0 0
      %2884 = vmatpush1.bf16.msra.mxu0 0
      %2885 = vmatprep.subr.bf16.mxu0 0
      %2886 = vmatpush1.bf16.msra.mxu0 0
      %2887 = vmatprep.subr.bf16.mxu0 0
      %2888 = vmatpush1.bf16.msra.mxu0 0
      %2889 = vmatprep.subr.bf16.mxu0 0
      %2890 = vmatpush1.bf16.msra.mxu0 0
      %2891 = vmatprep.mubr.bf16.mxu0 0
      %2892 = vmatmul.mubr.bf16.gmra.mrb[0].mxu0 %v2789
      %v2893 = vpop.f32.mrb[0].mxu0
      %v2894 = vadd.f32 0.0, %v2893
      %v2895 = vpop.f32.mrb[0].mxu0
      %v2896 = vadd.f32 0.0, %v2895
      %v2897 = vpop.f32.mrb[0].mxu0
      %v2898 = vpop.f32.mrb[0].mxu0
      %2899 = vdwg.mxu0
      %2900 = vmatprep.subr.bf16.mxu0 %v2807
      %2901 = vmatpush1.bf16.msra.mxu0 %v2804
      %2902 = vmatprep.subr.bf16.mxu0 0
      %2903 = vmatpush1.bf16.msra.mxu0 0
      %2904 = vmatprep.subr.bf16.mxu0 0
      %2905 = vmatpush1.bf16.msra.mxu0 0
      %2906 = vmatprep.subr.bf16.mxu0 0
      %2907 = vmatpush1.bf16.msra.mxu0 0
      %2908 = vmatprep.subr.bf16.mxu0 0
      %2909 = vmatpush1.bf16.msra.mxu0 0
      %2910 = vmatprep.subr.bf16.mxu0 0
      %2911 = vmatpush1.bf16.msra.mxu0 0
      %2912 = vmatprep.subr.bf16.mxu0 0
      %2913 = vmatpush1.bf16.msra.mxu0 0
      %2914 = vmatprep.subr.bf16.mxu0 0
      %2915 = vmatpush1.bf16.msra.mxu0 0
      %2916 = vmatprep.subr.bf16.mxu0 0
      %2917 = vmatpush1.bf16.msra.mxu0 0
      %2918 = vmatprep.subr.bf16.mxu0 0
      %2919 = vmatpush1.bf16.msra.mxu0 0
      %2920 = vmatprep.subr.bf16.mxu0 0
      %2921 = vmatpush1.bf16.msra.mxu0 0
      %2922 = vmatprep.subr.bf16.mxu0 0
      %2923 = vmatpush1.bf16.msra.mxu0 0
      %2924 = vmatprep.subr.bf16.mxu0 0
      %2925 = vmatpush1.bf16.msra.mxu0 0
      %2926 = vmatprep.subr.bf16.mxu0 0
      %2927 = vmatpush1.bf16.msra.mxu0 0
      %2928 = vmatprep.subr.bf16.mxu0 0
      %2929 = vmatpush1.bf16.msra.mxu0 0
      %2930 = vmatprep.subr.bf16.mxu0 0
      %2931 = vmatpush1.bf16.msra.mxu0 0
      %2932 = vmatprep.mubr.bf16.mxu0 0
      %2933 = vmatmul.mubr.bf16.gmra.mrb[0].mxu0 %v2789
      %v2934 = vpop.f32.mrb[0].mxu0
      %v2935 = vadd.f32 0.0, %v2934
      %v2936 = vpop.f32.mrb[0].mxu0
      %v2937 = vadd.f32 0.0, %v2936
      %v2938 = vpop.f32.mrb[0].mxu0
      %v2939 = vpop.f32.mrb[0].mxu0
      %2940 = vdwg.mxu0
      %2941 = vmatprep.subr.bf16.mxu0 %v2813
      %2942 = vmatpush1.bf16.msra.mxu0 %v2810
      %2943 = vmatprep.subr.bf16.mxu0 0
      %2944 = vmatpush1.bf16.msra.mxu0 0
      %2945 = vmatprep.subr.bf16.mxu0 0
      %2946 = vmatpush1.bf16.msra.mxu0 0
      %2947 = vmatprep.subr.bf16.mxu0 0
      %2948 = vmatpush1.bf16.msra.mxu0 0
      %2949 = vmatprep.subr.bf16.mxu0 0
      %2950 = vmatpush1.bf16.msra.mxu0 0
      %2951 = vmatprep.subr.bf16.mxu0 0
      %2952 = vmatpush1.bf16.msra.mxu0 0
      %2953 = vmatprep.subr.bf16.mxu0 0
      %2954 = vmatpush1.bf16.msra.mxu0 0
      %2955 = vmatprep.subr.bf16.mxu0 0
      %2956 = vmatpush1.bf16.msra.mxu0 0
      %2957 = vmatprep.subr.bf16.mxu0 0
      %2958 = vmatpush1.bf16.msra.mxu0 0
      %2959 = vmatprep.subr.bf16.mxu0 0
      %2960 = vmatpush1.bf16.msra.mxu0 0
      %2961 = vmatprep.subr.bf16.mxu0 0
      %2962 = vmatpush1.bf16.msra.mxu0 0
      %2963 = vmatprep.subr.bf16.mxu0 0
      %2964 = vmatpush1.bf16.msra.mxu0 0
      %2965 = vmatprep.subr.bf16.mxu0 0
      %2966 = vmatpush1.bf16.msra.mxu0 0
      %2967 = vmatprep.subr.bf16.mxu0 0
      %2968 = vmatpush1.bf16.msra.mxu0 0
      %2969 = vmatprep.subr.bf16.mxu0 0
      %2970 = vmatpush1.bf16.msra.mxu0 0
      %2971 = vmatprep.subr.bf16.mxu0 0
      %2972 = vmatpush1.bf16.msra.mxu0 0
      %2973 = vmatprep.mubr.bf16.mxu0 0
      %2974 = vmatmul.mubr.bf16.gmra.mrb[0].mxu0 %v2789
      %v2975 = vpop.f32.mrb[0].mxu0
      %v2976 = vadd.f32 0.0, %v2975
      %v2977 = vpop.f32.mrb[0].mxu0
      %v2978 = vadd.f32 0.0, %v2977
      %v2979 = vpop.f32.mrb[0].mxu0
      %v2980 = vpop.f32.mrb[0].mxu0
      %2981 = vdwg.mxu0
      %2982 = vmatprep.subr.bf16.mxu0 0
      %2983 = vmatpush1.bf16.msra.mxu0 %v2816
      %2984 = vmatprep.subr.bf16.mxu0 0
      %2985 = vmatpush1.bf16.msra.mxu0 0
      %2986 = vmatprep.subr.bf16.mxu0 0
      %2987 = vmatpush1.bf16.msra.mxu0 0
      %2988 = vmatprep.subr.bf16.mxu0 0
      %2989 = vmatpush1.bf16.msra.mxu0 0
      %2990 = vmatprep.subr.bf16.mxu0 0
      %2991 = vmatpush1.bf16.msra.mxu0 0
      %2992 = vmatprep.subr.bf16.mxu0 0
      %2993 = vmatpush1.bf16.msra.mxu0 0
      %2994 = vmatprep.subr.bf16.mxu0 0
      %2995 = vmatpush1.bf16.msra.mxu0 0
      %2996 = vmatprep.subr.bf16.mxu0 0
      %2997 = vmatpush1.bf16.msra.mxu0 0
      %2998 = vmatprep.subr.bf16.mxu0 0
      %2999 = vmatpush1.bf16.msra.mxu0 0
      %3000 = vmatprep.subr.bf16.mxu0 0
      %3001 = vmatpush1.bf16.msra.mxu0 0
      %3002 = vmatprep.subr.bf16.mxu0 0
      %3003 = vmatpush1.bf16.msra.mxu0 0
      %3004 = vmatprep.subr.bf16.mxu0 0
      %3005 = vmatpush1.bf16.msra.mxu0 0
      %3006 = vmatprep.subr.bf16.mxu0 0
      %3007 = vmatpush1.bf16.msra.mxu0 0
      %3008 = vmatprep.subr.bf16.mxu0 0
      %3009 = vmatpush1.bf16.msra.mxu0 0
      %3010 = vmatprep.subr.bf16.mxu0 0
      %3011 = vmatpush1.bf16.msra.mxu0 0
      %3012 = vmatprep.subr.bf16.mxu0 0
      %3013 = vmatpush1.bf16.msra.mxu0 0
      %3014 = vmatprep.mubr.bf16.mxu0 0
      %3015 = vmatmul.mubr.bf16.gmra.mrb[0].mxu0 %v2789
      %v3016 = vpop.f32.mrb[0].mxu0
      %v3017 = vadd.f32 0.0, %v3016
      %v3018 = vpop.f32.mrb[0].mxu0
      %v3019 = vpop.f32.mrb[0].mxu0
      %v3020 = vpop.f32.mrb[0].mxu0
      %3021 = vdwg.mxu0
      %v3022 = vadd.f32 %v2699, %v2853
      %v3023 = vadd.f32 %v2700, %v2855
      %v3024 = vadd.f32 %v2701, %v2894
      %v3025 = vadd.f32 %v2702, %v2896
      %v3026 = vadd.f32 %v2703, %v2935
      %v3027 = vadd.f32 %v2704, %v2937
      %v3028 = vadd.f32 %v2705, %v2976
      %v3029 = vadd.f32 %v2706, %v2978
      %v3030 = vadd.f32 %v2707, %v3017
      %v3031 = vld [vmem:[%s165] sm:$0xff]
      %v3032 = vld [vmem:[%s165 + $0x8] sm:$0xff]
      %v3033 = vld [vmem:[%s165 + $0x10] sm:$0xf]
      %s3034 = scalar_lea.vmem %s1, 18
      %v3035 = vld [vmem:[%s3034] sm:$0x3]
      %v3039 = vcombine.high %v3031, %v3031
      %v3041 = vunpack.c.l.s4 1983009808
      %v3042 = vunpack.c.0.s8 %v3041
      %v3043 = vlaneseq
      %v3044 = vshrl.u32 %v3043, 7
      %v3045 = vsub.s32 %v3042, %v3044
      %v3046 = vrot.slane %v3031, %v3045
      %v3048 = vunpack.c.l.s4 1983009808
      %v3049 = vunpack.c.0.s8 %v3048
      %v3050 = vlaneseq
      %v3051 = vshrl.u32 %v3050, 7
      %v3052 = vsub.s32 %v3049, %v3051
      %v3053 = vrot.slane %v3039, %v3052
      %v3054 = vcombine.high %v3046, %v3046
      %v3055 = vcombine.high %v3053, %v3053
      %v3056 = vcombine.high %v3032, %v3032
      %v3058 = vunpack.c.l.s4 1983009808
      %v3059 = vunpack.c.0.s8 %v3058
      %v3060 = vlaneseq
      %v3061 = vshrl.u32 %v3060, 7
      %v3062 = vsub.s32 %v3059, %v3061
      %v3063 = vrot.slane %v3032, %v3062
      %v3065 = vunpack.c.l.s4 1983009808
      %v3066 = vunpack.c.0.s8 %v3065
      %v3067 = vlaneseq
      %v3068 = vshrl.u32 %v3067, 7
      %v3069 = vsub.s32 %v3066, %v3068
      %v3070 = vrot.slane %v3056, %v3069
      %v3071 = vcombine.high %v3063, %v3063
      %v3072 = vcombine.high %v3070, %v3070
      %v3074 = vunpack.c.l.s4 1983009808
      %v3075 = vunpack.c.0.s8 %v3074
      %v3076 = vlaneseq
      %v3077 = vshrl.u32 %v3076, 7
      %v3078 = vsub.s32 %v3075, %v3077
      %v3079 = vrot.slane %v3033, %v3078
      %v3080 = vcombine.high %v3079, %v3079
      %3081 = vrot.lane.b32.xlu0 %v3046, 55
      %v3082 = vpop.permute.xlu0 %3081
      %3083 = vrot.lane.b32.xlu0 %v3054, 55
      %v3084 = vpop.permute.xlu0 %3083
      %3085 = vrot.lane.b32.xlu0 %v3053, 55
      %v3086 = vpop.permute.xlu0 %3085
      %3087 = vrot.lane.b32.xlu0 %v3055, 55
      %v3088 = vpop.permute.xlu0 %3087
      %3089 = vrot.lane.b32.xlu0 %v3063, 55
      %v3090 = vpop.permute.xlu0 %3089
      %3091 = vrot.lane.b32.xlu0 %v3071, 55
      %v3092 = vpop.permute.xlu0 %3091
      %3093 = vrot.lane.b32.xlu0 %v3070, 55
      %v3094 = vpop.permute.xlu0 %3093
      %3095 = vrot.lane.b32.xlu0 %v3072, 55
      %v3096 = vpop.permute.xlu0 %3095
      %3097 = vrot.lane.b32.xlu0 %v3079, 55
      %v3098 = vpop.permute.xlu0 %3097
      %3099 = vrot.lane.b32.xlu0 %v3080, 55
      %v3100 = vpop.permute.xlu0 %3099
      %vm3101 = vcmask 449536
      %v3102 = vsel %vm3101, %v3082, %v3084
      %v3103 = vsel %vm3101, %v3084, %v3086
      %v3104 = vsel %vm3101, %v3086, %v3088
      %v3105 = vsel %vm3101, %v3088, %v3090
      %v3106 = vsel %vm3101, %v3090, %v3092
      %v3107 = vsel %vm3101, %v3092, %v3094
      %v3108 = vsel %vm3101, %v3094, %v3096
      %v3109 = vsel %vm3101, %v3096, %v3098
      %v3110 = vsel %vm3101, %v3098, %v3100
      %v3112 = vsel %vm256, %v3035, 0
      %v3115 = vsel %vm260, %v3102, 0
      %v3118 = vsel %vm260, %v3103, 0
      %v3121 = vsel %vm260, %v3104, 0
      %v3124 = vsel %vm260, %v3105, 0
      %v3127 = vsel %vm260, %v3106, 0
      %v3130 = vsel %vm260, %v3107, 0
      %v3133 = vsel %vm260, %v3108, 0
      %v3136 = vsel %vm260, %v3109, 0
      %v3139 = vsel %vm260, %v3110, 0
      %3141 = vmatprep.subr.bf16.mxu0 %v3118
      %3142 = vmatpush1.bf16.msra.mxu0 %v3115
      %3143 = vmatprep.subr.bf16.mxu0 0
      %3144 = vmatpush1.bf16.msra.mxu0 0
      %3145 = vmatprep.subr.bf16.mxu0 0
      %3146 = vmatpush1.bf16.msra.mxu0 0
      %3147 = vmatprep.subr.bf16.mxu0 0
      %3148 = vmatpush1.bf16.msra.mxu0 0
      %3149 = vmatprep.subr.bf16.mxu0 0
      %3150 = vmatpush1.bf16.msra.mxu0 0
      %3151 = vmatprep.subr.bf16.mxu0 0
      %3152 = vmatpush1.bf16.msra.mxu0 0
      %3153 = vmatprep.subr.bf16.mxu0 0
      %3154 = vmatpush1.bf16.msra.mxu0 0
      %3155 = vmatprep.subr.bf16.mxu0 0
      %3156 = vmatpush1.bf16.msra.mxu0 0
      %3157 = vmatprep.subr.bf16.mxu0 0
      %3158 = vmatpush1.bf16.msra.mxu0 0
      %3159 = vmatprep.subr.bf16.mxu0 0
      %3160 = vmatpush1.bf16.msra.mxu0 0
      %3161 = vmatprep.subr.bf16.mxu0 0
      %3162 = vmatpush1.bf16.msra.mxu0 0
      %3163 = vmatprep.subr.bf16.mxu0 0
      %3164 = vmatpush1.bf16.msra.mxu0 0
      %3165 = vmatprep.subr.bf16.mxu0 0
      %3166 = vmatpush1.bf16.msra.mxu0 0
      %3167 = vmatprep.subr.bf16.mxu0 0
      %3168 = vmatpush1.bf16.msra.mxu0 0
      %3169 = vmatprep.subr.bf16.mxu0 0
      %3170 = vmatpush1.bf16.msra.mxu0 0
      %3171 = vmatprep.subr.bf16.mxu0 0
      %3172 = vmatpush1.bf16.msra.mxu0 0
      %3173 = vmatprep.mubr.bf16.mxu0 0
      %3174 = vmatmul.mubr.bf16.gmra.mrb[0].mxu0 %v3112
      %v3175 = vpop.f32.mrb[0].mxu0
      %v3176 = vadd.f32 0.0, %v3175
      %v3177 = vpop.f32.mrb[0].mxu0
      %v3178 = vadd.f32 0.0, %v3177
      %v3179 = vpop.f32.mrb[0].mxu0
      %v3180 = vpop.f32.mrb[0].mxu0
      %3181 = vdwg.mxu0
      %3182 = vmatprep.subr.bf16.mxu0 %v3124
      %3183 = vmatpush1.bf16.msra.mxu0 %v3121
      %3184 = vmatprep.subr.bf16.mxu0 0
      %3185 = vmatpush1.bf16.msra.mxu0 0
      %3186 = vmatprep.subr.bf16.mxu0 0
      %3187 = vmatpush1.bf16.msra.mxu0 0
      %3188 = vmatprep.subr.bf16.mxu0 0
      %3189 = vmatpush1.bf16.msra.mxu0 0
      %3190 = vmatprep.subr.bf16.mxu0 0
      %3191 = vmatpush1.bf16.msra.mxu0 0
      %3192 = vmatprep.subr.bf16.mxu0 0
      %3193 = vmatpush1.bf16.msra.mxu0 0
      %3194 = vmatprep.subr.bf16.mxu0 0
      %3195 = vmatpush1.bf16.msra.mxu0 0
      %3196 = vmatprep.subr.bf16.mxu0 0
      %3197 = vmatpush1.bf16.msra.mxu0 0
      %3198 = vmatprep.subr.bf16.mxu0 0
      %3199 = vmatpush1.bf16.msra.mxu0 0
      %3200 = vmatprep.subr.bf16.mxu0 0
      %3201 = vmatpush1.bf16.msra.mxu0 0
      %3202 = vmatprep.subr.bf16.mxu0 0
      %3203 = vmatpush1.bf16.msra.mxu0 0
      %3204 = vmatprep.subr.bf16.mxu0 0
      %3205 = vmatpush1.bf16.msra.mxu0 0
      %3206 = vmatprep.subr.bf16.mxu0 0
      %3207 = vmatpush1.bf16.msra.mxu0 0
      %3208 = vmatprep.subr.bf16.mxu0 0
      %3209 = vmatpush1.bf16.msra.mxu0 0
      %3210 = vmatprep.subr.bf16.mxu0 0
      %3211 = vmatpush1.bf16.msra.mxu0 0
      %3212 = vmatprep.subr.bf16.mxu0 0
      %3213 = vmatpush1.bf16.msra.mxu0 0
      %3214 = vmatprep.mubr.bf16.mxu0 0
      %3215 = vmatmul.mubr.bf16.gmra.mrb[0].mxu0 %v3112
      %v3216 = vpop.f32.mrb[0].mxu0
      %v3217 = vadd.f32 0.0, %v3216
      %v3218 = vpop.f32.mrb[0].mxu0
      %v3219 = vadd.f32 0.0, %v3218
      %v3220 = vpop.f32.mrb[0].mxu0
      %v3221 = vpop.f32.mrb[0].mxu0
      %3222 = vdwg.mxu0
      %3223 = vmatprep.subr.bf16.mxu0 %v3130
      %3224 = vmatpush1.bf16.msra.mxu0 %v3127
      %3225 = vmatprep.subr.bf16.mxu0 0
      %3226 = vmatpush1.bf16.msra.mxu0 0
      %3227 = vmatprep.subr.bf16.mxu0 0
      %3228 = vmatpush1.bf16.msra.mxu0 0
      %3229 = vmatprep.subr.bf16.mxu0 0
      %3230 = vmatpush1.bf16.msra.mxu0 0
      %3231 = vmatprep.subr.bf16.mxu0 0
      %3232 = vmatpush1.bf16.msra.mxu0 0
      %3233 = vmatprep.subr.bf16.mxu0 0
      %3234 = vmatpush1.bf16.msra.mxu0 0
      %3235 = vmatprep.subr.bf16.mxu0 0
      %3236 = vmatpush1.bf16.msra.mxu0 0
      %3237 = vmatprep.subr.bf16.mxu0 0
      %3238 = vmatpush1.bf16.msra.mxu0 0
      %3239 = vmatprep.subr.bf16.mxu0 0
      %3240 = vmatpush1.bf16.msra.mxu0 0
      %3241 = vmatprep.subr.bf16.mxu0 0
      %3242 = vmatpush1.bf16.msra.mxu0 0
      %3243 = vmatprep.subr.bf16.mxu0 0
      %3244 = vmatpush1.bf16.msra.mxu0 0
      %3245 = vmatprep.subr.bf16.mxu0 0
      %3246 = vmatpush1.bf16.msra.mxu0 0
      %3247 = vmatprep.subr.bf16.mxu0 0
      %3248 = vmatpush1.bf16.msra.mxu0 0
      %3249 = vmatprep.subr.bf16.mxu0 0
      %3250 = vmatpush1.bf16.msra.mxu0 0
      %3251 = vmatprep.subr.bf16.mxu0 0
      %3252 = vmatpush1.bf16.msra.mxu0 0
      %3253 = vmatprep.subr.bf16.mxu0 0
      %3254 = vmatpush1.bf16.msra.mxu0 0
      %3255 = vmatprep.mubr.bf16.mxu0 0
      %3256 = vmatmul.mubr.bf16.gmra.mrb[0].mxu0 %v3112
      %v3257 = vpop.f32.mrb[0].mxu0
      %v3258 = vadd.f32 0.0, %v3257
      %v3259 = vpop.f32.mrb[0].mxu0
      %v3260 = vadd.f32 0.0, %v3259
      %v3261 = vpop.f32.mrb[0].mxu0
      %v3262 = vpop.f32.mrb[0].mxu0
      %3263 = vdwg.mxu0
      %3264 = vmatprep.subr.bf16.mxu0 %v3136
      %3265 = vmatpush1.bf16.msra.mxu0 %v3133
      %3266 = vmatprep.subr.bf16.mxu0 0
      %3267 = vmatpush1.bf16.msra.mxu0 0
      %3268 = vmatprep.subr.bf16.mxu0 0
      %3269 = vmatpush1.bf16.msra.mxu0 0
      %3270 = vmatprep.subr.bf16.mxu0 0
      %3271 = vmatpush1.bf16.msra.mxu0 0
      %3272 = vmatprep.subr.bf16.mxu0 0
      %3273 = vmatpush1.bf16.msra.mxu0 0
      %3274 = vmatprep.subr.bf16.mxu0 0
      %3275 = vmatpush1.bf16.msra.mxu0 0
      %3276 = vmatprep.subr.bf16.mxu0 0
      %3277 = vmatpush1.bf16.msra.mxu0 0
      %3278 = vmatprep.subr.bf16.mxu0 0
      %3279 = vmatpush1.bf16.msra.mxu0 0
      %3280 = vmatprep.subr.bf16.mxu0 0
      %3281 = vmatpush1.bf16.msra.mxu0 0
      %3282 = vmatprep.subr.bf16.mxu0 0
      %3283 = vmatpush1.bf16.msra.mxu0 0
      %3284 = vmatprep.subr.bf16.mxu0 0
      %3285 = vmatpush1.bf16.msra.mxu0 0
      %3286 = vmatprep.subr.bf16.mxu0 0
      %3287 = vmatpush1.bf16.msra.mxu0 0
      %3288 = vmatprep.subr.bf16.mxu0 0
      %3289 = vmatpush1.bf16.msra.mxu0 0
      %3290 = vmatprep.subr.bf16.mxu0 0
      %3291 = vmatpush1.bf16.msra.mxu0 0
      %3292 = vmatprep.subr.bf16.mxu0 0
      %3293 = vmatpush1.bf16.msra.mxu0 0
      %3294 = vmatprep.subr.bf16.mxu0 0
      %3295 = vmatpush1.bf16.msra.mxu0 0
      %3296 = vmatprep.mubr.bf16.mxu0 0
      %3297 = vmatmul.mubr.bf16.gmra.mrb[0].mxu0 %v3112
      %v3298 = vpop.f32.mrb[0].mxu0
      %v3299 = vadd.f32 0.0, %v3298
      %v3300 = vpop.f32.mrb[0].mxu0
      %v3301 = vadd.f32 0.0, %v3300
      %v3302 = vpop.f32.mrb[0].mxu0
      %v3303 = vpop.f32.mrb[0].mxu0
      %3304 = vdwg.mxu0
      %3305 = vmatprep.subr.bf16.mxu0 0
      %3306 = vmatpush1.bf16.msra.mxu0 %v3139
      %3307 = vmatprep.subr.bf16.mxu0 0
      %3308 = vmatpush1.bf16.msra.mxu0 0
      %3309 = vmatprep.subr.bf16.mxu0 0
      %3310 = vmatpush1.bf16.msra.mxu0 0
      %3311 = vmatprep.subr.bf16.mxu0 0
      %3312 = vmatpush1.bf16.msra.mxu0 0
      %3313 = vmatprep.subr.bf16.mxu0 0
      %3314 = vmatpush1.bf16.msra.mxu0 0
      %3315 = vmatprep.subr.bf16.mxu0 0
      %3316 = vmatpush1.bf16.msra.mxu0 0
      %3317 = vmatprep.subr.bf16.mxu0 0
      %3318 = vmatpush1.bf16.msra.mxu0 0
      %3319 = vmatprep.subr.bf16.mxu0 0
      %3320 = vmatpush1.bf16.msra.mxu0 0
      %3321 = vmatprep.subr.bf16.mxu0 0
      %3322 = vmatpush1.bf16.msra.mxu0 0
      %3323 = vmatprep.subr.bf16.mxu0 0
      %3324 = vmatpush1.bf16.msra.mxu0 0
      %3325 = vmatprep.subr.bf16.mxu0 0
      %3326 = vmatpush1.bf16.msra.mxu0 0
      %3327 = vmatprep.subr.bf16.mxu0 0
      %3328 = vmatpush1.bf16.msra.mxu0 0
      %3329 = vmatprep.subr.bf16.mxu0 0
      %3330 = vmatpush1.bf16.msra.mxu0 0
      %3331 = vmatprep.subr.bf16.mxu0 0
      %3332 = vmatpush1.bf16.msra.mxu0 0
      %3333 = vmatprep.subr.bf16.mxu0 0
      %3334 = vmatpush1.bf16.msra.mxu0 0
      %3335 = vmatprep.subr.bf16.mxu0 0
      %3336 = vmatpush1.bf16.msra.mxu0 0
      %3337 = vmatprep.mubr.bf16.mxu0 0
      %3338 = vmatmul.mubr.bf16.gmra.mrb[0].mxu0 %v3112
      %v3339 = vpop.f32.mrb[0].mxu0
      %v3340 = vadd.f32 0.0, %v3339
      %v3341 = vpop.f32.mrb[0].mxu0
      %v3342 = vpop.f32.mrb[0].mxu0
      %v3343 = vpop.f32.mrb[0].mxu0
      %3344 = vdwg.mxu0
      %v3345 = vadd.f32 %v3022, %v3176
      %v3346 = vadd.f32 %v3023, %v3178
      %v3347 = vadd.f32 %v3024, %v3217
      %v3348 = vadd.f32 %v3025, %v3219
      %v3349 = vadd.f32 %v3026, %v3258
      %v3350 = vadd.f32 %v3027, %v3260
      %v3351 = vadd.f32 %v3028, %v3299
      %v3352 = vadd.f32 %v3029, %v3301
      %v3353 = vadd.f32 %v3030, %v3340
      %v3354 = vld [vmem:[%s165] sm:$0xff]
      %v3355 = vld [vmem:[%s165 + $0x8] sm:$0xff]
      %v3356 = vld [vmem:[%s165 + $0x10] sm:$0xf]
      %s3357 = scalar_lea.vmem %s1, 20
      %v3358 = vld [vmem:[%s3357] sm:$0x3]
      %v3362 = vcombine.high %v3354, %v3354
      %v3364 = vunpack.c.l.s4 1983009808
      %v3365 = vunpack.c.0.s8 %v3364
      %v3366 = vlaneseq
      %v3367 = vshrl.u32 %v3366, 7
      %v3368 = vsub.s32 %v3365, %v3367
      %v3369 = vrot.slane %v3354, %v3368
      %v3371 = vunpack.c.l.s4 1983009808
      %v3372 = vunpack.c.0.s8 %v3371
      %v3373 = vlaneseq
      %v3374 = vshrl.u32 %v3373, 7
      %v3375 = vsub.s32 %v3372, %v3374
      %v3376 = vrot.slane %v3362, %v3375
      %v3377 = vcombine.high %v3369, %v3369
      %v3378 = vcombine.high %v3376, %v3376
      %v3379 = vcombine.high %v3355, %v3355
      %v3381 = vunpack.c.l.s4 1983009808
      %v3382 = vunpack.c.0.s8 %v3381
      %v3383 = vlaneseq
      %v3384 = vshrl.u32 %v3383, 7
      %v3385 = vsub.s32 %v3382, %v3384
      %v3386 = vrot.slane %v3355, %v3385
      %v3388 = vunpack.c.l.s4 1983009808
      %v3389 = vunpack.c.0.s8 %v3388
      %v3390 = vlaneseq
      %v3391 = vshrl.u32 %v3390, 7
      %v3392 = vsub.s32 %v3389, %v3391
      %v3393 = vrot.slane %v3379, %v3392
      %v3394 = vcombine.high %v3386, %v3386
      %v3395 = vcombine.high %v3393, %v3393
      %v3397 = vunpack.c.l.s4 1983009808
      %v3398 = vunpack.c.0.s8 %v3397
      %v3399 = vlaneseq
      %v3400 = vshrl.u32 %v3399, 7
      %v3401 = vsub.s32 %v3398, %v3400
      %v3402 = vrot.slane %v3356, %v3401
      %v3403 = vcombine.high %v3402, %v3402
      %3404 = vrot.lane.b32.xlu0 %v3369, 54
      %v3405 = vpop.permute.xlu0 %3404
      %3406 = vrot.lane.b32.xlu0 %v3377, 54
      %v3407 = vpop.permute.xlu0 %3406
      %3408 = vrot.lane.b32.xlu0 %v3376, 54
      %v3409 = vpop.permute.xlu0 %3408
      %3410 = vrot.lane.b32.xlu0 %v3378, 54
      %v3411 = vpop.permute.xlu0 %3410
      %3412 = vrot.lane.b32.xlu0 %v3386, 54
      %v3413 = vpop.permute.xlu0 %3412
      %3414 = vrot.lane.b32.xlu0 %v3394, 54
      %v3415 = vpop.permute.xlu0 %3414
      %3416 = vrot.lane.b32.xlu0 %v3393, 54
      %v3417 = vpop.permute.xlu0 %3416
      %3418 = vrot.lane.b32.xlu0 %v3395, 54
      %v3419 = vpop.permute.xlu0 %3418
      %3420 = vrot.lane.b32.xlu0 %v3402, 54
      %v3421 = vpop.permute.xlu0 %3420
      %3422 = vrot.lane.b32.xlu0 %v3403, 54
      %v3423 = vpop.permute.xlu0 %3422
      %vm3424 = vcmask 441344
      %v3425 = vsel %vm3424, %v3405, %v3407
      %v3426 = vsel %vm3424, %v3407, %v3409
      %v3427 = vsel %vm3424, %v3409, %v3411
      %v3428 = vsel %vm3424, %v3411, %v3413
      %v3429 = vsel %vm3424, %v3413, %v3415
      %v3430 = vsel %vm3424, %v3415, %v3417
      %v3431 = vsel %vm3424, %v3417, %v3419
      %v3432 = vsel %vm3424, %v3419, %v3421
      %v3433 = vsel %vm3424, %v3421, %v3423
      %v3435 = vsel %vm256, %v3358, 0
      %v3438 = vsel %vm260, %v3425, 0
      %v3441 = vsel %vm260, %v3426, 0
      %v3444 = vsel %vm260, %v3427, 0
      %v3447 = vsel %vm260, %v3428, 0
      %v3450 = vsel %vm260, %v3429, 0
      %v3453 = vsel %vm260, %v3430, 0
      %v3456 = vsel %vm260, %v3431, 0
      %v3459 = vsel %vm260, %v3432, 0
      %v3462 = vsel %vm260, %v3433, 0
      %3464 = vmatprep.subr.bf16.mxu0 %v3441
      %3465 = vmatpush1.bf16.msra.mxu0 %v3438
      %3466 = vmatprep.subr.bf16.mxu0 0
      %3467 = vmatpush1.bf16.msra.mxu0 0
      %3468 = vmatprep.subr.bf16.mxu0 0
      %3469 = vmatpush1.bf16.msra.mxu0 0
      %3470 = vmatprep.subr.bf16.mxu0 0
      %3471 = vmatpush1.bf16.msra.mxu0 0
      %3472 = vmatprep.subr.bf16.mxu0 0
      %3473 = vmatpush1.bf16.msra.mxu0 0
      %3474 = vmatprep.subr.bf16.mxu0 0
      %3475 = vmatpush1.bf16.msra.mxu0 0
      %3476 = vmatprep.subr.bf16.mxu0 0
      %3477 = vmatpush1.bf16.msra.mxu0 0
      %3478 = vmatprep.subr.bf16.mxu0 0
      %3479 = vmatpush1.bf16.msra.mxu0 0
      %3480 = vmatprep.subr.bf16.mxu0 0
      %3481 = vmatpush1.bf16.msra.mxu0 0
      %3482 = vmatprep.subr.bf16.mxu0 0
      %3483 = vmatpush1.bf16.msra.mxu0 0
      %3484 = vmatprep.subr.bf16.mxu0 0
      %3485 = vmatpush1.bf16.msra.mxu0 0
      %3486 = vmatprep.subr.bf16.mxu0 0
      %3487 = vmatpush1.bf16.msra.mxu0 0
      %3488 = vmatprep.subr.bf16.mxu0 0
      %3489 = vmatpush1.bf16.msra.mxu0 0
      %3490 = vmatprep.subr.bf16.mxu0 0
      %3491 = vmatpush1.bf16.msra.mxu0 0
      %3492 = vmatprep.subr.bf16.mxu0 0
      %3493 = vmatpush1.bf16.msra.mxu0 0
      %3494 = vmatprep.subr.bf16.mxu0 0
      %3495 = vmatpush1.bf16.msra.mxu0 0
      %3496 = vmatprep.mubr.bf16.mxu0 0
      %3497 = vmatmul.mubr.bf16.gmra.mrb[0].mxu0 %v3435
      %v3498 = vpop.f32.mrb[0].mxu0
      %v3499 = vadd.f32 0.0, %v3498
      %v3500 = vpop.f32.mrb[0].mxu0
      %v3501 = vadd.f32 0.0, %v3500
      %v3502 = vpop.f32.mrb[0].mxu0
      %v3503 = vpop.f32.mrb[0].mxu0
      %3504 = vdwg.mxu0
      %3505 = vmatprep.subr.bf16.mxu0 %v3447
      %3506 = vmatpush1.bf16.msra.mxu0 %v3444
      %3507 = vmatprep.subr.bf16.mxu0 0
      %3508 = vmatpush1.bf16.msra.mxu0 0
      %3509 = vmatprep.subr.bf16.mxu0 0
      %3510 = vmatpush1.bf16.msra.mxu0 0
      %3511 = vmatprep.subr.bf16.mxu0 0
      %3512 = vmatpush1.bf16.msra.mxu0 0
      %3513 = vmatprep.subr.bf16.mxu0 0
      %3514 = vmatpush1.bf16.msra.mxu0 0
      %3515 = vmatprep.subr.bf16.mxu0 0
      %3516 = vmatpush1.bf16.msra.mxu0 0
      %3517 = vmatprep.subr.bf16.mxu0 0
      %3518 = vmatpush1.bf16.msra.mxu0 0
      %3519 = vmatprep.subr.bf16.mxu0 0
      %3520 = vmatpush1.bf16.msra.mxu0 0
      %3521 = vmatprep.subr.bf16.mxu0 0
      %3522 = vmatpush1.bf16.msra.mxu0 0
      %3523 = vmatprep.subr.bf16.mxu0 0
      %3524 = vmatpush1.bf16.msra.mxu0 0
      %3525 = vmatprep.subr.bf16.mxu0 0
      %3526 = vmatpush1.bf16.msra.mxu0 0
      %3527 = vmatprep.subr.bf16.mxu0 0
      %3528 = vmatpush1.bf16.msra.mxu0 0
      %3529 = vmatprep.subr.bf16.mxu0 0
      %3530 = vmatpush1.bf16.msra.mxu0 0
      %3531 = vmatprep.subr.bf16.mxu0 0
      %3532 = vmatpush1.bf16.msra.mxu0 0
      %3533 = vmatprep.subr.bf16.mxu0 0
      %3534 = vmatpush1.bf16.msra.mxu0 0
      %3535 = vmatprep.subr.bf16.mxu0 0
      %3536 = vmatpush1.bf16.msra.mxu0 0
      %3537 = vmatprep.mubr.bf16.mxu0 0
      %3538 = vmatmul.mubr.bf16.gmra.mrb[0].mxu0 %v3435
      %v3539 = vpop.f32.mrb[0].mxu0
      %v3540 = vadd.f32 0.0, %v3539
      %v3541 = vpop.f32.mrb[0].mxu0
      %v3542 = vadd.f32 0.0, %v3541
      %v3543 = vpop.f32.mrb[0].mxu0
      %v3544 = vpop.f32.mrb[0].mxu0
      %3545 = vdwg.mxu0
      %3546 = vmatprep.subr.bf16.mxu0 %v3453
      %3547 = vmatpush1.bf16.msra.mxu0 %v3450
      %3548 = vmatprep.subr.bf16.mxu0 0
      %3549 = vmatpush1.bf16.msra.mxu0 0
      %3550 = vmatprep.subr.bf16.mxu0 0
      %3551 = vmatpush1.bf16.msra.mxu0 0
      %3552 = vmatprep.subr.bf16.mxu0 0
      %3553 = vmatpush1.bf16.msra.mxu0 0
      %3554 = vmatprep.subr.bf16.mxu0 0
      %3555 = vmatpush1.bf16.msra.mxu0 0
      %3556 = vmatprep.subr.bf16.mxu0 0
      %3557 = vmatpush1.bf16.msra.mxu0 0
      %3558 = vmatprep.subr.bf16.mxu0 0
      %3559 = vmatpush1.bf16.msra.mxu0 0
      %3560 = vmatprep.subr.bf16.mxu0 0
      %3561 = vmatpush1.bf16.msra.mxu0 0
      %3562 = vmatprep.subr.bf16.mxu0 0
      %3563 = vmatpush1.bf16.msra.mxu0 0
      %3564 = vmatprep.subr.bf16.mxu0 0
      %3565 = vmatpush1.bf16.msra.mxu0 0
      %3566 = vmatprep.subr.bf16.mxu0 0
      %3567 = vmatpush1.bf16.msra.mxu0 0
      %3568 = vmatprep.subr.bf16.mxu0 0
      %3569 = vmatpush1.bf16.msra.mxu0 0
      %3570 = vmatprep.subr.bf16.mxu0 0
      %3571 = vmatpush1.bf16.msra.mxu0 0
      %3572 = vmatprep.subr.bf16.mxu0 0
      %3573 = vmatpush1.bf16.msra.mxu0 0
      %3574 = vmatprep.subr.bf16.mxu0 0
      %3575 = vmatpush1.bf16.msra.mxu0 0
      %3576 = vmatprep.subr.bf16.mxu0 0
      %3577 = vmatpush1.bf16.msra.mxu0 0
      %3578 = vmatprep.mubr.bf16.mxu0 0
      %3579 = vmatmul.mubr.bf16.gmra.mrb[0].mxu0 %v3435
      %v3580 = vpop.f32.mrb[0].mxu0
      %v3581 = vadd.f32 0.0, %v3580
      %v3582 = vpop.f32.mrb[0].mxu0
      %v3583 = vadd.f32 0.0, %v3582
      %v3584 = vpop.f32.mrb[0].mxu0
      %v3585 = vpop.f32.mrb[0].mxu0
      %3586 = vdwg.mxu0
      %3587 = vmatprep.subr.bf16.mxu0 %v3459
      %3588 = vmatpush1.bf16.msra.mxu0 %v3456
      %3589 = vmatprep.subr.bf16.mxu0 0
      %3590 = vmatpush1.bf16.msra.mxu0 0
      %3591 = vmatprep.subr.bf16.mxu0 0
      %3592 = vmatpush1.bf16.msra.mxu0 0
      %3593 = vmatprep.subr.bf16.mxu0 0
      %3594 = vmatpush1.bf16.msra.mxu0 0
      %3595 = vmatprep.subr.bf16.mxu0 0
      %3596 = vmatpush1.bf16.msra.mxu0 0
      %3597 = vmatprep.subr.bf16.mxu0 0
      %3598 = vmatpush1.bf16.msra.mxu0 0
      %3599 = vmatprep.subr.bf16.mxu0 0
      %3600 = vmatpush1.bf16.msra.mxu0 0
      %3601 = vmatprep.subr.bf16.mxu0 0
      %3602 = vmatpush1.bf16.msra.mxu0 0
      %3603 = vmatprep.subr.bf16.mxu0 0
      %3604 = vmatpush1.bf16.msra.mxu0 0
      %3605 = vmatprep.subr.bf16.mxu0 0
      %3606 = vmatpush1.bf16.msra.mxu0 0
      %3607 = vmatprep.subr.bf16.mxu0 0
      %3608 = vmatpush1.bf16.msra.mxu0 0
      %3609 = vmatprep.subr.bf16.mxu0 0
      %3610 = vmatpush1.bf16.msra.mxu0 0
      %3611 = vmatprep.subr.bf16.mxu0 0
      %3612 = vmatpush1.bf16.msra.mxu0 0
      %3613 = vmatprep.subr.bf16.mxu0 0
      %3614 = vmatpush1.bf16.msra.mxu0 0
      %3615 = vmatprep.subr.bf16.mxu0 0
      %3616 = vmatpush1.bf16.msra.mxu0 0
      %3617 = vmatprep.subr.bf16.mxu0 0
      %3618 = vmatpush1.bf16.msra.mxu0 0
      %3619 = vmatprep.mubr.bf16.mxu0 0
      %3620 = vmatmul.mubr.bf16.gmra.mrb[0].mxu0 %v3435
      %v3621 = vpop.f32.mrb[0].mxu0
      %v3622 = vadd.f32 0.0, %v3621
      %v3623 = vpop.f32.mrb[0].mxu0
      %v3624 = vadd.f32 0.0, %v3623
      %v3625 = vpop.f32.mrb[0].mxu0
      %v3626 = vpop.f32.mrb[0].mxu0
      %3627 = vdwg.mxu0
      %3628 = vmatprep.subr.bf16.mxu0 0
      %3629 = vmatpush1.bf16.msra.mxu0 %v3462
      %3630 = vmatprep.subr.bf16.mxu0 0
      %3631 = vmatpush1.bf16.msra.mxu0 0
      %3632 = vmatprep.subr.bf16.mxu0 0
      %3633 = vmatpush1.bf16.msra.mxu0 0
      %3634 = vmatprep.subr.bf16.mxu0 0
      %3635 = vmatpush1.bf16.msra.mxu0 0
      %3636 = vmatprep.subr.bf16.mxu0 0
      %3637 = vmatpush1.bf16.msra.mxu0 0
      %3638 = vmatprep.subr.bf16.mxu0 0
      %3639 = vmatpush1.bf16.msra.mxu0 0
      %3640 = vmatprep.subr.bf16.mxu0 0
      %3641 = vmatpush1.bf16.msra.mxu0 0
      %3642 = vmatprep.subr.bf16.mxu0 0
      %3643 = vmatpush1.bf16.msra.mxu0 0
      %3644 = vmatprep.subr.bf16.mxu0 0
      %3645 = vmatpush1.bf16.msra.mxu0 0
      %3646 = vmatprep.subr.bf16.mxu0 0
      %3647 = vmatpush1.bf16.msra.mxu0 0
      %3648 = vmatprep.subr.bf16.mxu0 0
      %3649 = vmatpush1.bf16.msra.mxu0 0
      %3650 = vmatprep.subr.bf16.mxu0 0
      %3651 = vmatpush1.bf16.msra.mxu0 0
      %3652 = vmatprep.subr.bf16.mxu0 0
      %3653 = vmatpush1.bf16.msra.mxu0 0
      %3654 = vmatprep.subr.bf16.mxu0 0
      %3655 = vmatpush1.bf16.msra.mxu0 0
      %3656 = vmatprep.subr.bf16.mxu0 0
      %3657 = vmatpush1.bf16.msra.mxu0 0
      %3658 = vmatprep.subr.bf16.mxu0 0
      %3659 = vmatpush1.bf16.msra.mxu0 0
      %3660 = vmatprep.mubr.bf16.mxu0 0
      %3661 = vmatmul.mubr.bf16.gmra.mrb[0].mxu0 %v3435
      %v3662 = vpop.f32.mrb[0].mxu0
      %v3663 = vadd.f32 0.0, %v3662
      %v3664 = vpop.f32.mrb[0].mxu0
      %v3665 = vpop.f32.mrb[0].mxu0
      %v3666 = vpop.f32.mrb[0].mxu0
      %3667 = vdwg.mxu0
      %v3668 = vadd.f32 %v3345, %v3499
      %v3669 = vadd.f32 %v3346, %v3501
      %v3670 = vadd.f32 %v3347, %v3540
      %v3671 = vadd.f32 %v3348, %v3542
      %v3672 = vadd.f32 %v3349, %v3581
      %v3673 = vadd.f32 %v3350, %v3583
      %v3674 = vadd.f32 %v3351, %v3622
      %v3675 = vadd.f32 %v3352, %v3624
      %v3676 = vadd.f32 %v3353, %v3663
      %v3677 = vld [vmem:[%s165] sm:$0xff]
      %v3678 = vld [vmem:[%s165 + $0x8] sm:$0xff]
      %v3679 = vld [vmem:[%s165 + $0x10] sm:$0xf]
      %s3680 = scalar_lea.vmem %s1, 22
      %v3681 = vld [vmem:[%s3680] sm:$0x3]
      %v3685 = vcombine.high %v3677, %v3677
      %v3687 = vunpack.c.l.s4 1983009808
      %v3688 = vunpack.c.0.s8 %v3687
      %v3689 = vlaneseq
      %v3690 = vshrl.u32 %v3689, 7
      %v3691 = vsub.s32 %v3688, %v3690
      %v3692 = vrot.slane %v3677, %v3691
      %v3694 = vunpack.c.l.s4 1983009808
      %v3695 = vunpack.c.0.s8 %v3694
      %v3696 = vlaneseq
      %v3697 = vshrl.u32 %v3696, 7
      %v3698 = vsub.s32 %v3695, %v3697
      %v3699 = vrot.slane %v3685, %v3698
      %v3700 = vcombine.high %v3692, %v3692
      %v3701 = vcombine.high %v3699, %v3699
      %v3702 = vcombine.high %v3678, %v3678
      %v3704 = vunpack.c.l.s4 1983009808
      %v3705 = vunpack.c.0.s8 %v3704
      %v3706 = vlaneseq
      %v3707 = vshrl.u32 %v3706, 7
      %v3708 = vsub.s32 %v3705, %v3707
      %v3709 = vrot.slane %v3678, %v3708
      %v3711 = vunpack.c.l.s4 1983009808
      %v3712 = vunpack.c.0.s8 %v3711
      %v3713 = vlaneseq
      %v3714 = vshrl.u32 %v3713, 7
      %v3715 = vsub.s32 %v3712, %v3714
      %v3716 = vrot.slane %v3702, %v3715
      %v3717 = vcombine.high %v3709, %v3709
      %v3718 = vcombine.high %v3716, %v3716
      %v3720 = vunpack.c.l.s4 1983009808
      %v3721 = vunpack.c.0.s8 %v3720
      %v3722 = vlaneseq
      %v3723 = vshrl.u32 %v3722, 7
      %v3724 = vsub.s32 %v3721, %v3723
      %v3725 = vrot.slane %v3679, %v3724
      %v3726 = vcombine.high %v3725, %v3725
      %3727 = vrot.lane.b32.xlu0 %v3692, 53
      %v3728 = vpop.permute.xlu0 %3727
      %3729 = vrot.lane.b32.xlu0 %v3700, 53
      %v3730 = vpop.permute.xlu0 %3729
      %3731 = vrot.lane.b32.xlu0 %v3699, 53
      %v3732 = vpop.permute.xlu0 %3731
      %3733 = vrot.lane.b32.xlu0 %v3701, 53
      %v3734 = vpop.permute.xlu0 %3733
      %3735 = vrot.lane.b32.xlu0 %v3709, 53
      %v3736 = vpop.permute.xlu0 %3735
      %3737 = vrot.lane.b32.xlu0 %v3717, 53
      %v3738 = vpop.permute.xlu0 %3737
      %3739 = vrot.lane.b32.xlu0 %v3716, 53
      %v3740 = vpop.permute.xlu0 %3739
      %3741 = vrot.lane.b32.xlu0 %v3718, 53
      %v3742 = vpop.permute.xlu0 %3741
      %3743 = vrot.lane.b32.xlu0 %v3725, 53
      %v3744 = vpop.permute.xlu0 %3743
      %3745 = vrot.lane.b32.xlu0 %v3726, 53
      %v3746 = vpop.permute.xlu0 %3745
      %vm3747 = vcmask 433152
      %v3748 = vsel %vm3747, %v3728, %v3730
      %v3749 = vsel %vm3747, %v3730, %v3732
      %v3750 = vsel %vm3747, %v3732, %v3734
      %v3751 = vsel %vm3747, %v3734, %v3736
      %v3752 = vsel %vm3747, %v3736, %v3738
      %v3753 = vsel %vm3747, %v3738, %v3740
      %v3754 = vsel %vm3747, %v3740, %v3742
      %v3755 = vsel %vm3747, %v3742, %v3744
      %v3756 = vsel %vm3747, %v3744, %v3746
      %v3758 = vsel %vm256, %v3681, 0
      %v3761 = vsel %vm260, %v3748, 0
      %v3764 = vsel %vm260, %v3749, 0
      %v3767 = vsel %vm260, %v3750, 0
      %v3770 = vsel %vm260, %v3751, 0
      %v3773 = vsel %vm260, %v3752, 0
      %v3776 = vsel %vm260, %v3753, 0
      %v3779 = vsel %vm260, %v3754, 0
      %v3782 = vsel %vm260, %v3755, 0
      %v3785 = vsel %vm260, %v3756, 0
      %3787 = vmatprep.subr.bf16.mxu0 %v3764
      %3788 = vmatpush1.bf16.msra.mxu0 %v3761
      %3789 = vmatprep.subr.bf16.mxu0 0
      %3790 = vmatpush1.bf16.msra.mxu0 0
      %3791 = vmatprep.subr.bf16.mxu0 0
      %3792 = vmatpush1.bf16.msra.mxu0 0
      %3793 = vmatprep.subr.bf16.mxu0 0
      %3794 = vmatpush1.bf16.msra.mxu0 0
      %3795 = vmatprep.subr.bf16.mxu0 0
      %3796 = vmatpush1.bf16.msra.mxu0 0
      %3797 = vmatprep.subr.bf16.mxu0 0
      %3798 = vmatpush1.bf16.msra.mxu0 0
      %3799 = vmatprep.subr.bf16.mxu0 0
      %3800 = vmatpush1.bf16.msra.mxu0 0
      %3801 = vmatprep.subr.bf16.mxu0 0
      %3802 = vmatpush1.bf16.msra.mxu0 0
      %3803 = vmatprep.subr.bf16.mxu0 0
      %3804 = vmatpush1.bf16.msra.mxu0 0
      %3805 = vmatprep.subr.bf16.mxu0 0
      %3806 = vmatpush1.bf16.msra.mxu0 0
      %3807 = vmatprep.subr.bf16.mxu0 0
      %3808 = vmatpush1.bf16.msra.mxu0 0
      %3809 = vmatprep.subr.bf16.mxu0 0
      %3810 = vmatpush1.bf16.msra.mxu0 0
      %3811 = vmatprep.subr.bf16.mxu0 0
      %3812 = vmatpush1.bf16.msra.mxu0 0
      %3813 = vmatprep.subr.bf16.mxu0 0
      %3814 = vmatpush1.bf16.msra.mxu0 0
      %3815 = vmatprep.subr.bf16.mxu0 0
      %3816 = vmatpush1.bf16.msra.mxu0 0
      %3817 = vmatprep.subr.bf16.mxu0 0
      %3818 = vmatpush1.bf16.msra.mxu0 0
      %3819 = vmatprep.mubr.bf16.mxu0 0
      %3820 = vmatmul.mubr.bf16.gmra.mrb[0].mxu0 %v3758
      %v3821 = vpop.f32.mrb[0].mxu0
      %v3822 = vadd.f32 0.0, %v3821
      %v3823 = vpop.f32.mrb[0].mxu0
      %v3824 = vadd.f32 0.0, %v3823
      %v3825 = vpop.f32.mrb[0].mxu0
      %v3826 = vpop.f32.mrb[0].mxu0
      %3827 = vdwg.mxu0
      %3828 = vmatprep.subr.bf16.mxu0 %v3770
      %3829 = vmatpush1.bf16.msra.mxu0 %v3767
      %3830 = vmatprep.subr.bf16.mxu0 0
      %3831 = vmatpush1.bf16.msra.mxu0 0
      %3832 = vmatprep.subr.bf16.mxu0 0
      %3833 = vmatpush1.bf16.msra.mxu0 0
      %3834 = vmatprep.subr.bf16.mxu0 0
      %3835 = vmatpush1.bf16.msra.mxu0 0
      %3836 = vmatprep.subr.bf16.mxu0 0
      %3837 = vmatpush1.bf16.msra.mxu0 0
      %3838 = vmatprep.subr.bf16.mxu0 0
      %3839 = vmatpush1.bf16.msra.mxu0 0
      %3840 = vmatprep.subr.bf16.mxu0 0
      %3841 = vmatpush1.bf16.msra.mxu0 0
      %3842 = vmatprep.subr.bf16.mxu0 0
      %3843 = vmatpush1.bf16.msra.mxu0 0
      %3844 = vmatprep.subr.bf16.mxu0 0
      %3845 = vmatpush1.bf16.msra.mxu0 0
      %3846 = vmatprep.subr.bf16.mxu0 0
      %3847 = vmatpush1.bf16.msra.mxu0 0
      %3848 = vmatprep.subr.bf16.mxu0 0
      %3849 = vmatpush1.bf16.msra.mxu0 0
      %3850 = vmatprep.subr.bf16.mxu0 0
      %3851 = vmatpush1.bf16.msra.mxu0 0
      %3852 = vmatprep.subr.bf16.mxu0 0
      %3853 = vmatpush1.bf16.msra.mxu0 0
      %3854 = vmatprep.subr.bf16.mxu0 0
      %3855 = vmatpush1.bf16.msra.mxu0 0
      %3856 = vmatprep.subr.bf16.mxu0 0
      %3857 = vmatpush1.bf16.msra.mxu0 0
      %3858 = vmatprep.subr.bf16.mxu0 0
      %3859 = vmatpush1.bf16.msra.mxu0 0
      %3860 = vmatprep.mubr.bf16.mxu0 0
      %3861 = vmatmul.mubr.bf16.gmra.mrb[0].mxu0 %v3758
      %v3862 = vpop.f32.mrb[0].mxu0
      %v3863 = vadd.f32 0.0, %v3862
      %v3864 = vpop.f32.mrb[0].mxu0
      %v3865 = vadd.f32 0.0, %v3864
      %v3866 = vpop.f32.mrb[0].mxu0
      %v3867 = vpop.f32.mrb[0].mxu0
      %3868 = vdwg.mxu0
      %3869 = vmatprep.subr.bf16.mxu0 %v3776
      %3870 = vmatpush1.bf16.msra.mxu0 %v3773
      %3871 = vmatprep.subr.bf16.mxu0 0
      %3872 = vmatpush1.bf16.msra.mxu0 0
      %3873 = vmatprep.subr.bf16.mxu0 0
      %3874 = vmatpush1.bf16.msra.mxu0 0
      %3875 = vmatprep.subr.bf16.mxu0 0
      %3876 = vmatpush1.bf16.msra.mxu0 0
      %3877 = vmatprep.subr.bf16.mxu0 0
      %3878 = vmatpush1.bf16.msra.mxu0 0
      %3879 = vmatprep.subr.bf16.mxu0 0
      %3880 = vmatpush1.bf16.msra.mxu0 0
      %3881 = vmatprep.subr.bf16.mxu0 0
      %3882 = vmatpush1.bf16.msra.mxu0 0
      %3883 = vmatprep.subr.bf16.mxu0 0
      %3884 = vmatpush1.bf16.msra.mxu0 0
      %3885 = vmatprep.subr.bf16.mxu0 0
      %3886 = vmatpush1.bf16.msra.mxu0 0
      %3887 = vmatprep.subr.bf16.mxu0 0
      %3888 = vmatpush1.bf16.msra.mxu0 0
      %3889 = vmatprep.subr.bf16.mxu0 0
      %3890 = vmatpush1.bf16.msra.mxu0 0
      %3891 = vmatprep.subr.bf16.mxu0 0
      %3892 = vmatpush1.bf16.msra.mxu0 0
      %3893 = vmatprep.subr.bf16.mxu0 0
      %3894 = vmatpush1.bf16.msra.mxu0 0
      %3895 = vmatprep.subr.bf16.mxu0 0
      %3896 = vmatpush1.bf16.msra.mxu0 0
      %3897 = vmatprep.subr.bf16.mxu0 0
      %3898 = vmatpush1.bf16.msra.mxu0 0
      %3899 = vmatprep.subr.bf16.mxu0 0
      %3900 = vmatpush1.bf16.msra.mxu0 0
      %3901 = vmatprep.mubr.bf16.mxu0 0
      %3902 = vmatmul.mubr.bf16.gmra.mrb[0].mxu0 %v3758
      %v3903 = vpop.f32.mrb[0].mxu0
      %v3904 = vadd.f32 0.0, %v3903
      %v3905 = vpop.f32.mrb[0].mxu0
      %v3906 = vadd.f32 0.0, %v3905
      %v3907 = vpop.f32.mrb[0].mxu0
      %v3908 = vpop.f32.mrb[0].mxu0
      %3909 = vdwg.mxu0
      %3910 = vmatprep.subr.bf16.mxu0 %v3782
      %3911 = vmatpush1.bf16.msra.mxu0 %v3779
      %3912 = vmatprep.subr.bf16.mxu0 0
      %3913 = vmatpush1.bf16.msra.mxu0 0
      %3914 = vmatprep.subr.bf16.mxu0 0
      %3915 = vmatpush1.bf16.msra.mxu0 0
      %3916 = vmatprep.subr.bf16.mxu0 0
      %3917 = vmatpush1.bf16.msra.mxu0 0
      %3918 = vmatprep.subr.bf16.mxu0 0
      %3919 = vmatpush1.bf16.msra.mxu0 0
      %3920 = vmatprep.subr.bf16.mxu0 0
      %3921 = vmatpush1.bf16.msra.mxu0 0
      %3922 = vmatprep.subr.bf16.mxu0 0
      %3923 = vmatpush1.bf16.msra.mxu0 0
      %3924 = vmatprep.subr.bf16.mxu0 0
      %3925 = vmatpush1.bf16.msra.mxu0 0
      %3926 = vmatprep.subr.bf16.mxu0 0
      %3927 = vmatpush1.bf16.msra.mxu0 0
      %3928 = vmatprep.subr.bf16.mxu0 0
      %3929 = vmatpush1.bf16.msra.mxu0 0
      %3930 = vmatprep.subr.bf16.mxu0 0
      %3931 = vmatpush1.bf16.msra.mxu0 0
      %3932 = vmatprep.subr.bf16.mxu0 0
      %3933 = vmatpush1.bf16.msra.mxu0 0
      %3934 = vmatprep.subr.bf16.mxu0 0
      %3935 = vmatpush1.bf16.msra.mxu0 0
      %3936 = vmatprep.subr.bf16.mxu0 0
      %3937 = vmatpush1.bf16.msra.mxu0 0
      %3938 = vmatprep.subr.bf16.mxu0 0
      %3939 = vmatpush1.bf16.msra.mxu0 0
      %3940 = vmatprep.subr.bf16.mxu0 0
      %3941 = vmatpush1.bf16.msra.mxu0 0
      %3942 = vmatprep.mubr.bf16.mxu0 0
      %3943 = vmatmul.mubr.bf16.gmra.mrb[0].mxu0 %v3758
      %v3944 = vpop.f32.mrb[0].mxu0
      %v3945 = vadd.f32 0.0, %v3944
      %v3946 = vpop.f32.mrb[0].mxu0
      %v3947 = vadd.f32 0.0, %v3946
      %v3948 = vpop.f32.mrb[0].mxu0
      %v3949 = vpop.f32.mrb[0].mxu0
      %3950 = vdwg.mxu0
      %3951 = vmatprep.subr.bf16.mxu0 0
      %3952 = vmatpush1.bf16.msra.mxu0 %v3785
      %3953 = vmatprep.subr.bf16.mxu0 0
      %3954 = vmatpush1.bf16.msra.mxu0 0
      %3955 = vmatprep.subr.bf16.mxu0 0
      %3956 = vmatpush1.bf16.msra.mxu0 0
      %3957 = vmatprep.subr.bf16.mxu0 0
      %3958 = vmatpush1.bf16.msra.mxu0 0
      %3959 = vmatprep.subr.bf16.mxu0 0
      %3960 = vmatpush1.bf16.msra.mxu0 0
      %3961 = vmatprep.subr.bf16.mxu0 0
      %3962 = vmatpush1.bf16.msra.mxu0 0
      %3963 = vmatprep.subr.bf16.mxu0 0
      %3964 = vmatpush1.bf16.msra.mxu0 0
      %3965 = vmatprep.subr.bf16.mxu0 0
      %3966 = vmatpush1.bf16.msra.mxu0 0
      %3967 = vmatprep.subr.bf16.mxu0 0
      %3968 = vmatpush1.bf16.msra.mxu0 0
      %3969 = vmatprep.subr.bf16.mxu0 0
      %3970 = vmatpush1.bf16.msra.mxu0 0
      %3971 = vmatprep.subr.bf16.mxu0 0
      %3972 = vmatpush1.bf16.msra.mxu0 0
      %3973 = vmatprep.subr.bf16.mxu0 0
      %3974 = vmatpush1.bf16.msra.mxu0 0
      %3975 = vmatprep.subr.bf16.mxu0 0
      %3976 = vmatpush1.bf16.msra.mxu0 0
      %3977 = vmatprep.subr.bf16.mxu0 0
      %3978 = vmatpush1.bf16.msra.mxu0 0
      %3979 = vmatprep.subr.bf16.mxu0 0
      %3980 = vmatpush1.bf16.msra.mxu0 0
      %3981 = vmatprep.subr.bf16.mxu0 0
      %3982 = vmatpush1.bf16.msra.mxu0 0
      %3983 = vmatprep.mubr.bf16.mxu0 0
      %3984 = vmatmul.mubr.bf16.gmra.mrb[0].mxu0 %v3758
      %v3985 = vpop.f32.mrb[0].mxu0
      %v3986 = vadd.f32 0.0, %v3985
      %v3987 = vpop.f32.mrb[0].mxu0
      %v3988 = vpop.f32.mrb[0].mxu0
      %v3989 = vpop.f32.mrb[0].mxu0
      %3990 = vdwg.mxu0
      %v3991 = vadd.f32 %v3668, %v3822
      %v3992 = vadd.f32 %v3669, %v3824
      %v3993 = vadd.f32 %v3670, %v3863
      %v3994 = vadd.f32 %v3671, %v3865
      %v3995 = vadd.f32 %v3672, %v3904
      %v3996 = vadd.f32 %v3673, %v3906
      %v3997 = vadd.f32 %v3674, %v3945
      %v3998 = vadd.f32 %v3675, %v3947
      %v3999 = vadd.f32 %v3676, %v3986
      %v4000 = vld [vmem:[%s165] sm:$0xff]
      %v4001 = vld [vmem:[%s165 + $0x8] sm:$0xff]
      %v4002 = vld [vmem:[%s165 + $0x10] sm:$0xf]
      %s4003 = scalar_lea.vmem %s1, 24
      %v4004 = vld [vmem:[%s4003] sm:$0x3]
      %v4008 = vcombine.high %v4000, %v4000
      %v4010 = vunpack.c.l.s4 1983009808
      %v4011 = vunpack.c.0.s8 %v4010
      %v4012 = vlaneseq
      %v4013 = vshrl.u32 %v4012, 7
      %v4014 = vsub.s32 %v4011, %v4013
      %v4015 = vrot.slane %v4000, %v4014
      %v4017 = vunpack.c.l.s4 1983009808
      %v4018 = vunpack.c.0.s8 %v4017
      %v4019 = vlaneseq
      %v4020 = vshrl.u32 %v4019, 7
      %v4021 = vsub.s32 %v4018, %v4020
      %v4022 = vrot.slane %v4008, %v4021
      %v4023 = vcombine.high %v4015, %v4015
      %v4024 = vcombine.high %v4022, %v4022
      %v4025 = vcombine.high %v4001, %v4001
      %v4027 = vunpack.c.l.s4 1983009808
      %v4028 = vunpack.c.0.s8 %v4027
      %v4029 = vlaneseq
      %v4030 = vshrl.u32 %v4029, 7
      %v4031 = vsub.s32 %v4028, %v4030
      %v4032 = vrot.slane %v4001, %v4031
      %v4034 = vunpack.c.l.s4 1983009808
      %v4035 = vunpack.c.0.s8 %v4034
      %v4036 = vlaneseq
      %v4037 = vshrl.u32 %v4036, 7
      %v4038 = vsub.s32 %v4035, %v4037
      %v4039 = vrot.slane %v4025, %v4038
      %v4040 = vcombine.high %v4032, %v4032
      %v4041 = vcombine.high %v4039, %v4039
      %v4043 = vunpack.c.l.s4 1983009808
      %v4044 = vunpack.c.0.s8 %v4043
      %v4045 = vlaneseq
      %v4046 = vshrl.u32 %v4045, 7
      %v4047 = vsub.s32 %v4044, %v4046
      %v4048 = vrot.slane %v4002, %v4047
      %v4049 = vcombine.high %v4048, %v4048
      %4050 = vrot.lane.b32.xlu0 %v4015, 20
      %v4051 = vpop.permute.xlu0 %4050
      %4052 = vrot.lane.b32.xlu0 %v4023, 20
      %v4053 = vpop.permute.xlu0 %4052
      %4054 = vrot.lane.b32.xlu0 %v4022, 20
      %v4055 = vpop.permute.xlu0 %4054
      %4056 = vrot.lane.b32.xlu0 %v4024, 20
      %v4057 = vpop.permute.xlu0 %4056
      %4058 = vrot.lane.b32.xlu0 %v4032, 20
      %v4059 = vpop.permute.xlu0 %4058
      %4060 = vrot.lane.b32.xlu0 %v4040, 20
      %v4061 = vpop.permute.xlu0 %4060
      %4062 = vrot.lane.b32.xlu0 %v4039, 20
      %v4063 = vpop.permute.xlu0 %4062
      %4064 = vrot.lane.b32.xlu0 %v4041, 20
      %v4065 = vpop.permute.xlu0 %4064
      %4066 = vrot.lane.b32.xlu0 %v4048, 20
      %v4067 = vpop.permute.xlu0 %4066
      %4068 = vrot.lane.b32.xlu0 %v4049, 20
      %v4069 = vpop.permute.xlu0 %4068
      %vm4070 = vcmask 162816
      %v4071 = vsel %vm4070, %v4051, %v4053
      %v4072 = vsel %vm4070, %v4053, %v4055
      %v4073 = vsel %vm4070, %v4055, %v4057
      %v4074 = vsel %vm4070, %v4057, %v4059
      %v4075 = vsel %vm4070, %v4059, %v4061
      %v4076 = vsel %vm4070, %v4061, %v4063
      %v4077 = vsel %vm4070, %v4063, %v4065
      %v4078 = vsel %vm4070, %v4065, %v4067
      %v4079 = vsel %vm4070, %v4067, %v4069
      %v4081 = vsel %vm256, %v4004, 0
      %v4084 = vsel %vm260, %v4071, 0
      %v4087 = vsel %vm260, %v4072, 0
      %v4090 = vsel %vm260, %v4073, 0
      %v4093 = vsel %vm260, %v4074, 0
      %v4096 = vsel %vm260, %v4075, 0
      %v4099 = vsel %vm260, %v4076, 0
      %v4102 = vsel %vm260, %v4077, 0
      %v4105 = vsel %vm260, %v4078, 0
      %v4108 = vsel %vm260, %v4079, 0
      %4110 = vmatprep.subr.bf16.mxu0 %v4087
      %4111 = vmatpush1.bf16.msra.mxu0 %v4084
      %4112 = vmatprep.subr.bf16.mxu0 0
      %4113 = vmatpush1.bf16.msra.mxu0 0
      %4114 = vmatprep.subr.bf16.mxu0 0
      %4115 = vmatpush1.bf16.msra.mxu0 0
      %4116 = vmatprep.subr.bf16.mxu0 0
      %4117 = vmatpush1.bf16.msra.mxu0 0
      %4118 = vmatprep.subr.bf16.mxu0 0
      %4119 = vmatpush1.bf16.msra.mxu0 0
      %4120 = vmatprep.subr.bf16.mxu0 0
      %4121 = vmatpush1.bf16.msra.mxu0 0
      %4122 = vmatprep.subr.bf16.mxu0 0
      %4123 = vmatpush1.bf16.msra.mxu0 0
      %4124 = vmatprep.subr.bf16.mxu0 0
      %4125 = vmatpush1.bf16.msra.mxu0 0
      %4126 = vmatprep.subr.bf16.mxu0 0
      %4127 = vmatpush1.bf16.msra.mxu0 0
      %4128 = vmatprep.subr.bf16.mxu0 0
      %4129 = vmatpush1.bf16.msra.mxu0 0
      %4130 = vmatprep.subr.bf16.mxu0 0
      %4131 = vmatpush1.bf16.msra.mxu0 0
      %4132 = vmatprep.subr.bf16.mxu0 0
      %4133 = vmatpush1.bf16.msra.mxu0 0
      %4134 = vmatprep.subr.bf16.mxu0 0
      %4135 = vmatpush1.bf16.msra.mxu0 0
      %4136 = vmatprep.subr.bf16.mxu0 0
      %4137 = vmatpush1.bf16.msra.mxu0 0
      %4138 = vmatprep.subr.bf16.mxu0 0
      %4139 = vmatpush1.bf16.msra.mxu0 0
      %4140 = vmatprep.subr.bf16.mxu0 0
      %4141 = vmatpush1.bf16.msra.mxu0 0
      %4142 = vmatprep.mubr.bf16.mxu0 0
      %4143 = vmatmul.mubr.bf16.gmra.mrb[0].mxu0 %v4081
      %v4144 = vpop.f32.mrb[0].mxu0
      %v4145 = vadd.f32 0.0, %v4144
      %v4146 = vpop.f32.mrb[0].mxu0
      %v4147 = vadd.f32 0.0, %v4146
      %v4148 = vpop.f32.mrb[0].mxu0
      %v4149 = vpop.f32.mrb[0].mxu0
      %4150 = vdwg.mxu0
      %4151 = vmatprep.subr.bf16.mxu0 %v4093
      %4152 = vmatpush1.bf16.msra.mxu0 %v4090
      %4153 = vmatprep.subr.bf16.mxu0 0
      %4154 = vmatpush1.bf16.msra.mxu0 0
      %4155 = vmatprep.subr.bf16.mxu0 0
      %4156 = vmatpush1.bf16.msra.mxu0 0
      %4157 = vmatprep.subr.bf16.mxu0 0
      %4158 = vmatpush1.bf16.msra.mxu0 0
      %4159 = vmatprep.subr.bf16.mxu0 0
      %4160 = vmatpush1.bf16.msra.mxu0 0
      %4161 = vmatprep.subr.bf16.mxu0 0
      %4162 = vmatpush1.bf16.msra.mxu0 0
      %4163 = vmatprep.subr.bf16.mxu0 0
      %4164 = vmatpush1.bf16.msra.mxu0 0
      %4165 = vmatprep.subr.bf16.mxu0 0
      %4166 = vmatpush1.bf16.msra.mxu0 0
      %4167 = vmatprep.subr.bf16.mxu0 0
      %4168 = vmatpush1.bf16.msra.mxu0 0
      %4169 = vmatprep.subr.bf16.mxu0 0
      %4170 = vmatpush1.bf16.msra.mxu0 0
      %4171 = vmatprep.subr.bf16.mxu0 0
      %4172 = vmatpush1.bf16.msra.mxu0 0
      %4173 = vmatprep.subr.bf16.mxu0 0
      %4174 = vmatpush1.bf16.msra.mxu0 0
      %4175 = vmatprep.subr.bf16.mxu0 0
      %4176 = vmatpush1.bf16.msra.mxu0 0
      %4177 = vmatprep.subr.bf16.mxu0 0
      %4178 = vmatpush1.bf16.msra.mxu0 0
      %4179 = vmatprep.subr.bf16.mxu0 0
      %4180 = vmatpush1.bf16.msra.mxu0 0
      %4181 = vmatprep.subr.bf16.mxu0 0
      %4182 = vmatpush1.bf16.msra.mxu0 0
      %4183 = vmatprep.mubr.bf16.mxu0 0
      %4184 = vmatmul.mubr.bf16.gmra.mrb[0].mxu0 %v4081
      %v4185 = vpop.f32.mrb[0].mxu0
      %v4186 = vadd.f32 0.0, %v4185
      %v4187 = vpop.f32.mrb[0].mxu0
      %v4188 = vadd.f32 0.0, %v4187
      %v4189 = vpop.f32.mrb[0].mxu0
      %v4190 = vpop.f32.mrb[0].mxu0
      %4191 = vdwg.mxu0
      %4192 = vmatprep.subr.bf16.mxu0 %v4099
      %4193 = vmatpush1.bf16.msra.mxu0 %v4096
      %4194 = vmatprep.subr.bf16.mxu0 0
      %4195 = vmatpush1.bf16.msra.mxu0 0
      %4196 = vmatprep.subr.bf16.mxu0 0
      %4197 = vmatpush1.bf16.msra.mxu0 0
      %4198 = vmatprep.subr.bf16.mxu0 0
      %4199 = vmatpush1.bf16.msra.mxu0 0
      %4200 = vmatprep.subr.bf16.mxu0 0
      %4201 = vmatpush1.bf16.msra.mxu0 0
      %4202 = vmatprep.subr.bf16.mxu0 0
      %4203 = vmatpush1.bf16.msra.mxu0 0
      %4204 = vmatprep.subr.bf16.mxu0 0
      %4205 = vmatpush1.bf16.msra.mxu0 0
      %4206 = vmatprep.subr.bf16.mxu0 0
      %4207 = vmatpush1.bf16.msra.mxu0 0
      %4208 = vmatprep.subr.bf16.mxu0 0
      %4209 = vmatpush1.bf16.msra.mxu0 0
      %4210 = vmatprep.subr.bf16.mxu0 0
      %4211 = vmatpush1.bf16.msra.mxu0 0
      %4212 = vmatprep.subr.bf16.mxu0 0
      %4213 = vmatpush1.bf16.msra.mxu0 0
      %4214 = vmatprep.subr.bf16.mxu0 0
      %4215 = vmatpush1.bf16.msra.mxu0 0
      %4216 = vmatprep.subr.bf16.mxu0 0
      %4217 = vmatpush1.bf16.msra.mxu0 0
      %4218 = vmatprep.subr.bf16.mxu0 0
      %4219 = vmatpush1.bf16.msra.mxu0 0
      %4220 = vmatprep.subr.bf16.mxu0 0
      %4221 = vmatpush1.bf16.msra.mxu0 0
      %4222 = vmatprep.subr.bf16.mxu0 0
      %4223 = vmatpush1.bf16.msra.mxu0 0
      %4224 = vmatprep.mubr.bf16.mxu0 0
      %4225 = vmatmul.mubr.bf16.gmra.mrb[0].mxu0 %v4081
      %v4226 = vpop.f32.mrb[0].mxu0
      %v4227 = vadd.f32 0.0, %v4226
      %v4228 = vpop.f32.mrb[0].mxu0
      %v4229 = vadd.f32 0.0, %v4228
      %v4230 = vpop.f32.mrb[0].mxu0
      %v4231 = vpop.f32.mrb[0].mxu0
      %4232 = vdwg.mxu0
      %4233 = vmatprep.subr.bf16.mxu0 %v4105
      %4234 = vmatpush1.bf16.msra.mxu0 %v4102
      %4235 = vmatprep.subr.bf16.mxu0 0
      %4236 = vmatpush1.bf16.msra.mxu0 0
      %4237 = vmatprep.subr.bf16.mxu0 0
      %4238 = vmatpush1.bf16.msra.mxu0 0
      %4239 = vmatprep.subr.bf16.mxu0 0
      %4240 = vmatpush1.bf16.msra.mxu0 0
      %4241 = vmatprep.subr.bf16.mxu0 0
      %4242 = vmatpush1.bf16.msra.mxu0 0
      %4243 = vmatprep.subr.bf16.mxu0 0
      %4244 = vmatpush1.bf16.msra.mxu0 0
      %4245 = vmatprep.subr.bf16.mxu0 0
      %4246 = vmatpush1.bf16.msra.mxu0 0
      %4247 = vmatprep.subr.bf16.mxu0 0
      %4248 = vmatpush1.bf16.msra.mxu0 0
      %4249 = vmatprep.subr.bf16.mxu0 0
      %4250 = vmatpush1.bf16.msra.mxu0 0
      %4251 = vmatprep.subr.bf16.mxu0 0
      %4252 = vmatpush1.bf16.msra.mxu0 0
      %4253 = vmatprep.subr.bf16.mxu0 0
      %4254 = vmatpush1.bf16.msra.mxu0 0
      %4255 = vmatprep.subr.bf16.mxu0 0
      %4256 = vmatpush1.bf16.msra.mxu0 0
      %4257 = vmatprep.subr.bf16.mxu0 0
      %4258 = vmatpush1.bf16.msra.mxu0 0
      %4259 = vmatprep.subr.bf16.mxu0 0
      %4260 = vmatpush1.bf16.msra.mxu0 0
      %4261 = vmatprep.subr.bf16.mxu0 0
      %4262 = vmatpush1.bf16.msra.mxu0 0
      %4263 = vmatprep.subr.bf16.mxu0 0
      %4264 = vmatpush1.bf16.msra.mxu0 0
      %4265 = vmatprep.mubr.bf16.mxu0 0
      %4266 = vmatmul.mubr.bf16.gmra.mrb[0].mxu0 %v4081
      %v4267 = vpop.f32.mrb[0].mxu0
      %v4268 = vadd.f32 0.0, %v4267
      %v4269 = vpop.f32.mrb[0].mxu0
      %v4270 = vadd.f32 0.0, %v4269
      %v4271 = vpop.f32.mrb[0].mxu0
      %v4272 = vpop.f32.mrb[0].mxu0
      %4273 = vdwg.mxu0
      %4274 = vmatprep.subr.bf16.mxu0 0
      %4275 = vmatpush1.bf16.msra.mxu0 %v4108
      %4276 = vmatprep.subr.bf16.mxu0 0
      %4277 = vmatpush1.bf16.msra.mxu0 0
      %4278 = vmatprep.subr.bf16.mxu0 0
      %4279 = vmatpush1.bf16.msra.mxu0 0
      %4280 = vmatprep.subr.bf16.mxu0 0
      %4281 = vmatpush1.bf16.msra.mxu0 0
      %4282 = vmatprep.subr.bf16.mxu0 0
      %4283 = vmatpush1.bf16.msra.mxu0 0
      %4284 = vmatprep.subr.bf16.mxu0 0
      %4285 = vmatpush1.bf16.msra.mxu0 0
      %4286 = vmatprep.subr.bf16.mxu0 0
      %4287 = vmatpush1.bf16.msra.mxu0 0
      %4288 = vmatprep.subr.bf16.mxu0 0
      %4289 = vmatpush1.bf16.msra.mxu0 0
      %4290 = vmatprep.subr.bf16.mxu0 0
      %4291 = vmatpush1.bf16.msra.mxu0 0
      %4292 = vmatprep.subr.bf16.mxu0 0
      %4293 = vmatpush1.bf16.msra.mxu0 0
      %4294 = vmatprep.subr.bf16.mxu0 0
      %4295 = vmatpush1.bf16.msra.mxu0 0
      %4296 = vmatprep.subr.bf16.mxu0 0
      %4297 = vmatpush1.bf16.msra.mxu0 0
      %4298 = vmatprep.subr.bf16.mxu0 0
      %4299 = vmatpush1.bf16.msra.mxu0 0
      %4300 = vmatprep.subr.bf16.mxu0 0
      %4301 = vmatpush1.bf16.msra.mxu0 0
      %4302 = vmatprep.subr.bf16.mxu0 0
      %4303 = vmatpush1.bf16.msra.mxu0 0
      %4304 = vmatprep.subr.bf16.mxu0 0
      %4305 = vmatpush1.bf16.msra.mxu0 0
      %4306 = vmatprep.mubr.bf16.mxu0 0
      %4307 = vmatmul.mubr.bf16.gmra.mrb[0].mxu0 %v4081
      %v4308 = vpop.f32.mrb[0].mxu0
      %v4309 = vadd.f32 0.0, %v4308
      %v4310 = vpop.f32.mrb[0].mxu0
      %v4311 = vpop.f32.mrb[0].mxu0
      %v4312 = vpop.f32.mrb[0].mxu0
      %4313 = vdwg.mxu0
      %v4314 = vadd.f32 %v3991, %v4145
      %v4315 = vadd.f32 %v3992, %v4147
      %v4316 = vadd.f32 %v3993, %v4186
      %v4317 = vadd.f32 %v3994, %v4188
      %v4318 = vadd.f32 %v3995, %v4227
      %v4319 = vadd.f32 %v3996, %v4229
      %v4320 = vadd.f32 %v3997, %v4268
      %v4321 = vadd.f32 %v3998, %v4270
      %v4322 = vadd.f32 %v3999, %v4309
      %v4323 = vld [vmem:[%s165] sm:$0xff]
      %v4324 = vld [vmem:[%s165 + $0x8] sm:$0xff]
      %v4325 = vld [vmem:[%s165 + $0x10] sm:$0xf]
      %s4326 = scalar_lea.vmem %s1, 26
      %v4327 = vld [vmem:[%s4326] sm:$0x3]
      %v4331 = vcombine.high %v4323, %v4323
      %v4333 = vunpack.c.l.s4 1983009808
      %v4334 = vunpack.c.0.s8 %v4333
      %v4335 = vlaneseq
      %v4336 = vshrl.u32 %v4335, 7
      %v4337 = vsub.s32 %v4334, %v4336
      %v4338 = vrot.slane %v4323, %v4337
      %v4340 = vunpack.c.l.s4 1983009808
      %v4341 = vunpack.c.0.s8 %v4340
      %v4342 = vlaneseq
      %v4343 = vshrl.u32 %v4342, 7
      %v4344 = vsub.s32 %v4341, %v4343
      %v4345 = vrot.slane %v4331, %v4344
      %v4346 = vcombine.high %v4338, %v4338
      %v4347 = vcombine.high %v4345, %v4345
      %v4348 = vcombine.high %v4324, %v4324
      %v4350 = vunpack.c.l.s4 1983009808
      %v4351 = vunpack.c.0.s8 %v4350
      %v4352 = vlaneseq
      %v4353 = vshrl.u32 %v4352, 7
      %v4354 = vsub.s32 %v4351, %v4353
      %v4355 = vrot.slane %v4324, %v4354
      %v4357 = vunpack.c.l.s4 1983009808
      %v4358 = vunpack.c.0.s8 %v4357
      %v4359 = vlaneseq
      %v4360 = vshrl.u32 %v4359, 7
      %v4361 = vsub.s32 %v4358, %v4360
      %v4362 = vrot.slane %v4348, %v4361
      %v4363 = vcombine.high %v4355, %v4355
      %v4364 = vcombine.high %v4362, %v4362
      %v4366 = vunpack.c.l.s4 1983009808
      %v4367 = vunpack.c.0.s8 %v4366
      %v4368 = vlaneseq
      %v4369 = vshrl.u32 %v4368, 7
      %v4370 = vsub.s32 %v4367, %v4369
      %v4371 = vrot.slane %v4325, %v4370
      %v4372 = vcombine.high %v4371, %v4371
      %4373 = vrot.lane.b32.xlu0 %v4338, 19
      %v4374 = vpop.permute.xlu0 %4373
      %4375 = vrot.lane.b32.xlu0 %v4346, 19
      %v4376 = vpop.permute.xlu0 %4375
      %4377 = vrot.lane.b32.xlu0 %v4345, 19
      %v4378 = vpop.permute.xlu0 %4377
      %4379 = vrot.lane.b32.xlu0 %v4347, 19
      %v4380 = vpop.permute.xlu0 %4379
      %4381 = vrot.lane.b32.xlu0 %v4355, 19
      %v4382 = vpop.permute.xlu0 %4381
      %4383 = vrot.lane.b32.xlu0 %v4363, 19
      %v4384 = vpop.permute.xlu0 %4383
      %4385 = vrot.lane.b32.xlu0 %v4362, 19
      %v4386 = vpop.permute.xlu0 %4385
      %4387 = vrot.lane.b32.xlu0 %v4364, 19
      %v4388 = vpop.permute.xlu0 %4387
      %4389 = vrot.lane.b32.xlu0 %v4371, 19
      %v4390 = vpop.permute.xlu0 %4389
      %4391 = vrot.lane.b32.xlu0 %v4372, 19
      %v4392 = vpop.permute.xlu0 %4391
      %vm4393 = vcmask 154624
      %v4394 = vsel %vm4393, %v4374, %v4376
      %v4395 = vsel %vm4393, %v4376, %v4378
      %v4396 = vsel %vm4393, %v4378, %v4380
      %v4397 = vsel %vm4393, %v4380, %v4382
      %v4398 = vsel %vm4393, %v4382, %v4384
      %v4399 = vsel %vm4393, %v4384, %v4386
      %v4400 = vsel %vm4393, %v4386, %v4388
      %v4401 = vsel %vm4393, %v4388, %v4390
      %v4402 = vsel %vm4393, %v4390, %v4392
      %v4404 = vsel %vm256, %v4327, 0
      %v4407 = vsel %vm260, %v4394, 0
      %v4410 = vsel %vm260, %v4395, 0
      %v4413 = vsel %vm260, %v4396, 0
      %v4416 = vsel %vm260, %v4397, 0
      %v4419 = vsel %vm260, %v4398, 0
      %v4422 = vsel %vm260, %v4399, 0
      %v4425 = vsel %vm260, %v4400, 0
      %v4428 = vsel %vm260, %v4401, 0
      %v4431 = vsel %vm260, %v4402, 0
      %4433 = vmatprep.subr.bf16.mxu0 %v4410
      %4434 = vmatpush1.bf16.msra.mxu0 %v4407
      %4435 = vmatprep.subr.bf16.mxu0 0
      %4436 = vmatpush1.bf16.msra.mxu0 0
      %4437 = vmatprep.subr.bf16.mxu0 0
      %4438 = vmatpush1.bf16.msra.mxu0 0
      %4439 = vmatprep.subr.bf16.mxu0 0
      %4440 = vmatpush1.bf16.msra.mxu0 0
      %4441 = vmatprep.subr.bf16.mxu0 0
      %4442 = vmatpush1.bf16.msra.mxu0 0
      %4443 = vmatprep.subr.bf16.mxu0 0
      %4444 = vmatpush1.bf16.msra.mxu0 0
      %4445 = vmatprep.subr.bf16.mxu0 0
      %4446 = vmatpush1.bf16.msra.mxu0 0
      %4447 = vmatprep.subr.bf16.mxu0 0
      %4448 = vmatpush1.bf16.msra.mxu0 0
      %4449 = vmatprep.subr.bf16.mxu0 0
      %4450 = vmatpush1.bf16.msra.mxu0 0
      %4451 = vmatprep.subr.bf16.mxu0 0
      %4452 = vmatpush1.bf16.msra.mxu0 0
      %4453 = vmatprep.subr.bf16.mxu0 0
      %4454 = vmatpush1.bf16.msra.mxu0 0
      %4455 = vmatprep.subr.bf16.mxu0 0
      %4456 = vmatpush1.bf16.msra.mxu0 0
      %4457 = vmatprep.subr.bf16.mxu0 0
      %4458 = vmatpush1.bf16.msra.mxu0 0
      %4459 = vmatprep.subr.bf16.mxu0 0
      %4460 = vmatpush1.bf16.msra.mxu0 0
      %4461 = vmatprep.subr.bf16.mxu0 0
      %4462 = vmatpush1.bf16.msra.mxu0 0
      %4463 = vmatprep.subr.bf16.mxu0 0
      %4464 = vmatpush1.bf16.msra.mxu0 0
      %4465 = vmatprep.mubr.bf16.mxu0 0
      %4466 = vmatmul.mubr.bf16.gmra.mrb[0].mxu0 %v4404
      %v4467 = vpop.f32.mrb[0].mxu0
      %v4468 = vadd.f32 0.0, %v4467
      %v4469 = vpop.f32.mrb[0].mxu0
      %v4470 = vadd.f32 0.0, %v4469
      %v4471 = vpop.f32.mrb[0].mxu0
      %v4472 = vpop.f32.mrb[0].mxu0
      %4473 = vdwg.mxu0
      %4474 = vmatprep.subr.bf16.mxu0 %v4416
      %4475 = vmatpush1.bf16.msra.mxu0 %v4413
      %4476 = vmatprep.subr.bf16.mxu0 0
      %4477 = vmatpush1.bf16.msra.mxu0 0
      %4478 = vmatprep.subr.bf16.mxu0 0
      %4479 = vmatpush1.bf16.msra.mxu0 0
      %4480 = vmatprep.subr.bf16.mxu0 0
      %4481 = vmatpush1.bf16.msra.mxu0 0
      %4482 = vmatprep.subr.bf16.mxu0 0
      %4483 = vmatpush1.bf16.msra.mxu0 0
      %4484 = vmatprep.subr.bf16.mxu0 0
      %4485 = vmatpush1.bf16.msra.mxu0 0
      %4486 = vmatprep.subr.bf16.mxu0 0
      %4487 = vmatpush1.bf16.msra.mxu0 0
      %4488 = vmatprep.subr.bf16.mxu0 0
      %4489 = vmatpush1.bf16.msra.mxu0 0
      %4490 = vmatprep.subr.bf16.mxu0 0
      %4491 = vmatpush1.bf16.msra.mxu0 0
      %4492 = vmatprep.subr.bf16.mxu0 0
      %4493 = vmatpush1.bf16.msra.mxu0 0
      %4494 = vmatprep.subr.bf16.mxu0 0
      %4495 = vmatpush1.bf16.msra.mxu0 0
      %4496 = vmatprep.subr.bf16.mxu0 0
      %4497 = vmatpush1.bf16.msra.mxu0 0
      %4498 = vmatprep.subr.bf16.mxu0 0
      %4499 = vmatpush1.bf16.msra.mxu0 0
      %4500 = vmatprep.subr.bf16.mxu0 0
      %4501 = vmatpush1.bf16.msra.mxu0 0
      %4502 = vmatprep.subr.bf16.mxu0 0
      %4503 = vmatpush1.bf16.msra.mxu0 0
      %4504 = vmatprep.subr.bf16.mxu0 0
      %4505 = vmatpush1.bf16.msra.mxu0 0
      %4506 = vmatprep.mubr.bf16.mxu0 0
      %4507 = vmatmul.mubr.bf16.gmra.mrb[0].mxu0 %v4404
      %v4508 = vpop.f32.mrb[0].mxu0
      %v4509 = vadd.f32 0.0, %v4508
      %v4510 = vpop.f32.mrb[0].mxu0
      %v4511 = vadd.f32 0.0, %v4510
      %v4512 = vpop.f32.mrb[0].mxu0
      %v4513 = vpop.f32.mrb[0].mxu0
      %4514 = vdwg.mxu0
      %4515 = vmatprep.subr.bf16.mxu0 %v4422
      %4516 = vmatpush1.bf16.msra.mxu0 %v4419
      %4517 = vmatprep.subr.bf16.mxu0 0
      %4518 = vmatpush1.bf16.msra.mxu0 0
      %4519 = vmatprep.subr.bf16.mxu0 0
      %4520 = vmatpush1.bf16.msra.mxu0 0
      %4521 = vmatprep.subr.bf16.mxu0 0
      %4522 = vmatpush1.bf16.msra.mxu0 0
      %4523 = vmatprep.subr.bf16.mxu0 0
      %4524 = vmatpush1.bf16.msra.mxu0 0
      %4525 = vmatprep.subr.bf16.mxu0 0
      %4526 = vmatpush1.bf16.msra.mxu0 0
      %4527 = vmatprep.subr.bf16.mxu0 0
      %4528 = vmatpush1.bf16.msra.mxu0 0
      %4529 = vmatprep.subr.bf16.mxu0 0
      %4530 = vmatpush1.bf16.msra.mxu0 0
      %4531 = vmatprep.subr.bf16.mxu0 0
      %4532 = vmatpush1.bf16.msra.mxu0 0
      %4533 = vmatprep.subr.bf16.mxu0 0
      %4534 = vmatpush1.bf16.msra.mxu0 0
      %4535 = vmatprep.subr.bf16.mxu0 0
      %4536 = vmatpush1.bf16.msra.mxu0 0
      %4537 = vmatprep.subr.bf16.mxu0 0
      %4538 = vmatpush1.bf16.msra.mxu0 0
      %4539 = vmatprep.subr.bf16.mxu0 0
      %4540 = vmatpush1.bf16.msra.mxu0 0
      %4541 = vmatprep.subr.bf16.mxu0 0
      %4542 = vmatpush1.bf16.msra.mxu0 0
      %4543 = vmatprep.subr.bf16.mxu0 0
      %4544 = vmatpush1.bf16.msra.mxu0 0
      %4545 = vmatprep.subr.bf16.mxu0 0
      %4546 = vmatpush1.bf16.msra.mxu0 0
      %4547 = vmatprep.mubr.bf16.mxu0 0
      %4548 = vmatmul.mubr.bf16.gmra.mrb[0].mxu0 %v4404
      %v4549 = vpop.f32.mrb[0].mxu0
      %v4550 = vadd.f32 0.0, %v4549
      %v4551 = vpop.f32.mrb[0].mxu0
      %v4552 = vadd.f32 0.0, %v4551
      %v4553 = vpop.f32.mrb[0].mxu0
      %v4554 = vpop.f32.mrb[0].mxu0
      %4555 = vdwg.mxu0
      %4556 = vmatprep.subr.bf16.mxu0 %v4428
      %4557 = vmatpush1.bf16.msra.mxu0 %v4425
      %4558 = vmatprep.subr.bf16.mxu0 0
      %4559 = vmatpush1.bf16.msra.mxu0 0
      %4560 = vmatprep.subr.bf16.mxu0 0
      %4561 = vmatpush1.bf16.msra.mxu0 0
      %4562 = vmatprep.subr.bf16.mxu0 0
      %4563 = vmatpush1.bf16.msra.mxu0 0
      %4564 = vmatprep.subr.bf16.mxu0 0
      %4565 = vmatpush1.bf16.msra.mxu0 0
      %4566 = vmatprep.subr.bf16.mxu0 0
      %4567 = vmatpush1.bf16.msra.mxu0 0
      %4568 = vmatprep.subr.bf16.mxu0 0
      %4569 = vmatpush1.bf16.msra.mxu0 0
      %4570 = vmatprep.subr.bf16.mxu0 0
      %4571 = vmatpush1.bf16.msra.mxu0 0
      %4572 = vmatprep.subr.bf16.mxu0 0
      %4573 = vmatpush1.bf16.msra.mxu0 0
      %4574 = vmatprep.subr.bf16.mxu0 0
      %4575 = vmatpush1.bf16.msra.mxu0 0
      %4576 = vmatprep.subr.bf16.mxu0 0
      %4577 = vmatpush1.bf16.msra.mxu0 0
      %4578 = vmatprep.subr.bf16.mxu0 0
      %4579 = vmatpush1.bf16.msra.mxu0 0
      %4580 = vmatprep.subr.bf16.mxu0 0
      %4581 = vmatpush1.bf16.msra.mxu0 0
      %4582 = vmatprep.subr.bf16.mxu0 0
      %4583 = vmatpush1.bf16.msra.mxu0 0
      %4584 = vmatprep.subr.bf16.mxu0 0
      %4585 = vmatpush1.bf16.msra.mxu0 0
      %4586 = vmatprep.subr.bf16.mxu0 0
      %4587 = vmatpush1.bf16.msra.mxu0 0
      %4588 = vmatprep.mubr.bf16.mxu0 0
      %4589 = vmatmul.mubr.bf16.gmra.mrb[0].mxu0 %v4404
      %v4590 = vpop.f32.mrb[0].mxu0
      %v4591 = vadd.f32 0.0, %v4590
      %v4592 = vpop.f32.mrb[0].mxu0
      %v4593 = vadd.f32 0.0, %v4592
      %v4594 = vpop.f32.mrb[0].mxu0
      %v4595 = vpop.f32.mrb[0].mxu0
      %4596 = vdwg.mxu0
      %4597 = vmatprep.subr.bf16.mxu0 0
      %4598 = vmatpush1.bf16.msra.mxu0 %v4431
      %4599 = vmatprep.subr.bf16.mxu0 0
      %4600 = vmatpush1.bf16.msra.mxu0 0
      %4601 = vmatprep.subr.bf16.mxu0 0
      %4602 = vmatpush1.bf16.msra.mxu0 0
      %4603 = vmatprep.subr.bf16.mxu0 0
      %4604 = vmatpush1.bf16.msra.mxu0 0
      %4605 = vmatprep.subr.bf16.mxu0 0
      %4606 = vmatpush1.bf16.msra.mxu0 0
      %4607 = vmatprep.subr.bf16.mxu0 0
      %4608 = vmatpush1.bf16.msra.mxu0 0
      %4609 = vmatprep.subr.bf16.mxu0 0
      %4610 = vmatpush1.bf16.msra.mxu0 0
      %4611 = vmatprep.subr.bf16.mxu0 0
      %4612 = vmatpush1.bf16.msra.mxu0 0
      %4613 = vmatprep.subr.bf16.mxu0 0
      %4614 = vmatpush1.bf16.msra.mxu0 0
      %4615 = vmatprep.subr.bf16.mxu0 0
      %4616 = vmatpush1.bf16.msra.mxu0 0
      %4617 = vmatprep.subr.bf16.mxu0 0
      %4618 = vmatpush1.bf16.msra.mxu0 0
      %4619 = vmatprep.subr.bf16.mxu0 0
      %4620 = vmatpush1.bf16.msra.mxu0 0
      %4621 = vmatprep.subr.bf16.mxu0 0
      %4622 = vmatpush1.bf16.msra.mxu0 0
      %4623 = vmatprep.subr.bf16.mxu0 0
      %4624 = vmatpush1.bf16.msra.mxu0 0
      %4625 = vmatprep.subr.bf16.mxu0 0
      %4626 = vmatpush1.bf16.msra.mxu0 0
      %4627 = vmatprep.subr.bf16.mxu0 0
      %4628 = vmatpush1.bf16.msra.mxu0 0
      %4629 = vmatprep.mubr.bf16.mxu0 0
      %4630 = vmatmul.mubr.bf16.gmra.mrb[0].mxu0 %v4404
      %v4631 = vpop.f32.mrb[0].mxu0
      %v4632 = vadd.f32 0.0, %v4631
      %v4633 = vpop.f32.mrb[0].mxu0
      %v4634 = vpop.f32.mrb[0].mxu0
      %v4635 = vpop.f32.mrb[0].mxu0
      %4636 = vdwg.mxu0
      %v4637 = vadd.f32 %v4314, %v4468
      %v4638 = vadd.f32 %v4315, %v4470
      %v4639 = vadd.f32 %v4316, %v4509
      %v4640 = vadd.f32 %v4317, %v4511
      %v4641 = vadd.f32 %v4318, %v4550
      %v4642 = vadd.f32 %v4319, %v4552
      %v4643 = vadd.f32 %v4320, %v4591
      %v4644 = vadd.f32 %v4321, %v4593
      %v4645 = vadd.f32 %v4322, %v4632
      %v4646 = vld [vmem:[%s165] sm:$0xff]
      %v4647 = vld [vmem:[%s165 + $0x8] sm:$0xff]
      %v4648 = vld [vmem:[%s165 + $0x10] sm:$0xf]
      %s4649 = scalar_lea.vmem %s1, 28
      %v4650 = vld [vmem:[%s4649] sm:$0x3]
      %v4654 = vcombine.high %v4646, %v4646
      %v4656 = vunpack.c.l.s4 1983009808
      %v4657 = vunpack.c.0.s8 %v4656
      %v4658 = vlaneseq
      %v4659 = vshrl.u32 %v4658, 7
      %v4660 = vsub.s32 %v4657, %v4659
      %v4661 = vrot.slane %v4646, %v4660
      %v4663 = vunpack.c.l.s4 1983009808
      %v4664 = vunpack.c.0.s8 %v4663
      %v4665 = vlaneseq
      %v4666 = vshrl.u32 %v4665, 7
      %v4667 = vsub.s32 %v4664, %v4666
      %v4668 = vrot.slane %v4654, %v4667
      %v4669 = vcombine.high %v4661, %v4661
      %v4670 = vcombine.high %v4668, %v4668
      %v4671 = vcombine.high %v4647, %v4647
      %v4673 = vunpack.c.l.s4 1983009808
      %v4674 = vunpack.c.0.s8 %v4673
      %v4675 = vlaneseq
      %v4676 = vshrl.u32 %v4675, 7
      %v4677 = vsub.s32 %v4674, %v4676
      %v4678 = vrot.slane %v4647, %v4677
      %v4680 = vunpack.c.l.s4 1983009808
      %v4681 = vunpack.c.0.s8 %v4680
      %v4682 = vlaneseq
      %v4683 = vshrl.u32 %v4682, 7
      %v4684 = vsub.s32 %v4681, %v4683
      %v4685 = vrot.slane %v4671, %v4684
      %v4686 = vcombine.high %v4678, %v4678
      %v4687 = vcombine.high %v4685, %v4685
      %v4689 = vunpack.c.l.s4 1983009808
      %v4690 = vunpack.c.0.s8 %v4689
      %v4691 = vlaneseq
      %v4692 = vshrl.u32 %v4691, 7
      %v4693 = vsub.s32 %v4690, %v4692
      %v4694 = vrot.slane %v4648, %v4693
      %v4695 = vcombine.high %v4694, %v4694
      %4696 = vrot.lane.b32.xlu0 %v4661, 18
      %v4697 = vpop.permute.xlu0 %4696
      %4698 = vrot.lane.b32.xlu0 %v4669, 18
      %v4699 = vpop.permute.xlu0 %4698
      %4700 = vrot.lane.b32.xlu0 %v4668, 18
      %v4701 = vpop.permute.xlu0 %4700
      %4702 = vrot.lane.b32.xlu0 %v4670, 18
      %v4703 = vpop.permute.xlu0 %4702
      %4704 = vrot.lane.b32.xlu0 %v4678, 18
      %v4705 = vpop.permute.xlu0 %4704
      %4706 = vrot.lane.b32.xlu0 %v4686, 18
      %v4707 = vpop.permute.xlu0 %4706
      %4708 = vrot.lane.b32.xlu0 %v4685, 18
      %v4709 = vpop.permute.xlu0 %4708
      %4710 = vrot.lane.b32.xlu0 %v4687, 18
      %v4711 = vpop.permute.xlu0 %4710
      %4712 = vrot.lane.b32.xlu0 %v4694, 18
      %v4713 = vpop.permute.xlu0 %4712
      %4714 = vrot.lane.b32.xlu0 %v4695, 18
      %v4715 = vpop.permute.xlu0 %4714
      %vm4716 = vcmask 146432
      %v4717 = vsel %vm4716, %v4697, %v4699
      %v4718 = vsel %vm4716, %v4699, %v4701
      %v4719 = vsel %vm4716, %v4701, %v4703
      %v4720 = vsel %vm4716, %v4703, %v4705
      %v4721 = vsel %vm4716, %v4705, %v4707
      %v4722 = vsel %vm4716, %v4707, %v4709
      %v4723 = vsel %vm4716, %v4709, %v4711
      %v4724 = vsel %vm4716, %v4711, %v4713
      %v4725 = vsel %vm4716, %v4713, %v4715
      %v4727 = vsel %vm256, %v4650, 0
      %v4730 = vsel %vm260, %v4717, 0
      %v4733 = vsel %vm260, %v4718, 0
      %v4736 = vsel %vm260, %v4719, 0
      %v4739 = vsel %vm260, %v4720, 0
      %v4742 = vsel %vm260, %v4721, 0
      %v4745 = vsel %vm260, %v4722, 0
      %v4748 = vsel %vm260, %v4723, 0
      %v4751 = vsel %vm260, %v4724, 0
      %v4754 = vsel %vm260, %v4725, 0
      %4756 = vmatprep.subr.bf16.mxu0 %v4733
      %4757 = vmatpush1.bf16.msra.mxu0 %v4730
      %4758 = vmatprep.subr.bf16.mxu0 0
      %4759 = vmatpush1.bf16.msra.mxu0 0
      %4760 = vmatprep.subr.bf16.mxu0 0
      %4761 = vmatpush1.bf16.msra.mxu0 0
      %4762 = vmatprep.subr.bf16.mxu0 0
      %4763 = vmatpush1.bf16.msra.mxu0 0
      %4764 = vmatprep.subr.bf16.mxu0 0
      %4765 = vmatpush1.bf16.msra.mxu0 0
      %4766 = vmatprep.subr.bf16.mxu0 0
      %4767 = vmatpush1.bf16.msra.mxu0 0
      %4768 = vmatprep.subr.bf16.mxu0 0
      %4769 = vmatpush1.bf16.msra.mxu0 0
      %4770 = vmatprep.subr.bf16.mxu0 0
      %4771 = vmatpush1.bf16.msra.mxu0 0
      %4772 = vmatprep.subr.bf16.mxu0 0
      %4773 = vmatpush1.bf16.msra.mxu0 0
      %4774 = vmatprep.subr.bf16.mxu0 0
      %4775 = vmatpush1.bf16.msra.mxu0 0
      %4776 = vmatprep.subr.bf16.mxu0 0
      %4777 = vmatpush1.bf16.msra.mxu0 0
      %4778 = vmatprep.subr.bf16.mxu0 0
      %4779 = vmatpush1.bf16.msra.mxu0 0
      %4780 = vmatprep.subr.bf16.mxu0 0
      %4781 = vmatpush1.bf16.msra.mxu0 0
      %4782 = vmatprep.subr.bf16.mxu0 0
      %4783 = vmatpush1.bf16.msra.mxu0 0
      %4784 = vmatprep.subr.bf16.mxu0 0
      %4785 = vmatpush1.bf16.msra.mxu0 0
      %4786 = vmatprep.subr.bf16.mxu0 0
      %4787 = vmatpush1.bf16.msra.mxu0 0
      %4788 = vmatprep.mubr.bf16.mxu0 0
      %4789 = vmatmul.mubr.bf16.gmra.mrb[0].mxu0 %v4727
      %v4790 = vpop.f32.mrb[0].mxu0
      %v4791 = vadd.f32 0.0, %v4790
      %v4792 = vpop.f32.mrb[0].mxu0
      %v4793 = vadd.f32 0.0, %v4792
      %v4794 = vpop.f32.mrb[0].mxu0
      %v4795 = vpop.f32.mrb[0].mxu0
      %4796 = vdwg.mxu0
      %4797 = vmatprep.subr.bf16.mxu0 %v4739
      %4798 = vmatpush1.bf16.msra.mxu0 %v4736
      %4799 = vmatprep.subr.bf16.mxu0 0
      %4800 = vmatpush1.bf16.msra.mxu0 0
      %4801 = vmatprep.subr.bf16.mxu0 0
      %4802 = vmatpush1.bf16.msra.mxu0 0
      %4803 = vmatprep.subr.bf16.mxu0 0
      %4804 = vmatpush1.bf16.msra.mxu0 0
      %4805 = vmatprep.subr.bf16.mxu0 0
      %4806 = vmatpush1.bf16.msra.mxu0 0
      %4807 = vmatprep.subr.bf16.mxu0 0
      %4808 = vmatpush1.bf16.msra.mxu0 0
      %4809 = vmatprep.subr.bf16.mxu0 0
      %4810 = vmatpush1.bf16.msra.mxu0 0
      %4811 = vmatprep.subr.bf16.mxu0 0
      %4812 = vmatpush1.bf16.msra.mxu0 0
      %4813 = vmatprep.subr.bf16.mxu0 0
      %4814 = vmatpush1.bf16.msra.mxu0 0
      %4815 = vmatprep.subr.bf16.mxu0 0
      %4816 = vmatpush1.bf16.msra.mxu0 0
      %4817 = vmatprep.subr.bf16.mxu0 0
      %4818 = vmatpush1.bf16.msra.mxu0 0
      %4819 = vmatprep.subr.bf16.mxu0 0
      %4820 = vmatpush1.bf16.msra.mxu0 0
      %4821 = vmatprep.subr.bf16.mxu0 0
      %4822 = vmatpush1.bf16.msra.mxu0 0
      %4823 = vmatprep.subr.bf16.mxu0 0
      %4824 = vmatpush1.bf16.msra.mxu0 0
      %4825 = vmatprep.subr.bf16.mxu0 0
      %4826 = vmatpush1.bf16.msra.mxu0 0
      %4827 = vmatprep.subr.bf16.mxu0 0
      %4828 = vmatpush1.bf16.msra.mxu0 0
      %4829 = vmatprep.mubr.bf16.mxu0 0
      %4830 = vmatmul.mubr.bf16.gmra.mrb[0].mxu0 %v4727
      %v4831 = vpop.f32.mrb[0].mxu0
      %v4832 = vadd.f32 0.0, %v4831
      %v4833 = vpop.f32.mrb[0].mxu0
      %v4834 = vadd.f32 0.0, %v4833
      %v4835 = vpop.f32.mrb[0].mxu0
      %v4836 = vpop.f32.mrb[0].mxu0
      %4837 = vdwg.mxu0
      %4838 = vmatprep.subr.bf16.mxu0 %v4745
      %4839 = vmatpush1.bf16.msra.mxu0 %v4742
      %4840 = vmatprep.subr.bf16.mxu0 0
      %4841 = vmatpush1.bf16.msra.mxu0 0
      %4842 = vmatprep.subr.bf16.mxu0 0
      %4843 = vmatpush1.bf16.msra.mxu0 0
      %4844 = vmatprep.subr.bf16.mxu0 0
      %4845 = vmatpush1.bf16.msra.mxu0 0
      %4846 = vmatprep.subr.bf16.mxu0 0
      %4847 = vmatpush1.bf16.msra.mxu0 0
      %4848 = vmatprep.subr.bf16.mxu0 0
      %4849 = vmatpush1.bf16.msra.mxu0 0
      %4850 = vmatprep.subr.bf16.mxu0 0
      %4851 = vmatpush1.bf16.msra.mxu0 0
      %4852 = vmatprep.subr.bf16.mxu0 0
      %4853 = vmatpush1.bf16.msra.mxu0 0
      %4854 = vmatprep.subr.bf16.mxu0 0
      %4855 = vmatpush1.bf16.msra.mxu0 0
      %4856 = vmatprep.subr.bf16.mxu0 0
      %4857 = vmatpush1.bf16.msra.mxu0 0
      %4858 = vmatprep.subr.bf16.mxu0 0
      %4859 = vmatpush1.bf16.msra.mxu0 0
      %4860 = vmatprep.subr.bf16.mxu0 0
      %4861 = vmatpush1.bf16.msra.mxu0 0
      %4862 = vmatprep.subr.bf16.mxu0 0
      %4863 = vmatpush1.bf16.msra.mxu0 0
      %4864 = vmatprep.subr.bf16.mxu0 0
      %4865 = vmatpush1.bf16.msra.mxu0 0
      %4866 = vmatprep.subr.bf16.mxu0 0
      %4867 = vmatpush1.bf16.msra.mxu0 0
      %4868 = vmatprep.subr.bf16.mxu0 0
      %4869 = vmatpush1.bf16.msra.mxu0 0
      %4870 = vmatprep.mubr.bf16.mxu0 0
      %4871 = vmatmul.mubr.bf16.gmra.mrb[0].mxu0 %v4727
      %v4872 = vpop.f32.mrb[0].mxu0
      %v4873 = vadd.f32 0.0, %v4872
      %v4874 = vpop.f32.mrb[0].mxu0
      %v4875 = vadd.f32 0.0, %v4874
      %v4876 = vpop.f32.mrb[0].mxu0
      %v4877 = vpop.f32.mrb[0].mxu0
      %4878 = vdwg.mxu0
      %4879 = vmatprep.subr.bf16.mxu0 %v4751
      %4880 = vmatpush1.bf16.msra.mxu0 %v4748
      %4881 = vmatprep.subr.bf16.mxu0 0
      %4882 = vmatpush1.bf16.msra.mxu0 0
      %4883 = vmatprep.subr.bf16.mxu0 0
      %4884 = vmatpush1.bf16.msra.mxu0 0
      %4885 = vmatprep.subr.bf16.mxu0 0
      %4886 = vmatpush1.bf16.msra.mxu0 0
      %4887 = vmatprep.subr.bf16.mxu0 0
      %4888 = vmatpush1.bf16.msra.mxu0 0
      %4889 = vmatprep.subr.bf16.mxu0 0
      %4890 = vmatpush1.bf16.msra.mxu0 0
      %4891 = vmatprep.subr.bf16.mxu0 0
      %4892 = vmatpush1.bf16.msra.mxu0 0
      %4893 = vmatprep.subr.bf16.mxu0 0
      %4894 = vmatpush1.bf16.msra.mxu0 0
      %4895 = vmatprep.subr.bf16.mxu0 0
      %4896 = vmatpush1.bf16.msra.mxu0 0
      %4897 = vmatprep.subr.bf16.mxu0 0
      %4898 = vmatpush1.bf16.msra.mxu0 0
      %4899 = vmatprep.subr.bf16.mxu0 0
      %4900 = vmatpush1.bf16.msra.mxu0 0
      %4901 = vmatprep.subr.bf16.mxu0 0
      %4902 = vmatpush1.bf16.msra.mxu0 0
      %4903 = vmatprep.subr.bf16.mxu0 0
      %4904 = vmatpush1.bf16.msra.mxu0 0
      %4905 = vmatprep.subr.bf16.mxu0 0
      %4906 = vmatpush1.bf16.msra.mxu0 0
      %4907 = vmatprep.subr.bf16.mxu0 0
      %4908 = vmatpush1.bf16.msra.mxu0 0
      %4909 = vmatprep.subr.bf16.mxu0 0
      %4910 = vmatpush1.bf16.msra.mxu0 0
      %4911 = vmatprep.mubr.bf16.mxu0 0
      %4912 = vmatmul.mubr.bf16.gmra.mrb[0].mxu0 %v4727
      %v4913 = vpop.f32.mrb[0].mxu0
      %v4914 = vadd.f32 0.0, %v4913
      %v4915 = vpop.f32.mrb[0].mxu0
      %v4916 = vadd.f32 0.0, %v4915
      %v4917 = vpop.f32.mrb[0].mxu0
      %v4918 = vpop.f32.mrb[0].mxu0
      %4919 = vdwg.mxu0
      %4920 = vmatprep.subr.bf16.mxu0 0
      %4921 = vmatpush1.bf16.msra.mxu0 %v4754
      %4922 = vmatprep.subr.bf16.mxu0 0
      %4923 = vmatpush1.bf16.msra.mxu0 0
      %4924 = vmatprep.subr.bf16.mxu0 0
      %4925 = vmatpush1.bf16.msra.mxu0 0
      %4926 = vmatprep.subr.bf16.mxu0 0
      %4927 = vmatpush1.bf16.msra.mxu0 0
      %4928 = vmatprep.subr.bf16.mxu0 0
      %4929 = vmatpush1.bf16.msra.mxu0 0
      %4930 = vmatprep.subr.bf16.mxu0 0
      %4931 = vmatpush1.bf16.msra.mxu0 0
      %4932 = vmatprep.subr.bf16.mxu0 0
      %4933 = vmatpush1.bf16.msra.mxu0 0
      %4934 = vmatprep.subr.bf16.mxu0 0
      %4935 = vmatpush1.bf16.msra.mxu0 0
      %4936 = vmatprep.subr.bf16.mxu0 0
      %4937 = vmatpush1.bf16.msra.mxu0 0
      %4938 = vmatprep.subr.bf16.mxu0 0
      %4939 = vmatpush1.bf16.msra.mxu0 0
      %4940 = vmatprep.subr.bf16.mxu0 0
      %4941 = vmatpush1.bf16.msra.mxu0 0
      %4942 = vmatprep.subr.bf16.mxu0 0
      %4943 = vmatpush1.bf16.msra.mxu0 0
      %4944 = vmatprep.subr.bf16.mxu0 0
      %4945 = vmatpush1.bf16.msra.mxu0 0
      %4946 = vmatprep.subr.bf16.mxu0 0
      %4947 = vmatpush1.bf16.msra.mxu0 0
      %4948 = vmatprep.subr.bf16.mxu0 0
      %4949 = vmatpush1.bf16.msra.mxu0 0
      %4950 = vmatprep.subr.bf16.mxu0 0
      %4951 = vmatpush1.bf16.msra.mxu0 0
      %4952 = vmatprep.mubr.bf16.mxu0 0
      %4953 = vmatmul.mubr.bf16.gmra.mrb[0].mxu0 %v4727
      %v4954 = vpop.f32.mrb[0].mxu0
      %v4955 = vadd.f32 0.0, %v4954
      %v4956 = vpop.f32.mrb[0].mxu0
      %v4957 = vpop.f32.mrb[0].mxu0
      %v4958 = vpop.f32.mrb[0].mxu0
      %4959 = vdwg.mxu0
      %v4960 = vadd.f32 %v4637, %v4791
      %v4961 = vadd.f32 %v4638, %v4793
      %v4962 = vadd.f32 %v4639, %v4832
      %v4963 = vadd.f32 %v4640, %v4834
      %v4964 = vadd.f32 %v4641, %v4873
      %v4965 = vadd.f32 %v4642, %v4875
      %v4966 = vadd.f32 %v4643, %v4914
      %v4967 = vadd.f32 %v4644, %v4916
      %v4968 = vadd.f32 %v4645, %v4955
      %v4969 = vld [vmem:[%s165] sm:$0xff]
      %v4970 = vld [vmem:[%s165 + $0x8] sm:$0xff]
      %v4971 = vld [vmem:[%s165 + $0x10] sm:$0xf]
      %s4972 = scalar_lea.vmem %s1, 30
      %v4973 = vld [vmem:[%s4972] sm:$0x3]
      %v4977 = vcombine.high %v4969, %v4969
      %v4979 = vunpack.c.l.s4 1983009808
      %v4980 = vunpack.c.0.s8 %v4979
      %v4981 = vlaneseq
      %v4982 = vshrl.u32 %v4981, 7
      %v4983 = vsub.s32 %v4980, %v4982
      %v4984 = vrot.slane %v4969, %v4983
      %v4986 = vunpack.c.l.s4 1983009808
      %v4987 = vunpack.c.0.s8 %v4986
      %v4988 = vlaneseq
      %v4989 = vshrl.u32 %v4988, 7
      %v4990 = vsub.s32 %v4987, %v4989
      %v4991 = vrot.slane %v4977, %v4990
      %v4992 = vcombine.high %v4984, %v4984
      %v4993 = vcombine.high %v4991, %v4991
      %v4994 = vcombine.high %v4970, %v4970
      %v4996 = vunpack.c.l.s4 1983009808
      %v4997 = vunpack.c.0.s8 %v4996
      %v4998 = vlaneseq
      %v4999 = vshrl.u32 %v4998, 7
      %v5000 = vsub.s32 %v4997, %v4999
      %v5001 = vrot.slane %v4970, %v5000
      %v5003 = vunpack.c.l.s4 1983009808
      %v5004 = vunpack.c.0.s8 %v5003
      %v5005 = vlaneseq
      %v5006 = vshrl.u32 %v5005, 7
      %v5007 = vsub.s32 %v5004, %v5006
      %v5008 = vrot.slane %v4994, %v5007
      %v5009 = vcombine.high %v5001, %v5001
      %v5010 = vcombine.high %v5008, %v5008
      %v5012 = vunpack.c.l.s4 1983009808
      %v5013 = vunpack.c.0.s8 %v5012
      %v5014 = vlaneseq
      %v5015 = vshrl.u32 %v5014, 7
      %v5016 = vsub.s32 %v5013, %v5015
      %v5017 = vrot.slane %v4971, %v5016
      %v5018 = vcombine.high %v5017, %v5017
      %5019 = vrot.lane.b32.xlu0 %v4984, 17
      %v5020 = vpop.permute.xlu0 %5019
      %5021 = vrot.lane.b32.xlu0 %v4992, 17
      %v5022 = vpop.permute.xlu0 %5021
      %5023 = vrot.lane.b32.xlu0 %v4991, 17
      %v5024 = vpop.permute.xlu0 %5023
      %5025 = vrot.lane.b32.xlu0 %v4993, 17
      %v5026 = vpop.permute.xlu0 %5025
      %5027 = vrot.lane.b32.xlu0 %v5001, 17
      %v5028 = vpop.permute.xlu0 %5027
      %5029 = vrot.lane.b32.xlu0 %v5009, 17
      %v5030 = vpop.permute.xlu0 %5029
      %5031 = vrot.lane.b32.xlu0 %v5008, 17
      %v5032 = vpop.permute.xlu0 %5031
      %5033 = vrot.lane.b32.xlu0 %v5010, 17
      %v5034 = vpop.permute.xlu0 %5033
      %5035 = vrot.lane.b32.xlu0 %v5017, 17
      %v5036 = vpop.permute.xlu0 %5035
      %5037 = vrot.lane.b32.xlu0 %v5018, 17
      %v5038 = vpop.permute.xlu0 %5037
      %vm5039 = vcmask 138240
      %v5040 = vsel %vm5039, %v5020, %v5022
      %v5041 = vsel %vm5039, %v5022, %v5024
      %v5042 = vsel %vm5039, %v5024, %v5026
      %v5043 = vsel %vm5039, %v5026, %v5028
      %v5044 = vsel %vm5039, %v5028, %v5030
      %v5045 = vsel %vm5039, %v5030, %v5032
      %v5046 = vsel %vm5039, %v5032, %v5034
      %v5047 = vsel %vm5039, %v5034, %v5036
      %v5048 = vsel %vm5039, %v5036, %v5038
      %v5050 = vsel %vm256, %v4973, 0
      %v5053 = vsel %vm260, %v5040, 0
      %v5056 = vsel %vm260, %v5041, 0
      %v5059 = vsel %vm260, %v5042, 0
      %v5062 = vsel %vm260, %v5043, 0
      %v5065 = vsel %vm260, %v5044, 0
      %v5068 = vsel %vm260, %v5045, 0
      %v5071 = vsel %vm260, %v5046, 0
      %v5074 = vsel %vm260, %v5047, 0
      %v5077 = vsel %vm260, %v5048, 0
      %5079 = vmatprep.subr.bf16.mxu0 %v5056
      %5080 = vmatpush1.bf16.msra.mxu0 %v5053
      %5081 = vmatprep.subr.bf16.mxu0 0
      %5082 = vmatpush1.bf16.msra.mxu0 0
      %5083 = vmatprep.subr.bf16.mxu0 0
      %5084 = vmatpush1.bf16.msra.mxu0 0
      %5085 = vmatprep.subr.bf16.mxu0 0
      %5086 = vmatpush1.bf16.msra.mxu0 0
      %5087 = vmatprep.subr.bf16.mxu0 0
      %5088 = vmatpush1.bf16.msra.mxu0 0
      %5089 = vmatprep.subr.bf16.mxu0 0
      %5090 = vmatpush1.bf16.msra.mxu0 0
      %5091 = vmatprep.subr.bf16.mxu0 0
      %5092 = vmatpush1.bf16.msra.mxu0 0
      %5093 = vmatprep.subr.bf16.mxu0 0
      %5094 = vmatpush1.bf16.msra.mxu0 0
      %5095 = vmatprep.subr.bf16.mxu0 0
      %5096 = vmatpush1.bf16.msra.mxu0 0
      %5097 = vmatprep.subr.bf16.mxu0 0
      %5098 = vmatpush1.bf16.msra.mxu0 0
      %5099 = vmatprep.subr.bf16.mxu0 0
      %5100 = vmatpush1.bf16.msra.mxu0 0
      %5101 = vmatprep.subr.bf16.mxu0 0
      %5102 = vmatpush1.bf16.msra.mxu0 0
      %5103 = vmatprep.subr.bf16.mxu0 0
      %5104 = vmatpush1.bf16.msra.mxu0 0
      %5105 = vmatprep.subr.bf16.mxu0 0
      %5106 = vmatpush1.bf16.msra.mxu0 0
      %5107 = vmatprep.subr.bf16.mxu0 0
      %5108 = vmatpush1.bf16.msra.mxu0 0
      %5109 = vmatprep.subr.bf16.mxu0 0
      %5110 = vmatpush1.bf16.msra.mxu0 0
      %5111 = vmatprep.mubr.bf16.mxu0 0
      %5112 = vmatmul.mubr.bf16.gmra.mrb[0].mxu0 %v5050
      %v5113 = vpop.f32.mrb[0].mxu0
      %v5114 = vadd.f32 0.0, %v5113
      %v5115 = vpop.f32.mrb[0].mxu0
      %v5116 = vadd.f32 0.0, %v5115
      %v5117 = vpop.f32.mrb[0].mxu0
      %v5118 = vpop.f32.mrb[0].mxu0
      %5119 = vdwg.mxu0
      %5120 = vmatprep.subr.bf16.mxu0 %v5062
      %5121 = vmatpush1.bf16.msra.mxu0 %v5059
      %5122 = vmatprep.subr.bf16.mxu0 0
      %5123 = vmatpush1.bf16.msra.mxu0 0
      %5124 = vmatprep.subr.bf16.mxu0 0
      %5125 = vmatpush1.bf16.msra.mxu0 0
      %5126 = vmatprep.subr.bf16.mxu0 0
      %5127 = vmatpush1.bf16.msra.mxu0 0
      %5128 = vmatprep.subr.bf16.mxu0 0
      %5129 = vmatpush1.bf16.msra.mxu0 0
      %5130 = vmatprep.subr.bf16.mxu0 0
      %5131 = vmatpush1.bf16.msra.mxu0 0
      %5132 = vmatprep.subr.bf16.mxu0 0
      %5133 = vmatpush1.bf16.msra.mxu0 0
      %5134 = vmatprep.subr.bf16.mxu0 0
      %5135 = vmatpush1.bf16.msra.mxu0 0
      %5136 = vmatprep.subr.bf16.mxu0 0
      %5137 = vmatpush1.bf16.msra.mxu0 0
      %5138 = vmatprep.subr.bf16.mxu0 0
      %5139 = vmatpush1.bf16.msra.mxu0 0
      %5140 = vmatprep.subr.bf16.mxu0 0
      %5141 = vmatpush1.bf16.msra.mxu0 0
      %5142 = vmatprep.subr.bf16.mxu0 0
      %5143 = vmatpush1.bf16.msra.mxu0 0
      %5144 = vmatprep.subr.bf16.mxu0 0
      %5145 = vmatpush1.bf16.msra.mxu0 0
      %5146 = vmatprep.subr.bf16.mxu0 0
      %5147 = vmatpush1.bf16.msra.mxu0 0
      %5148 = vmatprep.subr.bf16.mxu0 0
      %5149 = vmatpush1.bf16.msra.mxu0 0
      %5150 = vmatprep.subr.bf16.mxu0 0
      %5151 = vmatpush1.bf16.msra.mxu0 0
      %5152 = vmatprep.mubr.bf16.mxu0 0
      %5153 = vmatmul.mubr.bf16.gmra.mrb[0].mxu0 %v5050
      %v5154 = vpop.f32.mrb[0].mxu0
      %v5155 = vadd.f32 0.0, %v5154
      %v5156 = vpop.f32.mrb[0].mxu0
      %v5157 = vadd.f32 0.0, %v5156
      %v5158 = vpop.f32.mrb[0].mxu0
      %v5159 = vpop.f32.mrb[0].mxu0
      %5160 = vdwg.mxu0
      %5161 = vmatprep.subr.bf16.mxu0 %v5068
      %5162 = vmatpush1.bf16.msra.mxu0 %v5065
      %5163 = vmatprep.subr.bf16.mxu0 0
      %5164 = vmatpush1.bf16.msra.mxu0 0
      %5165 = vmatprep.subr.bf16.mxu0 0
      %5166 = vmatpush1.bf16.msra.mxu0 0
      %5167 = vmatprep.subr.bf16.mxu0 0
      %5168 = vmatpush1.bf16.msra.mxu0 0
      %5169 = vmatprep.subr.bf16.mxu0 0
      %5170 = vmatpush1.bf16.msra.mxu0 0
      %5171 = vmatprep.subr.bf16.mxu0 0
      %5172 = vmatpush1.bf16.msra.mxu0 0
      %5173 = vmatprep.subr.bf16.mxu0 0
      %5174 = vmatpush1.bf16.msra.mxu0 0
      %5175 = vmatprep.subr.bf16.mxu0 0
      %5176 = vmatpush1.bf16.msra.mxu0 0
      %5177 = vmatprep.subr.bf16.mxu0 0
      %5178 = vmatpush1.bf16.msra.mxu0 0
      %5179 = vmatprep.subr.bf16.mxu0 0
      %5180 = vmatpush1.bf16.msra.mxu0 0
      %5181 = vmatprep.subr.bf16.mxu0 0
      %5182 = vmatpush1.bf16.msra.mxu0 0
      %5183 = vmatprep.subr.bf16.mxu0 0
      %5184 = vmatpush1.bf16.msra.mxu0 0
      %5185 = vmatprep.subr.bf16.mxu0 0
      %5186 = vmatpush1.bf16.msra.mxu0 0
      %5187 = vmatprep.subr.bf16.mxu0 0
      %5188 = vmatpush1.bf16.msra.mxu0 0
      %5189 = vmatprep.subr.bf16.mxu0 0
      %5190 = vmatpush1.bf16.msra.mxu0 0
      %5191 = vmatprep.subr.bf16.mxu0 0
      %5192 = vmatpush1.bf16.msra.mxu0 0
      %5193 = vmatprep.mubr.bf16.mxu0 0
      %5194 = vmatmul.mubr.bf16.gmra.mrb[0].mxu0 %v5050
      %v5195 = vpop.f32.mrb[0].mxu0
      %v5196 = vadd.f32 0.0, %v5195
      %v5197 = vpop.f32.mrb[0].mxu0
      %v5198 = vadd.f32 0.0, %v5197
      %v5199 = vpop.f32.mrb[0].mxu0
      %v5200 = vpop.f32.mrb[0].mxu0
      %5201 = vdwg.mxu0
      %5202 = vmatprep.subr.bf16.mxu0 %v5074
      %5203 = vmatpush1.bf16.msra.mxu0 %v5071
      %5204 = vmatprep.subr.bf16.mxu0 0
      %5205 = vmatpush1.bf16.msra.mxu0 0
      %5206 = vmatprep.subr.bf16.mxu0 0
      %5207 = vmatpush1.bf16.msra.mxu0 0
      %5208 = vmatprep.subr.bf16.mxu0 0
      %5209 = vmatpush1.bf16.msra.mxu0 0
      %5210 = vmatprep.subr.bf16.mxu0 0
      %5211 = vmatpush1.bf16.msra.mxu0 0
      %5212 = vmatprep.subr.bf16.mxu0 0
      %5213 = vmatpush1.bf16.msra.mxu0 0
      %5214 = vmatprep.subr.bf16.mxu0 0
      %5215 = vmatpush1.bf16.msra.mxu0 0
      %5216 = vmatprep.subr.bf16.mxu0 0
      %5217 = vmatpush1.bf16.msra.mxu0 0
      %5218 = vmatprep.subr.bf16.mxu0 0
      %5219 = vmatpush1.bf16.msra.mxu0 0
      %5220 = vmatprep.subr.bf16.mxu0 0
      %5221 = vmatpush1.bf16.msra.mxu0 0
      %5222 = vmatprep.subr.bf16.mxu0 0
      %5223 = vmatpush1.bf16.msra.mxu0 0
      %5224 = vmatprep.subr.bf16.mxu0 0
      %5225 = vmatpush1.bf16.msra.mxu0 0
      %5226 = vmatprep.subr.bf16.mxu0 0
      %5227 = vmatpush1.bf16.msra.mxu0 0
      %5228 = vmatprep.subr.bf16.mxu0 0
      %5229 = vmatpush1.bf16.msra.mxu0 0
      %5230 = vmatprep.subr.bf16.mxu0 0
      %5231 = vmatpush1.bf16.msra.mxu0 0
      %5232 = vmatprep.subr.bf16.mxu0 0
      %5233 = vmatpush1.bf16.msra.mxu0 0
      %5234 = vmatprep.mubr.bf16.mxu0 0
      %5235 = vmatmul.mubr.bf16.gmra.mrb[0].mxu0 %v5050
      %v5236 = vpop.f32.mrb[0].mxu0
      %v5237 = vadd.f32 0.0, %v5236
      %v5238 = vpop.f32.mrb[0].mxu0
      %v5239 = vadd.f32 0.0, %v5238
      %v5240 = vpop.f32.mrb[0].mxu0
      %v5241 = vpop.f32.mrb[0].mxu0
      %5242 = vdwg.mxu0
      %5243 = vmatprep.subr.bf16.mxu0 0
      %5244 = vmatpush1.bf16.msra.mxu0 %v5077
      %5245 = vmatprep.subr.bf16.mxu0 0
      %5246 = vmatpush1.bf16.msra.mxu0 0
      %5247 = vmatprep.subr.bf16.mxu0 0
      %5248 = vmatpush1.bf16.msra.mxu0 0
      %5249 = vmatprep.subr.bf16.mxu0 0
      %5250 = vmatpush1.bf16.msra.mxu0 0
      %5251 = vmatprep.subr.bf16.mxu0 0
      %5252 = vmatpush1.bf16.msra.mxu0 0
      %5253 = vmatprep.subr.bf16.mxu0 0
      %5254 = vmatpush1.bf16.msra.mxu0 0
      %5255 = vmatprep.subr.bf16.mxu0 0
      %5256 = vmatpush1.bf16.msra.mxu0 0
      %5257 = vmatprep.subr.bf16.mxu0 0
      %5258 = vmatpush1.bf16.msra.mxu0 0
      %5259 = vmatprep.subr.bf16.mxu0 0
      %5260 = vmatpush1.bf16.msra.mxu0 0
      %5261 = vmatprep.subr.bf16.mxu0 0
      %5262 = vmatpush1.bf16.msra.mxu0 0
      %5263 = vmatprep.subr.bf16.mxu0 0
      %5264 = vmatpush1.bf16.msra.mxu0 0
      %5265 = vmatprep.subr.bf16.mxu0 0
      %5266 = vmatpush1.bf16.msra.mxu0 0
      %5267 = vmatprep.subr.bf16.mxu0 0
      %5268 = vmatpush1.bf16.msra.mxu0 0
      %5269 = vmatprep.subr.bf16.mxu0 0
      %5270 = vmatpush1.bf16.msra.mxu0 0
      %5271 = vmatprep.subr.bf16.mxu0 0
      %5272 = vmatpush1.bf16.msra.mxu0 0
      %5273 = vmatprep.subr.bf16.mxu0 0
      %5274 = vmatpush1.bf16.msra.mxu0 0
      %5275 = vmatprep.mubr.bf16.mxu0 0
      %5276 = vmatmul.mubr.bf16.gmra.mrb[0].mxu0 %v5050
      %v5277 = vpop.f32.mrb[0].mxu0
      %v5278 = vadd.f32 0.0, %v5277
      %v5279 = vpop.f32.mrb[0].mxu0
      %v5280 = vpop.f32.mrb[0].mxu0
      %v5281 = vpop.f32.mrb[0].mxu0
      %5282 = vdwg.mxu0
      %v5283 = vadd.f32 %v4960, %v5114
      %v5284 = vadd.f32 %v4961, %v5116
      %v5285 = vadd.f32 %v4962, %v5155
      %v5286 = vadd.f32 %v4963, %v5157
      %v5287 = vadd.f32 %v4964, %v5196
      %v5288 = vadd.f32 %v4965, %v5198
      %v5289 = vadd.f32 %v4966, %v5237
      %v5290 = vadd.f32 %v4967, %v5239
      %v5291 = vadd.f32 %v4968, %v5278
      %v5292 = vld [vmem:[%s2] sm:$0xf]
      %5294 = vset.pattern.permute.xlu0 0
      %5295 = vperm.xlu0 %5294, %v5292
      %v5296 = vpop.permute.xlu0 %5295
      %v5298 = vadd.f32 %v5283, %v5296
      %v5299 = vadd.f32 %v5284, %v5296
      %v5300 = vadd.f32 %v5285, %v5296
      %v5301 = vadd.f32 %v5286, %v5296
      %v5302 = vadd.f32 %v5287, %v5296
      %v5303 = vadd.f32 %v5288, %v5296
      %v5304 = vadd.f32 %v5289, %v5296
      %v5305 = vadd.f32 %v5290, %v5296
      %v5306 = vadd.f32 %v5291, %v5296
      %v5315 = vcombine.low %v5298, %v5299
      %v5316 = vcombine.low %v5300, %v5301
      %v5317 = vcombine.low %v5302, %v5303
      %v5318 = vcombine.low %v5304, %v5305
      %5323 = vst [vmem:[%s170] sm:$0xff] %v5315
      %5324 = vst [vmem:[%s170 + $0x8] sm:$0xff] %v5316
      %5325 = vst [vmem:[%s170 + $0x10] sm:$0xff] %v5317
      %5326 = vst [vmem:[%s170 + $0x18] sm:$0xff] %v5318
      %5327 = vst [vmem:[%s170 + $0x20] sm:$0xf] %v5306
      %p5328 = scmp.lt.s32.totalorder %s14, 1
      %s5329 = scalar_select %p5328, %s14, 1
      %s5330 = smul.addr %s5329, 9
      %s5331 = smul.addr %s5330, 4
      %s5332 = scalar_lea.vmem %s3, %s5331
      // Predicated region
      $region33: #{fused_upsample.1} parent=31 // pred_check
        %p5333 = pneg %p100
      $region34: #{fused_upsample.1} parent=31 // pred_check_branch
        %5335 = sbr.rel (%p5333) target = $region36
      $region35: #{fused_upsample.1} parent=31 // pred_region
        _
      $region36: #{fused_upsample.1} parent=31 // pred_fallthru
        _
    $region32: #{fused_upsample.1} parent=5 // pred_fallthru
      _
    %p5336 = scmp.le.s32.totalorder 2, %s9
    // Predicated region
    $region37: #{fused_upsample.1} parent=5 // pred_check
      %p5337 = pneg %p5336
    $region38: #{fused_upsample.1} parent=5 // pred_check_branch
      %5339 = sbr.rel (%p5337) target = $region40
    $region39: #{fused_upsample.1} parent=5 // pred_region
      %s5340 = ssub.s32 %s9, 2
      // Predicated region
      $region41: #{fused_upsample.1} parent=39 // pred_check
        %p5341 = pneg %p106
      $region42: #{fused_upsample.1} parent=39 // pred_check_branch
        %5343 = sbr.rel (%p5341) target = $region44
      $region43: #{fused_upsample.1} parent=39 // pred_region
        %p5344 = scmp.lt.s32.totalorder %s15, 1
        %s5345 = scalar_select %p5344, %s15, 1
        %s5346 = smul.addr %s5345, 9
        %s5347 = smul.addr %s5346, 4
        %s5348 = scalar_lea.vmem %s3, %s5347
      $region44: #{fused_upsample.1} parent=39 // pred_fallthru
        _
    $region40: #{fused_upsample.1} parent=5 // pred_fallthru
      _
  $region6: #{fused_upsample.1} parent=0 // loop_footer
    %s13 = sadd.s32 1, %s9
  $region7: #{fused_upsample.1} parent=0 // loop_footer_branch
    %8 = sbr.rel target = $region3
  $region8: #{fused_upsample.1} parent=0 // loop_exit
    _

</llo_original>
